<compile_context>
chip_gen: v7x
topology: tpu7x:2x2x1
jax: 0.10.0
libtpu: 0.0.40
codegen_flags: <defaults>
</compile_context>

<pallas_src>
import functools

import jax
import jax.numpy as jnp
from jax.experimental import pallas as pl
from jax.experimental.pallas import tpu as pltpu


_EPS = 1e-5      # PyTorch BatchNorm default eps
_TM1 = 256       # stage-1 lane tile (multiple of 128); grid = cdiv(B*196, _TM1)
_SPAD = 128      # per-sample spatial padding for stage-2 lane slabs


def _compiler_params(dims):
    cls = getattr(pltpu, "CompilerParams", None)
    if cls is None:                      # very old jax releases
        cls = getattr(pltpu, "TPUCompilerParams")
    return cls(dimension_semantics=dims, vmem_limit_bytes=32 * 1024 * 1024)


# --------------------------------------------------------------------------
# Kernel 1: conv1 (one wide lane-dense GEMM) + bias + 2x2 max-pool + ReLU,
#           M-tiled parallel grid.
# --------------------------------------------------------------------------

def _conv1_pool_relu_kernel(p_ref, w_ref, b_ref, o_ref, *, tm):
    # p_ref: [K, 4*tm] bf16 (four pool-parity column groups, tm lanes each)
    # w_ref: [Cout, K] bf16 ; b_ref: [Cout, 1] f32 ; o_ref: [Cout, tm] f32
    y = jnp.dot(w_ref[...], p_ref[...], preferred_element_type=jnp.float32)
    a = jnp.maximum(jnp.maximum(y[:, 0 * tm:1 * tm], y[:, 1 * tm:2 * tm]),
                    jnp.maximum(y[:, 2 * tm:3 * tm], y[:, 3 * tm:4 * tm]))
    # per-channel bias commutes with the pool-max; ReLU afterwards.
    o_ref[...] = jnp.maximum(a + b_ref[...], 0.0)


def conv1_pool_relu(p1, w1f, b1, m_pad, tm):
    c_out, K = w1f.shape
    nb = m_pad // tm
    return pl.pallas_call(
        functools.partial(_conv1_pool_relu_kernel, tm=tm),
        grid=(nb,),
        in_specs=[
            pl.BlockSpec((K, 4 * tm), lambda i: (0, i)),
            pl.BlockSpec((c_out, K), lambda i: (0, 0)),
            pl.BlockSpec((c_out, 1), lambda i: (0, 0)),
        ],
        out_specs=pl.BlockSpec((c_out, tm), lambda i: (0, i)),
        out_shape=jax.ShapeDtypeStruct((c_out, m_pad), jnp.float32),
        compiler_params=_compiler_params(("parallel",)),
    )(p1, w1f, b1)


# --------------------------------------------------------------------------
# Kernel 2: conv2 + BN2d + pool + ReLU + NCHW flatten + dense1 + BN1d + ReLU
#           + dense2 + ReLU + log_softmax, fully fused.
# --------------------------------------------------------------------------

def _fused_tail_kernel(p2_ref, w2_ref, b2_ref, g2_ref, be2_ref,
                       wd1_ref, bd1_ref, g1_ref, be1_ref,
                       wd2_ref, bd2_ref, o_ref, a2_scr, *, batch):
    mw = batch * _SPAD                              # lanes per parity group

    # ---- conv2 as ONE wide lane-dense GEMM over all four pool parities -----
    y = jnp.dot(w2_ref[...], p2_ref[...],
                preferred_element_type=jnp.float32) + b2_ref[...]   # [10, 4*mw]
    ys = [y[:, k * mw:(k + 1) * mw] for k in range(4)]              # 128-aligned

    # ---- BatchNorm2d: training-mode stats over the full pre-pool 10x10 map.
    # Pad lanes (s >= 25 inside each per-sample 128-lane slab) are masked out.
    lane = jax.lax.broadcasted_iota(jnp.int32, (1, mw), 1)
    mask = ((lane & (_SPAD - 1)) < 25).astype(jnp.float32)          # [1, mw]
    n_valid = 4.0 * batch * 25.0                                    # = B*10*10
    mean = jnp.sum((ys[0] + ys[1] + ys[2] + ys[3]) * mask,
                   axis=1, keepdims=True) / n_valid                 # [10, 1]
    var = (jnp.sum(((ys[0] - mean) ** 2) * mask, axis=1, keepdims=True)
           + jnp.sum(((ys[1] - mean) ** 2) * mask, axis=1, keepdims=True)
           + jnp.sum(((ys[2] - mean) ** 2) * mask, axis=1, keepdims=True)
           + jnp.sum(((ys[3] - mean) ** 2) * mask, axis=1, keepdims=True)) / n_valid
    scale = jax.lax.rsqrt(var + _EPS) * g2_ref[...]
    shift = be2_ref[...] - mean * scale

    # ---- 2x2 max-pool (max over the four parities, BN applied first) + ReLU -
    z01 = jnp.maximum(ys[0] * scale + shift, ys[1] * scale + shift)
    z23 = jnp.maximum(ys[2] * scale + shift, ys[3] * scale + shift)
    a2 = jnp.maximum(jnp.maximum(z01, z23), 0.0)                    # [10, mw]

    # ---- NCHW flatten + dense1 as ONE batched GEMM --------------------------
    # Full-vreg (128-lane, unmasked) per-sample slab copies into a
    # [cin, B, 128] scratch, then contract the zero-padded spatial axis against
    # wd1 ([cin, 60, 128]) and reduce over cin. Pad lanes hit zero weight rows.
    for b in range(batch):
        a2_scr[:, b, :] = a2[:, b * _SPAD:(b + 1) * _SPAD]
    part = jax.lax.dot_general(a2_scr[...], wd1_ref[...],
                               dimension_numbers=(((2,), (2,)), ((0,), (0,))),
                               preferred_element_type=jnp.float32)  # [10, B, 60]
    y1 = jnp.sum(part, axis=0) + bd1_ref[...]                       # [B, 60]

    # ---- BatchNorm1d (training-mode batch stats) + ReLU ---------------------
    mu = jnp.sum(y1, axis=0, keepdims=True) / batch
    yc = y1 - mu
    v1 = jnp.sum(yc * yc, axis=0, keepdims=True) / batch
    y1 = jnp.maximum(yc * (jax.lax.rsqrt(v1 + _EPS) * g1_ref[...]) + be1_ref[...],
                     0.0)

    # ---- dense2 + ReLU + log_softmax ----------------------------------------
    y2 = jnp.dot(y1, wd2_ref[...], preferred_element_type=jnp.float32) + bd2_ref[...]
    y2 = jnp.maximum(y2, 0.0)
    zz = y2 - jnp.max(y2, axis=-1, keepdims=True)
    o_ref[...] = zz - jnp.log(jnp.sum(jnp.exp(zz), axis=-1, keepdims=True))


def fused_conv2_dense_tail(p2, params, batch):
    K2 = p2.shape[0]                                               # 250
    mw = batch * _SPAD
    w2f = params["conv2_w"].reshape(10, K2).astype(jnp.bfloat16)
    # dense1 weight [60, 250] -> [cin=10, out=60, s=25] -> zero-pad s to 128.
    wd1p = jnp.transpose(params["dense1_w"].reshape(60, 10, 25), (1, 0, 2))
    wd1p = jnp.pad(wd1p, ((0, 0), (0, 0), (0, _SPAD - 25)))
    wd2t = jnp.transpose(params["dense2_w"])                       # [60, 10]
    kern = functools.partial(_fused_tail_kernel, batch=batch)
    return pl.pallas_call(
        kern,
        grid=(1,),
        in_specs=[
            pl.BlockSpec((K2, 4 * mw), lambda i: (0, 0)),
            pl.BlockSpec((10, K2), lambda i: (0, 0)),
            pl.BlockSpec((10, 1), lambda i: (0, 0)),
            pl.BlockSpec((10, 1), lambda i: (0, 0)),
            pl.BlockSpec((10, 1), lambda i: (0, 0)),
            pl.BlockSpec((10, 60, _SPAD), lambda i: (0, 0, 0)),
            pl.BlockSpec((1, 60), lambda i: (0, 0)),
            pl.BlockSpec((1, 60), lambda i: (0, 0)),
            pl.BlockSpec((1, 60), lambda i: (0, 0)),
            pl.BlockSpec((60, 10), lambda i: (0, 0)),
            pl.BlockSpec((1, 10), lambda i: (0, 0)),
        ],
        out_specs=pl.BlockSpec((batch, 10), lambda i: (0, 0)),
        out_shape=jax.ShapeDtypeStruct((batch, 10), jnp.float32),
        scratch_shapes=[pltpu.VMEM((10, batch, _SPAD), jnp.float32)],
        compiler_params=_compiler_params(("arbitrary",)),
    )(p2, w2f, params["conv2_b"].reshape(10, 1),
      params["bn2_g"].reshape(10, 1), params["bn2_b"].reshape(10, 1),
      wd1p, params["dense1_b"].reshape(1, 60),
      params["bn1_g"].reshape(1, 60), params["bn1_b"].reshape(1, 60),
      wd2t, params["dense2_b"].reshape(1, 10))


# --------------------------------------------------------------------------
# XLA glue: im2col parity patches for "VALID kxk conv + 2x2/2 max-pool"
# --------------------------------------------------------------------------

def _parity_patches(x_cbhw, k):
    """[C, B, H, W] -> [4, C*k*k, B, Ho//2, Wo//2]; rows ordered (ci, di, dj)
    to match W.reshape(Cout, Cin*k*k); leading axis = the four positions of
    each 2x2 pooling window so the pool is a max over four GEMM outputs."""
    C, B, H, W = x_cbhw.shape
    Ho, Wo = H - k + 1, W - k + 1
    cols = []
    for di in range(k):
        for dj in range(k):
            cols.append(x_cbhw[:, :, di:di + Ho, dj:dj + Wo])
    p = jnp.stack(cols, axis=1).reshape(C * k * k, B, Ho, Wo)
    return jnp.stack([p[:, :, 0::2, 0::2], p[:, :, 0::2, 1::2],
                      p[:, :, 1::2, 0::2], p[:, :, 1::2, 1::2]], axis=0)


def _stage1_patches(x_cbhw, k, tm):
    """-> bf16 [K, nb*4*tm]: columns grouped (m_block, parity, m_within); each
    grid step of kernel 1 reads one lane-aligned 4*tm-wide group. m enumerates
    (b, hh, ww) pooled positions, zero-padded to a multiple of tm."""
    par = _parity_patches(x_cbhw, k)
    _, K, B, h, w = par.shape
    m = B * h * w
    nb = -(-m // tm)
    m_pad = nb * tm
    p = par.reshape(4, K, m)
    p = jnp.pad(p, ((0, 0), (0, 0), (0, m_pad - m)))
    p = p.reshape(4, K, nb, tm).transpose(1, 2, 0, 3).reshape(K, nb * 4 * tm)
    return p.astype(jnp.bfloat16), m_pad


def _stage2_patches(a1_cbhw, k):
    """-> bf16 [K, 4*B*128]: columns ordered (parity, b, s) with each sample's
    25 pooled spatial positions zero-padded to a full 128-lane slab."""
    par = _parity_patches(a1_cbhw, k)
    _, K, B, h, w = par.shape
    s = h * w
    p = par.reshape(4, K, B, s)
    p = jnp.pad(p, ((0, 0), (0, 0), (0, 0), (0, _SPAD - s)))
    p = p.transpose(1, 0, 2, 3).reshape(K, 4 * B * _SPAD)
    return p.astype(jnp.bfloat16)


# --------------------------------------------------------------------------
# Parameters (PyTorch-native layouts) and forward pass
# --------------------------------------------------------------------------

def init_params(key):
    def uni(k, shape, fan_in):
        bound = float(fan_in) ** -0.5
        return jax.random.uniform(k, shape, jnp.float32, -bound, bound)

    ks = jax.random.split(key, 8)
    return {
        "conv1_w": uni(ks[0], (10, 3, 5, 5), 3 * 25),     # [cout, cin, kh, kw]
        "conv1_b": uni(ks[1], (10,), 3 * 25),
        "conv2_w": uni(ks[2], (10, 10, 5, 5), 10 * 25),
        "conv2_b": uni(ks[3], (10,), 10 * 25),
        "bn2_g": jnp.ones((10,), jnp.float32),
        "bn2_b": jnp.zeros((10,), jnp.float32),
        "dense1_w": uni(ks[4], (60, 250), 250),           # [out, in]
        "dense1_b": uni(ks[5], (60,), 250),
        "bn1_g": jnp.ones((60,), jnp.float32),
        "bn1_b": jnp.zeros((60,), jnp.float32),
        "dense2_w": uni(ks[6], (10, 60), 60),
        "dense2_b": uni(ks[7], (10,), 60),
    }


def net_forward(params, x_nchw):
    x = x_nchw.astype(jnp.float32)
    B = x.shape[0]
    xc = jnp.transpose(x, (1, 0, 2, 3))                   # [3, B, 32, 32]

    # Stage 1: relu(max_pool2d(conv1(x), 2)), lane-dense, M-tiled parallel grid.
    p1, m1_pad = _stage1_patches(xc, 5, _TM1)             # bf16 [75, 4*m1_pad]
    w1f = params["conv1_w"].reshape(10, 75).astype(jnp.bfloat16)
    a1 = conv1_pool_relu(p1, w1f, params["conv1_b"].reshape(10, 1), m1_pad, _TM1)
    a1 = a1[:, :B * 196].reshape(10, B, 14, 14)           # (C, B, H, W) layout

    # Stage 2 (one fused call): conv2 -> BN2d -> pool -> relu -> NCHW flatten
    # -> dense1 -> BN1d -> relu -> dense2 -> relu -> log_softmax.
    # TODO(synk): fusing stage 1+2 into a single pallas_call (building conv2
    # patches in-kernel from the resident a1 tile) would remove a launch and
    # the a1/p2 HBM round trip, but needs stride-2 spatial ref gathers that do
    # not lower robustly today; patch construction stays XLA glue.
    # TODO(synk): BatchNorm running-stat (momentum) updates are training state,
    # not part of the forward output, and are intentionally not modeled.
    p2 = _stage2_patches(a1, 5)                           # bf16 [250, 4*B*128]
    return fused_conv2_dense_tail(p2, params, B)          # [B, 10]


# --------------------------------------------------------------------------
# Pure-JAX reference (mirrors the PyTorch module, training-mode BatchNorm)
# --------------------------------------------------------------------------

def net_forward_reference(params, x_nchw):
    dn = ("NCHW", "OIHW", "NCHW")
    hp = jax.lax.Precision.HIGHEST
    y = jax.lax.conv_general_dilated(x_nchw.astype(jnp.float32),
                                     params["conv1_w"], (1, 1), "VALID",
                                     dimension_numbers=dn, precision=hp)
    y = y + params["conv1_b"].reshape(1, -1, 1, 1)
    y = jax.lax.reduce_window(y, -jnp.inf, jax.lax.max,
                              (1, 1, 2, 2), (1, 1, 2, 2), "VALID")
    y = jnp.maximum(y, 0.0)
    y = jax.lax.conv_general_dilated(y, params["conv2_w"], (1, 1), "VALID",
                                     dimension_numbers=dn, precision=hp)
    y = y + params["conv2_b"].reshape(1, -1, 1, 1)
    mean = jnp.mean(y, axis=(0, 2, 3), keepdims=True)
    var = jnp.var(y, axis=(0, 2, 3), keepdims=True)
    y = ((y - mean) * jax.lax.rsqrt(var + _EPS)
         * params["bn2_g"].reshape(1, -1, 1, 1) + params["bn2_b"].reshape(1, -1, 1, 1))
    y = jax.lax.reduce_window(y, -jnp.inf, jax.lax.max,
                              (1, 1, 2, 2), (1, 1, 2, 2), "VALID")
    y = jnp.maximum(y, 0.0)
    y = y.reshape(y.shape[0], -1)                                   # [B, 250]
    y = jnp.dot(y, params["dense1_w"].T, precision=hp) + params["dense1_b"]
    mu = jnp.mean(y, axis=0, keepdims=True)
    v1 = jnp.var(y, axis=0, keepdims=True)
    y = (y - mu) * jax.lax.rsqrt(v1 + _EPS) * params["bn1_g"] + params["bn1_b"]
    y = jnp.maximum(y, 0.0)
    y = jnp.maximum(jnp.dot(y, params["dense2_w"].T, precision=hp)
                    + params["dense2_b"], 0.0)
    return jax.nn.log_softmax(y, axis=-1)


# --------------------------------------------------------------------------

if __name__ == "__main__":
    key = jax.random.PRNGKey(0)
    k_params, k_x = jax.random.split(key)
    params = init_params(k_params)
    # Input implied by the module: 3x32x32 (view(-1, 250) => 10*5*5 after two
    # conv5 + pool2 stages). Small batch of 2.
    x = jax.random.normal(k_x, (2, 3, 32, 32), dtype=jnp.float32)

    out = jax.jit(net_forward)(params, x)
    out = jax.block_until_ready(out)

    assert out.shape == (2, 10)
    assert bool(jnp.all(jnp.isfinite(out)))
    # log_softmax rows should sum to ~1 in probability space
    assert bool(jnp.allclose(jnp.sum(jnp.exp(out), axis=-1), 1.0, atol=1e-4))
    # match the pure-JAX f32 reference of the PyTorch forward; bf16 MXU inputs
    # for the conv GEMMs widen the error slightly, 5e-2 abs is ample headroom.
    ref = net_forward_reference(params, x)
    assert bool(jnp.allclose(out, ref, atol=5e-2, rtol=0.0)), (out, ref)
    print("KERNEL_OK")
</pallas_src>

<mosaic_0001>
module attributes {stable_mosaic.version = 11 : i64} {
  func.func @_conv1_pool_relu_kernel(%arg0: i32, %arg1: memref<75x1024xbf16, #tpu.memory_space<vmem>>, %arg2: memref<10x75xbf16, #tpu.memory_space<vmem>>, %arg3: memref<10x1xf32, #tpu.memory_space<vmem>>, %arg4: memref<10x256xf32, #tpu.memory_space<vmem>>) attributes {dimension_semantics = [#tpu.dimension_semantics<parallel>], iteration_bounds = array<i64: 2>, scalar_prefetch = 0 : i64, scratch_operands = 0 : i64, tpu.core_type = #tpu.core_type<tc>, window_params = [{transform_indices = @transform_0, window_bounds = array<i64: 75, 1024>}, {pipeline_mode = #tpu.pipeline_mode<synchronous>, transform_indices = @transform_1, window_bounds = array<i64: 10, 75>}, {pipeline_mode = #tpu.pipeline_mode<synchronous>, transform_indices = @transform_2, window_bounds = array<i64: 10, 1>}, {transform_indices = @transform_3, window_bounds = array<i64: 10, 256>}]} {
    %c0 = arith.constant 0 : index
    %c0_0 = arith.constant 0 : index
    %0 = vector.load %arg2[%c0, %c0_0] : memref<10x75xbf16, #tpu.memory_space<vmem>>, vector<10x75xbf16>
    %c0_1 = arith.constant 0 : index
    %c0_2 = arith.constant 0 : index
    %1 = vector.load %arg1[%c0_1, %c0_2] : memref<75x1024xbf16, #tpu.memory_space<vmem>>, vector<75x1024xbf16>
    %cst = arith.constant dense<0.000000e+00> : vector<10x1024xf32>
    %2 = tpu.matmul %0, %1, %cst {dimension_numbers = #tpu.dot_dimension_numbers<[1], [0], [0], [1], [0, 0, 1, 1], [], []>} : vector<10x75xbf16>, vector<75x1024xbf16>, vector<10x1024xf32> -> vector<10x1024xf32>
    %3 = vector.extract_strided_slice %2 {offsets = [0, 0], sizes = [10, 256], strides = [1, 1]} : vector<10x1024xf32> to vector<10x256xf32>
    %4 = vector.extract_strided_slice %2 {offsets = [0, 256], sizes = [10, 256], strides = [1, 1]} : vector<10x1024xf32> to vector<10x256xf32>
    %5 = arith.maximumf %3, %4 : vector<10x256xf32>
    %6 = vector.extract_strided_slice %2 {offsets = [0, 512], sizes = [10, 256], strides = [1, 1]} : vector<10x1024xf32> to vector<10x256xf32>
    %7 = vector.extract_strided_slice %2 {offsets = [0, 768], sizes = [10, 256], strides = [1, 1]} : vector<10x1024xf32> to vector<10x256xf32>
    %8 = arith.maximumf %6, %7 : vector<10x256xf32>
    %9 = arith.maximumf %5, %8 : vector<10x256xf32>
    %c0_3 = arith.constant 0 : index
    %c0_4 = arith.constant 0 : index
    %10 = vector.load %arg3[%c0_3, %c0_4] : memref<10x1xf32, #tpu.memory_space<vmem>>, vector<10x1xf32>
    %11 = vector.broadcast %10 : vector<10x1xf32> to vector<10x256xf32>
    %12 = arith.addf %9, %11 : vector<10x256xf32>
    %cst_5 = arith.constant 0.000000e+00 : f32
    %13 = vector.broadcast %cst_5 : f32 to vector<10x256xf32>
    %14 = arith.maximumf %12, %13 : vector<10x256xf32>
    %c0_6 = arith.constant 0 : index
    %c0_7 = arith.constant 0 : index
    %15 = vector.load %arg4[%c0_6, %c0_7] : memref<10x256xf32, #tpu.memory_space<vmem>>, vector<10x256xf32>
    tpu.vector_store %arg4[%c0_6, %c0_7], %14 {strides = array<i32>} : memref<10x256xf32, #tpu.memory_space<vmem>>, vector<10x256xf32>,
    return
  }
  func.func @transform_0(%arg0: i32) -> (i32, i32) {
    %c0_i32 = arith.constant 0 : i32
    %c0_i32_0 = arith.constant 0 : i32
    return %c0_i32, %arg0 : i32, i32
  }
  func.func @transform_1(%arg0: i32) -> (i32, i32) {
    %c0_i32 = arith.constant 0 : i32
    %c0_i32_0 = arith.constant 0 : i32
    %c0_i32_1 = arith.constant 0 : i32
    return %c0_i32, %c0_i32_0 : i32, i32
  }
  func.func @transform_2(%arg0: i32) -> (i32, i32) {
    %c0_i32 = arith.constant 0 : i32
    %c0_i32_0 = arith.constant 0 : i32
    %c0_i32_1 = arith.constant 0 : i32
    return %c0_i32, %c0_i32_0 : i32, i32
  }
  func.func @transform_3(%arg0: i32) -> (i32, i32) {
    %c0_i32 = arith.constant 0 : i32
    %c0_i32_0 = arith.constant 0 : i32
    return %c0_i32, %arg0 : i32, i32
  }
}

module attributes {stable_mosaic.version = 11 : i64} {
  func.func @_fused_tail_kernel(%arg0: i32, %arg1: memref<250x1024xbf16, #tpu.memory_space<vmem>>, %arg2: memref<10x250xbf16, #tpu.memory_space<vmem>>, %arg3: memref<10x1xf32, #tpu.memory_space<vmem>>, %arg4: memref<10x1xf32, #tpu.memory_space<vmem>>, %arg5: memref<10x1xf32, #tpu.memory_space<vmem>>, %arg6: memref<10x60x128xf32, #tpu.memory_space<vmem>>, %arg7: memref<1x60xf32, #tpu.memory_space<vmem>>, %arg8: memref<1x60xf32, #tpu.memory_space<vmem>>, %arg9: memref<1x60xf32, #tpu.memory_space<vmem>>, %arg10: memref<60x10xf32, #tpu.memory_space<vmem>>, %arg11: memref<1x10xf32, #tpu.memory_space<vmem>>, %arg12: memref<2x10xf32, #tpu.memory_space<vmem>>, %arg13: memref<10x2x128xf32, #tpu.memory_space<vmem>>) attributes {dimension_semantics = [#tpu.dimension_semantics<arbitrary>], iteration_bounds = array<i64: 1>, scalar_prefetch = 0 : i64, scratch_operands = 1 : i64, tpu.core_type = #tpu.core_type<tc>, window_params = [{pipeline_mode = #tpu.pipeline_mode<synchronous>, transform_indices = @transform_0, window_bounds = array<i64: 250, 1024>}, {pipeline_mode = #tpu.pipeline_mode<synchronous>, transform_indices = @transform_1, window_bounds = array<i64: 10, 250>}, {pipeline_mode = #tpu.pipeline_mode<synchronous>, transform_indices = @transform_2, window_bounds = array<i64: 10, 1>}, {pipeline_mode = #tpu.pipeline_mode<synchronous>, transform_indices = @transform_3, window_bounds = array<i64: 10, 1>}, {pipeline_mode = #tpu.pipeline_mode<synchronous>, transform_indices = @transform_4, window_bounds = array<i64: 10, 1>}, {pipeline_mode = #tpu.pipeline_mode<synchronous>, transform_indices = @transform_5, window_bounds = array<i64: 10, 60, 128>}, {pipeline_mode = #tpu.pipeline_mode<synchronous>, transform_indices = @transform_6, window_bounds = array<i64: 1, 60>}, {pipeline_mode = #tpu.pipeline_mode<synchronous>, transform_indices = @transform_7, window_bounds = array<i64: 1, 60>}, {pipeline_mode = #tpu.pipeline_mode<synchronous>, transform_indices = @transform_8, window_bounds = array<i64: 1, 60>}, {pipeline_mode = #tpu.pipeline_mode<synchronous>, transform_indices = @transform_9, window_bounds = array<i64: 60, 10>}, {pipeline_mode = #tpu.pipeline_mode<synchronous>, transform_indices = @transform_10, window_bounds = array<i64: 1, 10>}, {pipeline_mode = #tpu.pipeline_mode<synchronous>, transform_indices = @transform_11, window_bounds = array<i64: 2, 10>}]} {
    %c0 = arith.constant 0 : index
    %c0_0 = arith.constant 0 : index
    %0 = vector.load %arg2[%c0, %c0_0] : memref<10x250xbf16, #tpu.memory_space<vmem>>, vector<10x250xbf16>
    %c0_1 = arith.constant 0 : index
    %c0_2 = arith.constant 0 : index
    %1 = vector.load %arg1[%c0_1, %c0_2] : memref<250x1024xbf16, #tpu.memory_space<vmem>>, vector<250x1024xbf16>
    %cst = arith.constant dense<0.000000e+00> : vector<10x1024xf32>
    %2 = tpu.matmul %0, %1, %cst {dimension_numbers = #tpu.dot_dimension_numbers<[1], [0], [0], [1], [0, 0, 1, 1], [], []>} : vector<10x250xbf16>, vector<250x1024xbf16>, vector<10x1024xf32> -> vector<10x1024xf32>
    %c0_3 = arith.constant 0 : index
    %c0_4 = arith.constant 0 : index
    %3 = vector.load %arg3[%c0_3, %c0_4] : memref<10x1xf32, #tpu.memory_space<vmem>>, vector<10x1xf32>
    %4 = vector.broadcast %3 : vector<10x1xf32> to vector<10x1024xf32>
    %5 = arith.addf %2, %4 : vector<10x1024xf32>
    %6 = vector.extract_strided_slice %5 {offsets = [0, 0], sizes = [10, 256], strides = [1, 1]} : vector<10x1024xf32> to vector<10x256xf32>
    %7 = vector.extract_strided_slice %5 {offsets = [0, 256], sizes = [10, 256], strides = [1, 1]} : vector<10x1024xf32> to vector<10x256xf32>
    %8 = vector.extract_strided_slice %5 {offsets = [0, 512], sizes = [10, 256], strides = [1, 1]} : vector<10x1024xf32> to vector<10x256xf32>
    %9 = vector.extract_strided_slice %5 {offsets = [0, 768], sizes = [10, 256], strides = [1, 1]} : vector<10x1024xf32> to vector<10x256xf32>
    %10 = tpu.iota {dimensions = array<i32: 1>} : vector<1x256xi32>
    %c127_i32 = arith.constant 127 : i32
    %11 = vector.broadcast %c127_i32 : i32 to vector<1x256xi32>
    %12 = arith.andi %10, %11 : vector<1x256xi32>
    %c25_i32 = arith.constant 25 : i32
    %13 = vector.broadcast %c25_i32 : i32 to vector<1x256xi32>
    %14 = arith.cmpi slt, %12, %13 : vector<1x256xi32>
    %15 = arith.extui %14 : vector<1x256xi1> to vector<1x256xi32>
    %16 = arith.sitofp %15 : vector<1x256xi32> to vector<1x256xf32>
    %17 = arith.addf %6, %7 : vector<10x256xf32>
    %18 = arith.addf %17, %8 : vector<10x256xf32>
    %19 = arith.addf %18, %9 : vector<10x256xf32>
    %20 = vector.broadcast %16 : vector<1x256xf32> to vector<10x256xf32>
    %21 = arith.mulf %19, %20 : vector<10x256xf32>
    %cst_5 = arith.constant dense<0.000000e+00> : vector<10xf32>
    %22 = vector.multi_reduction <add>, %21, %cst_5 [1] : vector<10x256xf32> to vector<10xf32>
    %23 = vector.shape_cast %22 : vector<10xf32> to vector<10x1xf32>
    %cst_6 = arith.constant 2.000000e+02 : f32
    %24 = vector.broadcast %cst_6 : f32 to vector<10x1xf32>
    %25 = arith.divf %23, %24 : vector<10x1xf32>
    %26 = vector.broadcast %25 : vector<10x1xf32> to vector<10x256xf32>
    %27 = arith.subf %6, %26 : vector<10x256xf32>
    %28 = arith.mulf %27, %27 : vector<10x256xf32>
    %29 = vector.broadcast %16 : vector<1x256xf32> to vector<10x256xf32>
    %30 = arith.mulf %28, %29 : vector<10x256xf32>
    %cst_7 = arith.constant dense<0.000000e+00> : vector<10xf32>
    %31 = vector.multi_reduction <add>, %30, %cst_7 [1] : vector<10x256xf32> to vector<10xf32>
    %32 = vector.shape_cast %31 : vector<10xf32> to vector<10x1xf32>
    %33 = vector.broadcast %25 : vector<10x1xf32> to vector<10x256xf32>
    %34 = arith.subf %7, %33 : vector<10x256xf32>
    %35 = arith.mulf %34, %34 : vector<10x256xf32>
    %36 = vector.broadcast %16 : vector<1x256xf32> to vector<10x256xf32>
    %37 = arith.mulf %35, %36 : vector<10x256xf32>
    %cst_8 = arith.constant dense<0.000000e+00> : vector<10xf32>
    %38 = vector.multi_reduction <add>, %37, %cst_8 [1] : vector<10x256xf32> to vector<10xf32>
    %39 = vector.shape_cast %38 : vector<10xf32> to vector<10x1xf32>
    %40 = arith.addf %32, %39 : vector<10x1xf32>
    %41 = vector.broadcast %25 : vector<10x1xf32> to vector<10x256xf32>
    %42 = arith.subf %8, %41 : vector<10x256xf32>
    %43 = arith.mulf %42, %42 : vector<10x256xf32>
    %44 = vector.broadcast %16 : vector<1x256xf32> to vector<10x256xf32>
    %45 = arith.mulf %43, %44 : vector<10x256xf32>
    %cst_9 = arith.constant dense<0.000000e+00> : vector<10xf32>
    %46 = vector.multi_reduction <add>, %45, %cst_9 [1] : vector<10x256xf32> to vector<10xf32>
    %47 = vector.shape_cast %46 : vector<10xf32> to vector<10x1xf32>
    %48 = arith.addf %40, %47 : vector<10x1xf32>
    %49 = vector.broadcast %25 : vector<10x1xf32> to vector<10x256xf32>
    %50 = arith.subf %9, %49 : vector<10x256xf32>
    %51 = arith.mulf %50, %50 : vector<10x256xf32>
    %52 = vector.broadcast %16 : vector<1x256xf32> to vector<10x256xf32>
    %53 = arith.mulf %51, %52 : vector<10x256xf32>
    %cst_10 = arith.constant dense<0.000000e+00> : vector<10xf32>
    %54 = vector.multi_reduction <add>, %53, %cst_10 [1] : vector<10x256xf32> to vector<10xf32>
    %55 = vector.shape_cast %54 : vector<10xf32> to vector<10x1xf32>
    %56 = arith.addf %48, %55 : vector<10x1xf32>
    %cst_11 = arith.constant 2.000000e+02 : f32
    %57 = vector.broadcast %cst_11 : f32 to vector<10x1xf32>
    %58 = arith.divf %56, %57 : vector<10x1xf32>
    %cst_12 = arith.constant 9.99999974E-6 : f32
    %59 = vector.broadcast %cst_12 : f32 to vector<10x1xf32>
    %60 = arith.addf %58, %59 : vector<10x1xf32>
    %61 = math.rsqrt %60 : vector<10x1xf32>
    %c0_13 = arith.constant 0 : index
    %c0_14 = arith.constant 0 : index
    %62 = vector.load %arg4[%c0_13, %c0_14] : memref<10x1xf32, #tpu.memory_space<vmem>>, vector<10x1xf32>
    %63 = arith.mulf %61, %62 : vector<10x1xf32>
    %c0_15 = arith.constant 0 : index
    %c0_16 = arith.constant 0 : index
    %64 = vector.load %arg5[%c0_15, %c0_16] : memref<10x1xf32, #tpu.memory_space<vmem>>, vector<10x1xf32>
    %65 = arith.mulf %25, %63 : vector<10x1xf32>
    %66 = arith.subf %64, %65 : vector<10x1xf32>
    %67 = vector.broadcast %63 : vector<10x1xf32> to vector<10x256xf32>
    %68 = arith.mulf %6, %67 : vector<10x256xf32>
    %69 = vector.broadcast %66 : vector<10x1xf32> to vector<10x256xf32>
    %70 = arith.addf %68, %69 : vector<10x256xf32>
    %71 = vector.broadcast %63 : vector<10x1xf32> to vector<10x256xf32>
    %72 = arith.mulf %7, %71 : vector<10x256xf32>
    %73 = vector.broadcast %66 : vector<10x1xf32> to vector<10x256xf32>
    %74 = arith.addf %72, %73 : vector<10x256xf32>
    %75 = arith.maximumf %70, %74 : vector<10x256xf32>
    %76 = vector.broadcast %63 : vector<10x1xf32> to vector<10x256xf32>
    %77 = arith.mulf %8, %76 : vector<10x256xf32>
    %78 = vector.broadcast %66 : vector<10x1xf32> to vector<10x256xf32>
    %79 = arith.addf %77, %78 : vector<10x256xf32>
    %80 = vector.broadcast %63 : vector<10x1xf32> to vector<10x256xf32>
    %81 = arith.mulf %9, %80 : vector<10x256xf32>
    %82 = vector.broadcast %66 : vector<10x1xf32> to vector<10x256xf32>
    %83 = arith.addf %81, %82 : vector<10x256xf32>
    %84 = arith.maximumf %79, %83 : vector<10x256xf32>
    %85 = arith.maximumf %75, %84 : vector<10x256xf32>
    %cst_17 = arith.constant 0.000000e+00 : f32
    %86 = vector.broadcast %cst_17 : f32 to vector<10x256xf32>
    %87 = arith.maximumf %85, %86 : vector<10x256xf32>
    %88 = vector.extract_strided_slice %87 {offsets = [0, 0], sizes = [10, 128], strides = [1, 1]} : vector<10x256xf32> to vector<10x128xf32>
    %c0_18 = arith.constant 0 : index
    %c0_19 = arith.constant 0 : index
    %c0_20 = arith.constant 0 : index
    %89 = vector.load %arg13[%c0_18, %c0_19, %c0_20] : memref<10x2x128xf32, #tpu.memory_space<vmem>>, vector<10x1x128xf32>
    %90 = vector.shape_cast %89 : vector<10x1x128xf32> to vector<10x128xf32>
    %91 = vector.shape_cast %88 : vector<10x128xf32> to vector<10x1x128xf32>
    tpu.vector_store %arg13[%c0_18, %c0_19, %c0_20], %91 {strides = array<i32>} : memref<10x2x128xf32, #tpu.memory_space<vmem>>, vector<10x1x128xf32>,
    %92 = vector.extract_strided_slice %87 {offsets = [0, 128], sizes = [10, 128], strides = [1, 1]} : vector<10x256xf32> to vector<10x128xf32>
    %c0_21 = arith.constant 0 : index
    %c1 = arith.constant 1 : index
    %c0_22 = arith.constant 0 : index
    %93 = vector.load %arg13[%c0_21, %c1, %c0_22] : memref<10x2x128xf32, #tpu.memory_space<vmem>>, vector<10x1x128xf32>
    %94 = vector.shape_cast %93 : vector<10x1x128xf32> to vector<10x128xf32>
    %95 = vector.shape_cast %92 : vector<10x128xf32> to vector<10x1x128xf32>
    tpu.vector_store %arg13[%c0_21, %c1, %c0_22], %95 {strides = array<i32>} : memref<10x2x128xf32, #tpu.memory_space<vmem>>, vector<10x1x128xf32>,
    %c0_23 = arith.constant 0 : index
    %c0_24 = arith.constant 0 : index
    %c0_25 = arith.constant 0 : index
    %96 = vector.load %arg13[%c0_23, %c0_24, %c0_25] : memref<10x2x128xf32, #tpu.memory_space<vmem>>, vector<10x2x128xf32>
    %c0_26 = arith.constant 0 : index
    %c0_27 = arith.constant 0 : index
    %c0_28 = arith.constant 0 : index
    %97 = vector.load %arg6[%c0_26, %c0_27, %c0_28] : memref<10x60x128xf32, #tpu.memory_space<vmem>>, vector<10x60x128xf32>
    %cst_29 = arith.constant dense<0.000000e+00> : vector<10x2x60xf32>
    %98 = tpu.matmul %96, %97, %cst_29 {dimension_numbers = #tpu.dot_dimension_numbers<[2], [2], [1], [1], [0, 0, 0, 1, 1, 1], [0], [0]>} : vector<10x2x128xf32>, vector<10x60x128xf32>, vector<10x2x60xf32> -> vector<10x2x60xf32>
    %cst_30 = arith.constant dense<0.000000e+00> : vector<2x60xf32>
    %99 = vector.multi_reduction <add>, %98, %cst_30 [0] : vector<10x2x60xf32> to vector<2x60xf32>
    %c0_31 = arith.constant 0 : index
    %c0_32 = arith.constant 0 : index
    %100 = vector.load %arg7[%c0_31, %c0_32] : memref<1x60xf32, #tpu.memory_space<vmem>>, vector<1x60xf32>
    %101 = vector.broadcast %100 : vector<1x60xf32> to vector<2x60xf32>
    %102 = arith.addf %99, %101 : vector<2x60xf32>
    %cst_33 = arith.constant dense<0.000000e+00> : vector<60xf32>
    %103 = vector.multi_reduction <add>, %102, %cst_33 [0] : vector<2x60xf32> to vector<60xf32>
    %104 = vector.shape_cast %103 : vector<60xf32> to vector<1x60xf32>
    %cst_34 = arith.constant 2.000000e+00 : f32
    %105 = vector.broadcast %cst_34 : f32 to vector<1x60xf32>
    %106 = arith.divf %104, %105 : vector<1x60xf32>
    %107 = vector.broadcast %106 : vector<1x60xf32> to vector<2x60xf32>
    %108 = arith.subf %102, %107 : vector<2x60xf32>
    %109 = arith.mulf %108, %108 : vector<2x60xf32>
    %cst_35 = arith.constant dense<0.000000e+00> : vector<60xf32>
    %110 = vector.multi_reduction <add>, %109, %cst_35 [0] : vector<2x60xf32> to vector<60xf32>
    %111 = vector.shape_cast %110 : vector<60xf32> to vector<1x60xf32>
    %cst_36 = arith.constant 2.000000e+00 : f32
    %112 = vector.broadcast %cst_36 : f32 to vector<1x60xf32>
    %113 = arith.divf %111, %112 : vector<1x60xf32>
    %cst_37 = arith.constant 9.99999974E-6 : f32
    %114 = vector.broadcast %cst_37 : f32 to vector<1x60xf32>
    %115 = arith.addf %113, %114 : vector<1x60xf32>
    %116 = math.rsqrt %115 : vector<1x60xf32>
    %c0_38 = arith.constant 0 : index
    %c0_39 = arith.constant 0 : index
    %117 = vector.load %arg8[%c0_38, %c0_39] : memref<1x60xf32, #tpu.memory_space<vmem>>, vector<1x60xf32>
    %118 = arith.mulf %116, %117 : vector<1x60xf32>
    %119 = vector.broadcast %118 : vector<1x60xf32> to vector<2x60xf32>
    %120 = arith.mulf %108, %119 : vector<2x60xf32>
    %c0_40 = arith.constant 0 : index
    %c0_41 = arith.constant 0 : index
    %121 = vector.load %arg9[%c0_40, %c0_41] : memref<1x60xf32, #tpu.memory_space<vmem>>, vector<1x60xf32>
    %122 = vector.broadcast %121 : vector<1x60xf32> to vector<2x60xf32>
    %123 = arith.addf %120, %122 : vector<2x60xf32>
    %cst_42 = arith.constant 0.000000e+00 : f32
    %124 = vector.broadcast %cst_42 : f32 to vector<2x60xf32>
    %125 = arith.maximumf %123, %124 : vector<2x60xf32>
    %c0_43 = arith.constant 0 : index
    %c0_44 = arith.constant 0 : index
    %126 = vector.load %arg10[%c0_43, %c0_44] : memref<60x10xf32, #tpu.memory_space<vmem>>, vector<60x10xf32>
    %cst_45 = arith.constant dense<0.000000e+00> : vector<2x10xf32>
    %127 = tpu.matmul %125, %126, %cst_45 {dimension_numbers = #tpu.dot_dimension_numbers<[1], [0], [0], [1], [0, 0, 1, 1], [], []>} : vector<2x60xf32>, vector<60x10xf32>, vector<2x10xf32> -> vector<2x10xf32>
    %c0_46 = arith.constant 0 : index
    %c0_47 = arith.constant 0 : index
    %128 = vector.load %arg11[%c0_46, %c0_47] : memref<1x10xf32, #tpu.memory_space<vmem>>, vector<1x10xf32>
    %129 = vector.broadcast %128 : vector<1x10xf32> to vector<2x10xf32>
    %130 = arith.addf %127, %129 : vector<2x10xf32>
    %cst_48 = arith.constant 0.000000e+00 : f32
    %131 = vector.broadcast %cst_48 : f32 to vector<2x10xf32>
    %132 = arith.maximumf %130, %131 : vector<2x10xf32>
    %cst_49 = arith.constant dense<0xFF800000> : vector<2xf32>
    %133 = vector.multi_reduction <maximumf>, %132, %cst_49 [1] : vector<2x10xf32> to vector<2xf32>
    %134 = vector.shape_cast %133 : vector<2xf32> to vector<2x1xf32>
    %135 = vector.broadcast %134 : vector<2x1xf32> to vector<2x10xf32>
    %136 = arith.subf %132, %135 : vector<2x10xf32>
    %137 = math.exp %136 : vector<2x10xf32>
    %cst_50 = arith.constant dense<0.000000e+00> : vector<2xf32>
    %138 = vector.multi_reduction <add>, %137, %cst_50 [1] : vector<2x10xf32> to vector<2xf32>
    %139 = vector.shape_cast %138 : vector<2xf32> to vector<2x1xf32>
    %140 = math.log %139 : vector<2x1xf32>
    %141 = vector.broadcast %140 : vector<2x1xf32> to vector<2x10xf32>
    %142 = arith.subf %136, %141 : vector<2x10xf32>
    %c0_51 = arith.constant 0 : index
    %c0_52 = arith.constant 0 : index
    %143 = vector.load %arg12[%c0_51, %c0_52] : memref<2x10xf32, #tpu.memory_space<vmem>>, vector<2x10xf32>
    tpu.vector_store %arg12[%c0_51, %c0_52], %142 {strides = array<i32>} : memref<2x10xf32, #tpu.memory_space<vmem>>, vector<2x10xf32>,
    return
  }
  func.func @transform_0(%arg0: i32) -> (i32, i32) {
    %c0_i32 = arith.constant 0 : i32
    %c0_i32_0 = arith.constant 0 : i32
    %c0_i32_1 = arith.constant 0 : i32
    return %c0_i32, %c0_i32_0 : i32, i32
  }
  func.func @transform_1(%arg0: i32) -> (i32, i32) {
    %c0_i32 = arith.constant 0 : i32
    %c0_i32_0 = arith.constant 0 : i32
    %c0_i32_1 = arith.constant 0 : i32
    return %c0_i32, %c0_i32_0 : i32, i32
  }
  func.func @transform_2(%arg0: i32) -> (i32, i32) {
    %c0_i32 = arith.constant 0 : i32
    %c0_i32_0 = arith.constant 0 : i32
    %c0_i32_1 = arith.constant 0 : i32
    return %c0_i32, %c0_i32_0 : i32, i32
  }
  func.func @transform_3(%arg0: i32) -> (i32, i32) {
    %c0_i32 = arith.constant 0 : i32
    %c0_i32_0 = arith.constant 0 : i32
    %c0_i32_1 = arith.constant 0 : i32
    return %c0_i32, %c0_i32_0 : i32, i32
  }
  func.func @transform_4(%arg0: i32) -> (i32, i32) {
    %c0_i32 = arith.constant 0 : i32
    %c0_i32_0 = arith.constant 0 : i32
    %c0_i32_1 = arith.constant 0 : i32
    return %c0_i32, %c0_i32_0 : i32, i32
  }
  func.func @transform_5(%arg0: i32) -> (i32, i32, i32) {
    %c0_i32 = arith.constant 0 : i32
    %c0_i32_0 = arith.constant 0 : i32
    %c0_i32_1 = arith.constant 0 : i32
    %c0_i32_2 = arith.constant 0 : i32
    return %c0_i32, %c0_i32_0, %c0_i32_1 : i32, i32, i32
  }
  func.func @transform_6(%arg0: i32) -> (i32, i32) {
    %c0_i32 = arith.constant 0 : i32
    %c0_i32_0 = arith.constant 0 : i32
    %c0_i32_1 = arith.constant 0 : i32
    return %c0_i32, %c0_i32_0 : i32, i32
  }
  func.func @transform_7(%arg0: i32) -> (i32, i32) {
    %c0_i32 = arith.constant 0 : i32
    %c0_i32_0 = arith.constant 0 : i32
    %c0_i32_1 = arith.constant 0 : i32
    return %c0_i32, %c0_i32_0 : i32, i32
  }
  func.func @transform_8(%arg0: i32) -> (i32, i32) {
    %c0_i32 = arith.constant 0 : i32
    %c0_i32_0 = arith.constant 0 : i32
    %c0_i32_1 = arith.constant 0 : i32
    return %c0_i32, %c0_i32_0 : i32, i32
  }
  func.func @transform_9(%arg0: i32) -> (i32, i32) {
    %c0_i32 = arith.constant 0 : i32
    %c0_i32_0 = arith.constant 0 : i32
    %c0_i32_1 = arith.constant 0 : i32
    return %c0_i32, %c0_i32_0 : i32, i32
  }
  func.func @transform_10(%arg0: i32) -> (i32, i32) {
    %c0_i32 = arith.constant 0 : i32
    %c0_i32_0 = arith.constant 0 : i32
    %c0_i32_1 = arith.constant 0 : i32
    return %c0_i32, %c0_i32_0 : i32, i32
  }
  func.func @transform_11(%arg0: i32) -> (i32, i32) {
    %c0_i32 = arith.constant 0 : i32
    %c0_i32_0 = arith.constant 0 : i32
    %c0_i32_1 = arith.constant 0 : i32
    return %c0_i32, %c0_i32_0 : i32, i32
  }
}

</mosaic_0001>

<llo_original>
// kernel: net_forward.2
$region0: #{net_forward.2}
  #allocation0 [shape = 'u32[]', space=smem, size = 0x4, offset = 0x4, fixed_abs, tag = 'smem constant byte address 0x4 - core index']
  #allocation1 [shape = 'u32[144,128]{1,0:T(1,128)}', space=vmem, size = 0x12000, scoped, tag = 'internal scratch']
  %s0 = inlined_call_operand.vmem [shape: bf16[75,2048], index: 0, kind: input, shape index: {}]
  %s1 = inlined_call_operand.vmem [shape: bf16[10,75], index: 1, kind: input, shape index: {}]
  %s2 = inlined_call_operand.vmem [shape: f32[10,1], index: 2, kind: input, shape index: {}]
  %s3 = inlined_call_operand.vmem [shape: f32[10,512], index: 3, kind: output, shape index: {}]
  %s4 = sld [smem:[#allocation0]]
  $region87: #{net_forward.2} parent=0
    _
  %s6 = ssub.s32 1, %s4
  %s7 = scalar_select 0, %s6, %s4
  $region1: #{net_forward.2} parent=0
    #allocation2 [shape = 'u8[327680]{0}', space=vmem, size = 0x50000, scoped, tag = 'input window, operand 0']
    #allocation3 [shape = 'u8[32768]{0}', space=vmem, size = 0x8000, scoped, tag = 'output window, operand 0']
    loop: start=0, step=1, limit=4
    $region2: #{net_forward.2} parent=1 // loop_pre_header
      _
    $region3: #{net_forward.2} parent=1 // loop_header
      %s9 = sphi 0, %s13
      %p10 = scmp.ge.s32.totalorder %s9, 4
      %s19 = sphi 0, %s21
      %s22 = sphi 0, %s19
      %s23 = sphi 0, %s22
      %s39 = sphi 0, %s23
      %s43 = sphi 0, %s43
      %s45 = sphi 0, %s43
      %s46 = sphi 0, %s45
      %s60 = sphi 0, %s46
      %s64 = sphi 0, %s64
      %s66 = sphi 0, %s64
      %s67 = sphi 0, %s66
      %s81 = sphi 0, %s67
      %s87 = sphi 0, %s89
      %s90 = sphi 0, %s87
      %s91 = sphi 0, %s90
      %s107 = sphi 0, %s91
    $region4: #{net_forward.2} parent=1 // loop_header_branch
      %12 = sbr.rel (%p10) target = $region8
    $region5: #{net_forward.2} parent=1 // loop_body
      %s14 = ssub.s32 %s9, 1
      %s15 = ssub.s32 %s9, 2
      %s16 = sadd.s32 %s9, 1
      %s17 = ssub.s32 %s9, %s16
      %p18 = scmp.eq.s32.totalorder %s17, 0
      %s20 = sadd.s32 %s19, 1
      %s21 = scalar_select %p18, %s19, %s20
      %p24 = pneg %p18
      %p25 = scmp.eq.s32.totalorder %s9, 1
      %p26 = por %p24, %p25
      %p27 = scmp.ne.s32.totalorder %s19, %s22
      %p28 = scmp.eq.s32.totalorder %s9, 0
      %p29 = por %p27, %p28
      %p30 = scmp.ne.s32.totalorder %s19, %s22
      %p31 = scmp.eq.s32.totalorder %s14, 1
      %p32 = por %p30, %p31
      %p33 = scmp.ne.s32.totalorder %s22, %s23
      %p34 = scmp.eq.s32.totalorder %s14, 0
      %p35 = por %p33, %p34
      %p36 = scmp.ne.s32.totalorder %s22, %s23
      %p37 = scmp.eq.s32.totalorder %s15, 1
      %p38 = por %p36, %p37
      %p40 = scmp.ne.s32.totalorder %s23, %s39
      %p41 = scmp.eq.s32.totalorder %s15, 0
      %p42 = por %p40, %p41
      %s44 = sadd.s32 %s43, 1
      %p47 = scmp.eq.s32.totalorder %s9, 1
      %p48 = scmp.ne.s32.totalorder %s43, %s45
      %p49 = scmp.eq.s32.totalorder %s9, 0
      %p50 = por %p48, %p49
      %p51 = scmp.ne.s32.totalorder %s43, %s45
      %p52 = scmp.eq.s32.totalorder %s14, 1
      %p53 = por %p51, %p52
      %p54 = scmp.ne.s32.totalorder %s45, %s46
      %p55 = scmp.eq.s32.totalorder %s14, 0
      %p56 = por %p54, %p55
      %p57 = scmp.ne.s32.totalorder %s45, %s46
      %p58 = scmp.eq.s32.totalorder %s15, 1
      %p59 = por %p57, %p58
      %p61 = scmp.ne.s32.totalorder %s46, %s60
      %p62 = scmp.eq.s32.totalorder %s15, 0
      %p63 = por %p61, %p62
      %s65 = sadd.s32 %s64, 1
      %p68 = scmp.eq.s32.totalorder %s9, 1
      %p69 = scmp.ne.s32.totalorder %s64, %s66
      %p70 = scmp.eq.s32.totalorder %s9, 0
      %p71 = por %p69, %p70
      %p72 = scmp.ne.s32.totalorder %s64, %s66
      %p73 = scmp.eq.s32.totalorder %s14, 1
      %p74 = por %p72, %p73
      %p75 = scmp.ne.s32.totalorder %s66, %s67
      %p76 = scmp.eq.s32.totalorder %s14, 0
      %p77 = por %p75, %p76
      %p78 = scmp.ne.s32.totalorder %s66, %s67
      %p79 = scmp.eq.s32.totalorder %s15, 1
      %p80 = por %p78, %p79
      %p82 = scmp.ne.s32.totalorder %s67, %s81
      %p83 = scmp.eq.s32.totalorder %s15, 0
      %p84 = por %p82, %p83
      %s85 = ssub.s32 %s9, %s16
      %p86 = scmp.eq.s32.totalorder %s85, 0
      %s88 = sadd.s32 %s87, 1
      %s89 = scalar_select %p86, %s87, %s88
      %p92 = pneg %p86
      %p93 = scmp.eq.s32.totalorder %s9, 1
      %p94 = por %p92, %p93
      %p95 = scmp.ne.s32.totalorder %s87, %s90
      %p96 = scmp.eq.s32.totalorder %s9, 0
      %p97 = por %p95, %p96
      %p98 = scmp.ne.s32.totalorder %s87, %s90
      %p99 = scmp.eq.s32.totalorder %s14, 1
      %p100 = por %p98, %p99
      %p101 = scmp.ne.s32.totalorder %s90, %s91
      %p102 = scmp.eq.s32.totalorder %s14, 0
      %p103 = por %p101, %p102
      %p104 = scmp.ne.s32.totalorder %s90, %s91
      %p105 = scmp.eq.s32.totalorder %s15, 1
      %p106 = por %p104, %p105
      %p108 = scmp.ne.s32.totalorder %s91, %s107
      %p109 = scmp.eq.s32.totalorder %s15, 0
      %p110 = por %p108, %p109
      %p111 = scmp.le.s32.totalorder 1, %s9
      %p112 = scmp.lt.s32.totalorder %s9, 3
      %p113 = pnand %p111, %p112
      %p114 = pneg %p113
      // Predicated region
      $region9: #{net_forward.2} parent=5 // pred_check
        _
      $region10: #{net_forward.2} parent=5 // pred_check_branch
        %116 = sbr.rel (%p113) target = $region12
      $region11: #{net_forward.2} parent=5 // pred_region
        %s117 = ssub.s32 %s9, 1
        // Predicated region
        $region13: #{net_forward.2} parent=11 // pred_check
          %p118 = pneg %p56
        $region14: #{net_forward.2} parent=11 // pred_check_branch
          %120 = sbr.rel (%p118) target = $region16
        $region15: #{net_forward.2} parent=11 // pred_region
          _
        $region16: #{net_forward.2} parent=11 // pred_fallthru
          _
        // Predicated region
        $region17: #{net_forward.2} parent=11 // pred_check
          %p121 = pneg %p77
        $region18: #{net_forward.2} parent=11 // pred_check_branch
          %123 = sbr.rel (%p121) target = $region20
        $region19: #{net_forward.2} parent=11 // pred_region
          _
        $region20: #{net_forward.2} parent=11 // pred_fallthru
          _
      $region12: #{net_forward.2} parent=5 // pred_fallthru
        _
      %p124 = scmp.lt.s32.totalorder %s9, 2
      // Predicated region
      $region21: #{net_forward.2} parent=5 // pred_check
        %p125 = pneg %p124
      $region22: #{net_forward.2} parent=5 // pred_check_branch
        %127 = sbr.rel (%p125) target = $region24
      $region23: #{net_forward.2} parent=5 // pred_region
        // Predicated region
        $region25: #{net_forward.2} parent=23 // pred_check
          %p128 = pneg %p29
        $region26: #{net_forward.2} parent=23 // pred_check_branch
          %130 = sbr.rel (%p128) target = $region28
        $region27: #{net_forward.2} parent=23 // pred_region
          %s131 = sand.u32 %s19, 1
          %s132 = sand.u32 %s19, 1
          %s133 = smul.addr %s132, 320
          %s134 = scalar_lea.vmem [#allocation2], %s133
          %s135 = smul.u32 8, %s9
          %s136 = smul.addr %s135, 4
          %s137 = scalar_lea.vmem %s0, %s136
          // Predicated region
          $region29: #{net_forward.2} parent=27 // pred_check
            _
          $region30: #{net_forward.2} parent=27 // pred_check_branch
            %139 = sbr.rel (0) target = $region32
          $region31: #{net_forward.2} parent=27 // pred_region
            // Predicated region
            $region33: #{net_forward.2} parent=31 // pred_check
              _
            $region34: #{net_forward.2} parent=31 // pred_check_branch
              %141 = sbr.rel (0) target = $region36
            $region35: #{net_forward.2} parent=31 // pred_region
              loop: start=0, step=1, limit=1
              $region37: #{net_forward.2} parent=35 // loop_pre_header
                _
              $region38: #{net_forward.2} parent=35 // loop_header
                %s143 = sphi 0, %s147
                %p144 = scmp.ge.s32.totalorder %s143, 1
                %s148 = sphi %s137, %s137
                %s149 = sphi %s134, %s134
              $region39: #{net_forward.2} parent=35 // loop_header_branch
                %146 = sbr.rel (%p144) target = $region43
              $region40: #{net_forward.2} parent=35 // loop_body
                %v150 = vld [vmem:[%s148] sm:$0xff]
                %151 = vst [vmem:[%s149] sm:$0xff] %v150
                %v152 = vld [vmem:[%s148 + $0x8] sm:$0xff]
                %153 = vst [vmem:[%s149 + $0x8] sm:$0xff] %v152
                %v154 = vld [vmem:[%s148 + $0x10] sm:$0xff]
                %155 = vst [vmem:[%s149 + $0x10] sm:$0xff] %v154
                %v156 = vld [vmem:[%s148 + $0x18] sm:$0xff]
                %157 = vst [vmem:[%s149 + $0x18] sm:$0xff] %v156
                %v158 = vld [vmem:[%s148 + $0x40] sm:$0xff]
                %159 = vst [vmem:[%s149 + $0x20] sm:$0xff] %v158
                %v160 = vld [vmem:[%s148 + $0x48] sm:$0xff]
                %161 = vst [vmem:[%s149 + $0x28] sm:$0xff] %v160
                %v162 = vld [vmem:[%s148 + $0x50] sm:$0xff]
                %163 = vst [vmem:[%s149 + $0x30] sm:$0xff] %v162
                %v164 = vld [vmem:[%s148 + $0x58] sm:$0xff]
                %165 = vst [vmem:[%s149 + $0x38] sm:$0xff] %v164
                %v166 = vld [vmem:[%s148 + $0x80] sm:$0xff]
                %167 = vst [vmem:[%s149 + $0x40] sm:$0xff] %v166
                %v168 = vld [vmem:[%s148 + $0x88] sm:$0xff]
                %169 = vst [vmem:[%s149 + $0x48] sm:$0xff] %v168
                %v170 = vld [vmem:[%s148 + $0x90] sm:$0xff]
                %171 = vst [vmem:[%s149 + $0x50] sm:$0xff] %v170
                %v172 = vld [vmem:[%s148 + $0x98] sm:$0xff]
                %173 = vst [vmem:[%s149 + $0x58] sm:$0xff] %v172
                %v174 = vld [vmem:[%s148 + $0xc0] sm:$0xff]
                %175 = vst [vmem:[%s149 + $0x60] sm:$0xff] %v174
                %v176 = vld [vmem:[%s148 + $0xc8] sm:$0xff]
                %177 = vst [vmem:[%s149 + $0x68] sm:$0xff] %v176
                %v178 = vld [vmem:[%s148 + $0xd0] sm:$0xff]
                %179 = vst [vmem:[%s149 + $0x70] sm:$0xff] %v178
                %v180 = vld [vmem:[%s148 + $0xd8] sm:$0xff]
                %181 = vst [vmem:[%s149 + $0x78] sm:$0xff] %v180
                %v182 = vld [vmem:[%s148 + $0x100] sm:$0xff]
                %183 = vst [vmem:[%s149 + $0x80] sm:$0xff] %v182
                %v184 = vld [vmem:[%s148 + $0x108] sm:$0xff]
                %185 = vst [vmem:[%s149 + $0x88] sm:$0xff] %v184
                %v186 = vld [vmem:[%s148 + $0x110] sm:$0xff]
                %187 = vst [vmem:[%s149 + $0x90] sm:$0xff] %v186
                %v188 = vld [vmem:[%s148 + $0x118] sm:$0xff]
                %189 = vst [vmem:[%s149 + $0x98] sm:$0xff] %v188
                %v190 = vld [vmem:[%s148 + $0x140] sm:$0xff]
                %191 = vst [vmem:[%s149 + $0xa0] sm:$0xff] %v190
                %v192 = vld [vmem:[%s148 + $0x148] sm:$0xff]
                %193 = vst [vmem:[%s149 + $0xa8] sm:$0xff] %v192
                %v194 = vld [vmem:[%s148 + $0x150] sm:$0xff]
                %195 = vst [vmem:[%s149 + $0xb0] sm:$0xff] %v194
                %v196 = vld [vmem:[%s148 + $0x158] sm:$0xff]
                %197 = vst [vmem:[%s149 + $0xb8] sm:$0xff] %v196
                %v198 = vld [vmem:[%s148 + $0x180] sm:$0xff]
                %199 = vst [vmem:[%s149 + $0xc0] sm:$0xff] %v198
                %v200 = vld [vmem:[%s148 + $0x188] sm:$0xff]
                %201 = vst [vmem:[%s149 + $0xc8] sm:$0xff] %v200
                %v202 = vld [vmem:[%s148 + $0x190] sm:$0xff]
                %203 = vst [vmem:[%s149 + $0xd0] sm:$0xff] %v202
                %v204 = vld [vmem:[%s148 + $0x198] sm:$0xff]
                %205 = vst [vmem:[%s149 + $0xd8] sm:$0xff] %v204
                %v206 = vld [vmem:[%s148 + $0x1c0] sm:$0xff]
                %207 = vst [vmem:[%s149 + $0xe0] sm:$0xff] %v206
                %v208 = vld [vmem:[%s148 + $0x1c8] sm:$0xff]
                %209 = vst [vmem:[%s149 + $0xe8] sm:$0xff] %v208
                %v210 = vld [vmem:[%s148 + $0x1d0] sm:$0xff]
                %211 = vst [vmem:[%s149 + $0xf0] sm:$0xff] %v210
                %v212 = vld [vmem:[%s148 + $0x1d8] sm:$0xff]
                %213 = vst [vmem:[%s149 + $0xf8] sm:$0xff] %v212
                %v214 = vld [vmem:[%s148 + $0x200] sm:$0xff]
                %215 = vst [vmem:[%s149 + $0x100] sm:$0xff] %v214
                %v216 = vld [vmem:[%s148 + $0x208] sm:$0xff]
                %217 = vst [vmem:[%s149 + $0x108] sm:$0xff] %v216
                %v218 = vld [vmem:[%s148 + $0x210] sm:$0xff]
                %219 = vst [vmem:[%s149 + $0x110] sm:$0xff] %v218
                %v220 = vld [vmem:[%s148 + $0x218] sm:$0xff]
                %221 = vst [vmem:[%s149 + $0x118] sm:$0xff] %v220
                %v222 = vld [vmem:[%s148 + $0x240] sm:$0xff]
                %223 = vst [vmem:[%s149 + $0x120] sm:$0xff] %v222
                %v224 = vld [vmem:[%s148 + $0x248] sm:$0xff]
                %225 = vst [vmem:[%s149 + $0x128] sm:$0xff] %v224
                %v226 = vld [vmem:[%s148 + $0x250] sm:$0xff]
                %227 = vst [vmem:[%s149 + $0x130] sm:$0xff] %v226
                %v228 = vld [vmem:[%s148 + $0x258] sm:$0xff]
                %229 = vst [vmem:[%s149 + $0x138] sm:$0xff] %v228
              $region41: #{net_forward.2} parent=35 // loop_footer
                %s147 = sadd.s32 1, %s143
              $region42: #{net_forward.2} parent=35 // loop_footer_branch
                %142 = sbr.rel target = $region38
              $region43: #{net_forward.2} parent=35 // loop_exit
                _
            $region36: #{net_forward.2} parent=31 // pred_fallthru
              _
            // Predicated region
            $region44: #{net_forward.2} parent=31 // pred_check
              _
            $region45: #{net_forward.2} parent=31 // pred_check_branch
              %231 = sbr.rel target = $region47
            $region46: #{net_forward.2} parent=31 // pred_region
              _
            $region47: #{net_forward.2} parent=31 // pred_fallthru
              _
          $region32: #{net_forward.2} parent=27 // pred_fallthru
            _
          %232 = vnop
        $region28: #{net_forward.2} parent=23 // pred_fallthru
          _
      $region24: #{net_forward.2} parent=5 // pred_fallthru
        _
      %p233 = scmp.le.s32.totalorder 1, %s9
      %p234 = scmp.lt.s32.totalorder %s9, 3
      %p235 = pnand %p233, %p234
      %p236 = pneg %p235
      // Predicated region
      $region48: #{net_forward.2} parent=5 // pred_check
        _
      $region49: #{net_forward.2} parent=5 // pred_check_branch
        %238 = sbr.rel (%p235) target = $region51
      $region50: #{net_forward.2} parent=5 // pred_region
        %s239 = ssub.s32 %s9, 1
        %s240 = sand.u32 %s22, 1
        %s241 = sand.u32 %s22, 1
        %s242 = smul.addr %s241, 320
        %s243 = scalar_lea.vmem [#allocation2], %s242
        // Predicated region
        $region52: #{net_forward.2} parent=50 // pred_check
          %p244 = pneg %p35
        $region53: #{net_forward.2} parent=50 // pred_check_branch
          %246 = sbr.rel (%p244) target = $region55
        $region54: #{net_forward.2} parent=50 // pred_region
          _
        $region55: #{net_forward.2} parent=50 // pred_fallthru
          _
        %s247 = sand.u32 %s22, 1
        %s248 = sand.u32 %s22, 1
        %s249 = smul.addr %s248, 320
        %s250 = scalar_lea.vmem [#allocation2], %s249
        %p251 = pneg %p35
        %p252 = pneg %p32
        %p253 = pneg %p56
        %p254 = pneg %p53
        %p255 = pneg %p77
        %p256 = pneg %p74
        %p257 = pneg %p103
        %p258 = pneg %p100
        %s259 = sand.u32 %s90, 1
        %s260 = sand.u32 %s90, 1
        %s261 = smul.addr %s260, 32
        %s262 = scalar_lea.vmem [#allocation3], %s261
        %s263 = smul.u32 8, %s14
        %s264 = smul.u32 2, %s14
        %v266 = vld [vmem:[%s1] sm:$0xf]
        %v267 = vld [vmem:[%s1 + $0x4] sm:$0x1]
        %v268 = vld [vmem:[%s243] sm:$0xff]
        %v269 = vld [vmem:[%s243 + $0x8] sm:$0xff]
        %v270 = vld [vmem:[%s243 + $0x10] sm:$0xff]
        %v271 = vld [vmem:[%s243 + $0x18] sm:$0xff]
        %v272 = vld [vmem:[%s243 + $0x20] sm:$0xff]
        %v273 = vld [vmem:[%s243 + $0x28] sm:$0xff]
        %v274 = vld [vmem:[%s243 + $0x30] sm:$0xff]
        %v275 = vld [vmem:[%s243 + $0x38] sm:$0xff]
        %v276 = vld [vmem:[%s243 + $0x40] sm:$0xff]
        %v277 = vld [vmem:[%s243 + $0x48] sm:$0xff]
        %v278 = vld [vmem:[%s243 + $0x50] sm:$0xff]
        %v279 = vld [vmem:[%s243 + $0x58] sm:$0xff]
        %v280 = vld [vmem:[%s243 + $0x60] sm:$0xff]
        %v281 = vld [vmem:[%s243 + $0x68] sm:$0xff]
        %v282 = vld [vmem:[%s243 + $0x70] sm:$0xff]
        %v283 = vld [vmem:[%s243 + $0x78] sm:$0xff]
        %v284 = vld [vmem:[%s243 + $0x80] sm:$0xff]
        %v285 = vld [vmem:[%s243 + $0x88] sm:$0xff]
        %v286 = vld [vmem:[%s243 + $0x90] sm:$0xff]
        %v287 = vld [vmem:[%s243 + $0x98] sm:$0xff]
        %v288 = vld [vmem:[%s243 + $0xa0] sm:$0xff]
        %v289 = vld [vmem:[%s243 + $0xa8] sm:$0xff]
        %v290 = vld [vmem:[%s243 + $0xb0] sm:$0xff]
        %v291 = vld [vmem:[%s243 + $0xb8] sm:$0xff]
        %v292 = vld [vmem:[%s243 + $0xc0] sm:$0xff]
        %v293 = vld [vmem:[%s243 + $0xc8] sm:$0xff]
        %v294 = vld [vmem:[%s243 + $0xd0] sm:$0xff]
        %v295 = vld [vmem:[%s243 + $0xd8] sm:$0xff]
        %v296 = vld [vmem:[%s243 + $0xe0] sm:$0xff]
        %v297 = vld [vmem:[%s243 + $0xe8] sm:$0xff]
        %v298 = vld [vmem:[%s243 + $0xf0] sm:$0xff]
        %v299 = vld [vmem:[%s243 + $0xf8] sm:$0xff]
        %v300 = vld [vmem:[%s243 + $0x100] sm:$0xff]
        %v301 = vld [vmem:[%s243 + $0x108] sm:$0xff]
        %v302 = vld [vmem:[%s243 + $0x110] sm:$0xff]
        %v303 = vld [vmem:[%s243 + $0x118] sm:$0xff]
        %v304 = vld [vmem:[%s243 + $0x120] sm:$0x33]
        %v305 = vld [vmem:[%s243 + $0x128] sm:$0x33]
        %v306 = vld [vmem:[%s243 + $0x130] sm:$0x33]
        %v307 = vld [vmem:[%s243 + $0x138] sm:$0x33]
        %v310 = vunpack.c.l.b16 %v266
        %v311 = vunpack.c.l.b16 %v267
        %v312 = vpack.c.b16 %v311, %v310
        %v353 = vunpack.c.l.b16 %v268
        %v354 = vunpack.c.h.b16 %v268
        %v355 = vunpack.c.l.b16 %v269
        %v356 = vunpack.c.h.b16 %v269
        %v357 = vunpack.c.l.b16 %v270
        %v358 = vunpack.c.h.b16 %v270
        %v359 = vunpack.c.l.b16 %v271
        %v360 = vunpack.c.h.b16 %v271
        %v361 = vunpack.c.l.b16 %v272
        %v362 = vunpack.c.h.b16 %v272
        %v363 = vunpack.c.l.b16 %v273
        %v364 = vunpack.c.h.b16 %v273
        %v365 = vunpack.c.l.b16 %v274
        %v366 = vunpack.c.h.b16 %v274
        %v367 = vunpack.c.l.b16 %v275
        %v368 = vunpack.c.h.b16 %v275
        %v369 = vunpack.c.l.b16 %v276
        %v370 = vunpack.c.h.b16 %v276
        %v371 = vunpack.c.l.b16 %v277
        %v372 = vunpack.c.h.b16 %v277
        %v373 = vunpack.c.l.b16 %v278
        %v374 = vunpack.c.h.b16 %v278
        %v375 = vunpack.c.l.b16 %v279
        %v376 = vunpack.c.h.b16 %v279
        %v377 = vunpack.c.l.b16 %v280
        %v378 = vunpack.c.h.b16 %v280
        %v379 = vunpack.c.l.b16 %v281
        %v380 = vunpack.c.h.b16 %v281
        %v381 = vunpack.c.l.b16 %v282
        %v382 = vunpack.c.h.b16 %v282
        %v383 = vunpack.c.l.b16 %v283
        %v384 = vunpack.c.h.b16 %v283
        %v385 = vunpack.c.l.b16 %v284
        %v386 = vunpack.c.h.b16 %v284
        %v387 = vunpack.c.l.b16 %v285
        %v388 = vunpack.c.h.b16 %v285
        %v389 = vunpack.c.l.b16 %v286
        %v390 = vunpack.c.h.b16 %v286
        %v391 = vunpack.c.l.b16 %v287
        %v392 = vunpack.c.h.b16 %v287
        %v393 = vunpack.c.l.b16 %v288
        %v394 = vunpack.c.h.b16 %v288
        %v395 = vunpack.c.l.b16 %v289
        %v396 = vunpack.c.h.b16 %v289
        %v397 = vunpack.c.l.b16 %v290
        %v398 = vunpack.c.h.b16 %v290
        %v399 = vunpack.c.l.b16 %v291
        %v400 = vunpack.c.h.b16 %v291
        %v401 = vunpack.c.l.b16 %v292
        %v402 = vunpack.c.h.b16 %v292
        %v403 = vunpack.c.l.b16 %v293
        %v404 = vunpack.c.h.b16 %v293
        %v405 = vunpack.c.l.b16 %v294
        %v406 = vunpack.c.h.b16 %v294
        %v407 = vunpack.c.l.b16 %v295
        %v408 = vunpack.c.h.b16 %v295
        %v409 = vunpack.c.l.b16 %v296
        %v410 = vunpack.c.h.b16 %v296
        %v411 = vunpack.c.l.b16 %v297
        %v412 = vunpack.c.h.b16 %v297
        %v413 = vunpack.c.l.b16 %v298
        %v414 = vunpack.c.h.b16 %v298
        %v415 = vunpack.c.l.b16 %v299
        %v416 = vunpack.c.h.b16 %v299
        %v417 = vunpack.c.l.b16 %v300
        %v418 = vunpack.c.h.b16 %v300
        %v419 = vunpack.c.l.b16 %v301
        %v420 = vunpack.c.h.b16 %v301
        %v421 = vunpack.c.l.b16 %v302
        %v422 = vunpack.c.h.b16 %v302
        %v423 = vunpack.c.l.b16 %v303
        %v424 = vunpack.c.h.b16 %v303
        %v425 = vunpack.c.l.b16 %v304
        %v426 = vunpack.c.h.b16 %v304
        %v427 = vunpack.c.l.b16 %v305
        %v428 = vunpack.c.h.b16 %v305
        %v429 = vunpack.c.l.b16 %v306
        %v430 = vunpack.c.h.b16 %v306
        %v431 = vunpack.c.l.b16 %v307
        %v432 = vunpack.c.h.b16 %v307
        %v433 = vpack.c.b16 %v361, %v353
        %v434 = vpack.c.b16 %v362, %v354
        %v435 = vpack.c.b16 %v363, %v355
        %v436 = vpack.c.b16 %v364, %v356
        %v437 = vpack.c.b16 %v365, %v357
        %v438 = vpack.c.b16 %v366, %v358
        %v439 = vpack.c.b16 %v367, %v359
        %v440 = vpack.c.b16 %v368, %v360
        %v441 = vpack.c.b16 %v377, %v369
        %v442 = vpack.c.b16 %v378, %v370
        %v443 = vpack.c.b16 %v379, %v371
        %v444 = vpack.c.b16 %v380, %v372
        %v445 = vpack.c.b16 %v381, %v373
        %v446 = vpack.c.b16 %v382, %v374
        %v447 = vpack.c.b16 %v383, %v375
        %v448 = vpack.c.b16 %v384, %v376
        %v449 = vpack.c.b16 %v393, %v385
        %v450 = vpack.c.b16 %v394, %v386
        %v451 = vpack.c.b16 %v395, %v387
        %v452 = vpack.c.b16 %v396, %v388
        %v453 = vpack.c.b16 %v397, %v389
        %v454 = vpack.c.b16 %v398, %v390
        %v455 = vpack.c.b16 %v399, %v391
        %v456 = vpack.c.b16 %v400, %v392
        %v457 = vpack.c.b16 %v409, %v401
        %v458 = vpack.c.b16 %v410, %v402
        %v459 = vpack.c.b16 %v411, %v403
        %v460 = vpack.c.b16 %v412, %v404
        %v461 = vpack.c.b16 %v413, %v405
        %v462 = vpack.c.b16 %v414, %v406
        %v463 = vpack.c.b16 %v415, %v407
        %v464 = vpack.c.b16 %v416, %v408
        %v465 = vpack.c.b16 %v425, %v417
        %v466 = vpack.c.b16 %v426, %v418
        %v467 = vpack.c.b16 %v427, %v419
        %v468 = vpack.c.b16 %v428, %v420
        %v469 = vpack.c.b16 %v429, %v421
        %v470 = vpack.c.b16 %v430, %v422
        %v471 = vpack.c.b16 %v431, %v423
        %v472 = vpack.c.b16 %v432, %v424
        %vm505 = vcmask 613376
        %v507 = vsel %vm505, %v312, 0
        %vm509 = vcmask 1044480
        %vm510 = vcmask 1045504
        %v511 = vsel %vm509, 4294967295, 65535
        %v512 = vsel %vm510, %v511, 0
        %v514 = vand.u32 %v465, %v512
        %v517 = vand.u32 %v466, %v512
        %v520 = vand.u32 %v467, %v512
        %v523 = vand.u32 %v468, %v512
        %v526 = vand.u32 %v469, %v512
        %v529 = vand.u32 %v470, %v512
        %v532 = vand.u32 %v471, %v512
        %v535 = vand.u32 %v472, %v512
        %537 = vmatprep.subr.bf16.mxu0 %v434
        %538 = vmatpush1.bf16.msra.mxu0 %v433
        %539 = vmatprep.subr.bf16.mxu0 %v442
        %540 = vmatpush1.bf16.msra.mxu0 %v441
        %541 = vmatprep.subr.bf16.mxu0 %v450
        %542 = vmatpush1.bf16.msra.mxu0 %v449
        %543 = vmatprep.subr.bf16.mxu0 %v458
        %544 = vmatpush1.bf16.msra.mxu0 %v457
        %545 = vmatprep.subr.bf16.mxu0 %v517
        %546 = vmatpush1.bf16.msra.mxu0 %v514
        %547 = vmatprep.subr.bf16.mxu0 0
        %548 = vmatpush1.bf16.msra.mxu0 0
        %549 = vmatprep.subr.bf16.mxu0 0
        %550 = vmatpush1.bf16.msra.mxu0 0
        %551 = vmatprep.subr.bf16.mxu0 0
        %552 = vmatpush1.bf16.msra.mxu0 0
        %553 = vmatprep.subr.bf16.mxu0 0
        %554 = vmatpush1.bf16.msra.mxu0 0
        %555 = vmatprep.subr.bf16.mxu0 0
        %556 = vmatpush1.bf16.msra.mxu0 0
        %557 = vmatprep.subr.bf16.mxu0 0
        %558 = vmatpush1.bf16.msra.mxu0 0
        %559 = vmatprep.subr.bf16.mxu0 0
        %560 = vmatpush1.bf16.msra.mxu0 0
        %561 = vmatprep.subr.bf16.mxu0 0
        %562 = vmatpush1.bf16.msra.mxu0 0
        %563 = vmatprep.subr.bf16.mxu0 0
        %564 = vmatpush1.bf16.msra.mxu0 0
        %565 = vmatprep.subr.bf16.mxu0 0
        %566 = vmatpush1.bf16.msra.mxu0 0
        %567 = vmatprep.subr.bf16.mxu0 0
        %568 = vmatpush1.bf16.msra.mxu0 0
        %569 = vmatprep.mubr.bf16.mxu0 0
        %570 = vmatmul.mubr.bf16.gmra.mrb[0].mxu0 %v507
        %v571 = vpop.f32.mrb[0].mxu0
        %v572 = vadd.f32 0.0, %v571
        %v573 = vpop.f32.mrb[0].mxu0
        %v574 = vadd.f32 0.0, %v573
        %v575 = vpop.f32.mrb[0].mxu0
        %v576 = vadd.f32 0.0, %v575
        %v577 = vpop.f32.mrb[0].mxu0
        %v578 = vadd.f32 0.0, %v577
        %579 = vdwg.mxu0
        %580 = vmatprep.subr.bf16.mxu0 %v436
        %581 = vmatpush1.bf16.msra.mxu0 %v435
        %582 = vmatprep.subr.bf16.mxu0 %v444
        %583 = vmatpush1.bf16.msra.mxu0 %v443
        %584 = vmatprep.subr.bf16.mxu0 %v452
        %585 = vmatpush1.bf16.msra.mxu0 %v451
        %586 = vmatprep.subr.bf16.mxu0 %v460
        %587 = vmatpush1.bf16.msra.mxu0 %v459
        %588 = vmatprep.subr.bf16.mxu0 %v523
        %589 = vmatpush1.bf16.msra.mxu0 %v520
        %590 = vmatprep.subr.bf16.mxu0 0
        %591 = vmatpush1.bf16.msra.mxu0 0
        %592 = vmatprep.subr.bf16.mxu0 0
        %593 = vmatpush1.bf16.msra.mxu0 0
        %594 = vmatprep.subr.bf16.mxu0 0
        %595 = vmatpush1.bf16.msra.mxu0 0
        %596 = vmatprep.subr.bf16.mxu0 0
        %597 = vmatpush1.bf16.msra.mxu0 0
        %598 = vmatprep.subr.bf16.mxu0 0
        %599 = vmatpush1.bf16.msra.mxu0 0
        %600 = vmatprep.subr.bf16.mxu0 0
        %601 = vmatpush1.bf16.msra.mxu0 0
        %602 = vmatprep.subr.bf16.mxu0 0
        %603 = vmatpush1.bf16.msra.mxu0 0
        %604 = vmatprep.subr.bf16.mxu0 0
        %605 = vmatpush1.bf16.msra.mxu0 0
        %606 = vmatprep.subr.bf16.mxu0 0
        %607 = vmatpush1.bf16.msra.mxu0 0
        %608 = vmatprep.subr.bf16.mxu0 0
        %609 = vmatpush1.bf16.msra.mxu0 0
        %610 = vmatprep.subr.bf16.mxu0 0
        %611 = vmatpush1.bf16.msra.mxu0 0
        %612 = vmatprep.mubr.bf16.mxu0 0
        %613 = vmatmul.mubr.bf16.gmra.mrb[0].mxu0 %v507
        %v614 = vpop.f32.mrb[0].mxu0
        %v615 = vadd.f32 0.0, %v614
        %v616 = vpop.f32.mrb[0].mxu0
        %v617 = vadd.f32 0.0, %v616
        %v618 = vpop.f32.mrb[0].mxu0
        %v619 = vadd.f32 0.0, %v618
        %v620 = vpop.f32.mrb[0].mxu0
        %v621 = vadd.f32 0.0, %v620
        %622 = vdwg.mxu0
        %623 = vmatprep.subr.bf16.mxu0 %v438
        %624 = vmatpush1.bf16.msra.mxu0 %v437
        %625 = vmatprep.subr.bf16.mxu0 %v446
        %626 = vmatpush1.bf16.msra.mxu0 %v445
        %627 = vmatprep.subr.bf16.mxu0 %v454
        %628 = vmatpush1.bf16.msra.mxu0 %v453
        %629 = vmatprep.subr.bf16.mxu0 %v462
        %630 = vmatpush1.bf16.msra.mxu0 %v461
        %631 = vmatprep.subr.bf16.mxu0 %v529
        %632 = vmatpush1.bf16.msra.mxu0 %v526
        %633 = vmatprep.subr.bf16.mxu0 0
        %634 = vmatpush1.bf16.msra.mxu0 0
        %635 = vmatprep.subr.bf16.mxu0 0
        %636 = vmatpush1.bf16.msra.mxu0 0
        %637 = vmatprep.subr.bf16.mxu0 0
        %638 = vmatpush1.bf16.msra.mxu0 0
        %639 = vmatprep.subr.bf16.mxu0 0
        %640 = vmatpush1.bf16.msra.mxu0 0
        %641 = vmatprep.subr.bf16.mxu0 0
        %642 = vmatpush1.bf16.msra.mxu0 0
        %643 = vmatprep.subr.bf16.mxu0 0
        %644 = vmatpush1.bf16.msra.mxu0 0
        %645 = vmatprep.subr.bf16.mxu0 0
        %646 = vmatpush1.bf16.msra.mxu0 0
        %647 = vmatprep.subr.bf16.mxu0 0
        %648 = vmatpush1.bf16.msra.mxu0 0
        %649 = vmatprep.subr.bf16.mxu0 0
        %650 = vmatpush1.bf16.msra.mxu0 0
        %651 = vmatprep.subr.bf16.mxu0 0
        %652 = vmatpush1.bf16.msra.mxu0 0
        %653 = vmatprep.subr.bf16.mxu0 0
        %654 = vmatpush1.bf16.msra.mxu0 0
        %655 = vmatprep.mubr.bf16.mxu0 0
        %656 = vmatmul.mubr.bf16.gmra.mrb[0].mxu0 %v507
        %v657 = vpop.f32.mrb[0].mxu0
        %v658 = vadd.f32 0.0, %v657
        %v659 = vpop.f32.mrb[0].mxu0
        %v660 = vadd.f32 0.0, %v659
        %v661 = vpop.f32.mrb[0].mxu0
        %v662 = vadd.f32 0.0, %v661
        %v663 = vpop.f32.mrb[0].mxu0
        %v664 = vadd.f32 0.0, %v663
        %665 = vdwg.mxu0
        %666 = vmatprep.subr.bf16.mxu0 %v440
        %667 = vmatpush1.bf16.msra.mxu0 %v439
        %668 = vmatprep.subr.bf16.mxu0 %v448
        %669 = vmatpush1.bf16.msra.mxu0 %v447
        %670 = vmatprep.subr.bf16.mxu0 %v456
        %671 = vmatpush1.bf16.msra.mxu0 %v455
        %672 = vmatprep.subr.bf16.mxu0 %v464
        %673 = vmatpush1.bf16.msra.mxu0 %v463
        %674 = vmatprep.subr.bf16.mxu0 %v535
        %675 = vmatpush1.bf16.msra.mxu0 %v532
        %676 = vmatprep.subr.bf16.mxu0 0
        %677 = vmatpush1.bf16.msra.mxu0 0
        %678 = vmatprep.subr.bf16.mxu0 0
        %679 = vmatpush1.bf16.msra.mxu0 0
        %680 = vmatprep.subr.bf16.mxu0 0
        %681 = vmatpush1.bf16.msra.mxu0 0
        %682 = vmatprep.subr.bf16.mxu0 0
        %683 = vmatpush1.bf16.msra.mxu0 0
        %684 = vmatprep.subr.bf16.mxu0 0
        %685 = vmatpush1.bf16.msra.mxu0 0
        %686 = vmatprep.subr.bf16.mxu0 0
        %687 = vmatpush1.bf16.msra.mxu0 0
        %688 = vmatprep.subr.bf16.mxu0 0
        %689 = vmatpush1.bf16.msra.mxu0 0
        %690 = vmatprep.subr.bf16.mxu0 0
        %691 = vmatpush1.bf16.msra.mxu0 0
        %692 = vmatprep.subr.bf16.mxu0 0
        %693 = vmatpush1.bf16.msra.mxu0 0
        %694 = vmatprep.subr.bf16.mxu0 0
        %695 = vmatpush1.bf16.msra.mxu0 0
        %696 = vmatprep.subr.bf16.mxu0 0
        %697 = vmatpush1.bf16.msra.mxu0 0
        %698 = vmatprep.mubr.bf16.mxu0 0
        %699 = vmatmul.mubr.bf16.gmra.mrb[0].mxu0 %v507
        %v700 = vpop.f32.mrb[0].mxu0
        %v701 = vadd.f32 0.0, %v700
        %v702 = vpop.f32.mrb[0].mxu0
        %v703 = vadd.f32 0.0, %v702
        %v704 = vpop.f32.mrb[0].mxu0
        %v705 = vadd.f32 0.0, %v704
        %v706 = vpop.f32.mrb[0].mxu0
        %v707 = vadd.f32 0.0, %v706
        %708 = vdwg.mxu0
        %v709 = vmax.f32 %v572, %v615
        %v710 = vmax.f32 %v574, %v617
        %v711 = vmax.f32 %v576, %v619
        %v712 = vmax.f32 %v578, %v621
        %v713 = vmax.f32 %v658, %v701
        %v714 = vmax.f32 %v660, %v703
        %v715 = vmax.f32 %v662, %v705
        %v716 = vmax.f32 %v664, %v707
        %v717 = vmax.f32 %v709, %v713
        %v718 = vmax.f32 %v710, %v714
        %v719 = vmax.f32 %v711, %v715
        %v720 = vmax.f32 %v712, %v716
        %v721 = vld [vmem:[%s2] sm:$0xff]
        %v722 = vld [vmem:[%s2 + $0x8] sm:$0x3]
        %724 = vset.pattern.permute.xlu0 0
        %725 = vperm.xlu0 %724, %v721
        %v726 = vpop.permute.xlu0 %725
        %729 = vset.pattern.permute.xlu0 0
        %730 = vperm.xlu0 %729, %v722
        %v731 = vpop.permute.xlu0 %730
        %v733 = vadd.f32 %v717, %v726
        %v734 = vadd.f32 %v718, %v726
        %v735 = vadd.f32 %v719, %v731
        %v736 = vadd.f32 %v720, %v731
        %v737 = vmax.f32 %v733, 0.0
        %v738 = vmax.f32 %v734, 0.0
        %v739 = vmax.f32 %v735, 0.0
        %v740 = vmax.f32 %v736, 0.0
        %741 = vst [vmem:[%s262] sm:$0xff] %v737
        %742 = vst [vmem:[%s262 + $0x8] sm:$0xff] %v738
        %743 = vst [vmem:[%s262 + $0x10] sm:$0x3] %v739
        %744 = vst [vmem:[%s262 + $0x18] sm:$0x3] %v740
        %s745 = sand.u32 %s90, 1
        %s746 = sand.u32 %s90, 1
        %s747 = smul.addr %s746, 32
        %s748 = scalar_lea.vmem [#allocation3], %s747
        // Predicated region
        $region56: #{net_forward.2} parent=50 // pred_check
          %p749 = pneg %p100
        $region57: #{net_forward.2} parent=50 // pred_check_branch
          %751 = sbr.rel (%p749) target = $region59
        $region58: #{net_forward.2} parent=50 // pred_region
          %s752 = smul.u32 2, %s14
          %s753 = smul.addr %s752, 8
          %s754 = scalar_lea.vmem %s3, %s753
          // Predicated region
          $region60: #{net_forward.2} parent=58 // pred_check
            _
          $region61: #{net_forward.2} parent=58 // pred_check_branch
            %756 = sbr.rel (0) target = $region63
          $region62: #{net_forward.2} parent=58 // pred_region
            // Predicated region
            $region64: #{net_forward.2} parent=62 // pred_check
              _
            $region65: #{net_forward.2} parent=62 // pred_check_branch
              %758 = sbr.rel (0) target = $region67
            $region66: #{net_forward.2} parent=62 // pred_region
              loop: start=0, step=1, limit=1
              $region68: #{net_forward.2} parent=66 // loop_pre_header
                _
              $region69: #{net_forward.2} parent=66 // loop_header
                %s760 = sphi 0, %s764
                %p761 = scmp.ge.s32.totalorder %s760, 1
                %s765 = sphi %s748, %s748
                %s766 = sphi %s754, %s754
              $region70: #{net_forward.2} parent=66 // loop_header_branch
                %763 = sbr.rel (%p761) target = $region74
              $region71: #{net_forward.2} parent=66 // loop_body
                %v767 = vld [vmem:[%s765] sm:$0xff]
                %768 = vst [vmem:[%s766] sm:$0xff] %v767
                %v769 = vld [vmem:[%s765 + $0x8] sm:$0xff]
                %770 = vst [vmem:[%s766 + $0x8] sm:$0xff] %v769
                %v771 = vld [vmem:[%s765 + $0x10] sm:$0xff]
                %772 = vst [vmem:[%s766 + $0x20] sm:$0xff] %v771
                %v773 = vld [vmem:[%s765 + $0x18] sm:$0xff]
                %774 = vst [vmem:[%s766 + $0x28] sm:$0xff] %v773
              $region72: #{net_forward.2} parent=66 // loop_footer
                %s764 = sadd.s32 1, %s760
              $region73: #{net_forward.2} parent=66 // loop_footer_branch
                %759 = sbr.rel target = $region69
              $region74: #{net_forward.2} parent=66 // loop_exit
                _
            $region67: #{net_forward.2} parent=62 // pred_fallthru
              _
            // Predicated region
            $region75: #{net_forward.2} parent=62 // pred_check
              _
            $region76: #{net_forward.2} parent=62 // pred_check_branch
              %776 = sbr.rel target = $region78
            $region77: #{net_forward.2} parent=62 // pred_region
              _
            $region78: #{net_forward.2} parent=62 // pred_fallthru
              _
          $region63: #{net_forward.2} parent=58 // pred_fallthru
            _
          %777 = vnop
        $region59: #{net_forward.2} parent=50 // pred_fallthru
          _
      $region51: #{net_forward.2} parent=5 // pred_fallthru
        _
      %p778 = scmp.le.s32.totalorder 2, %s9
      // Predicated region
      $region79: #{net_forward.2} parent=5 // pred_check
        %p779 = pneg %p778
      $region80: #{net_forward.2} parent=5 // pred_check_branch
        %781 = sbr.rel (%p779) target = $region82
      $region81: #{net_forward.2} parent=5 // pred_region
        %s782 = ssub.s32 %s9, 2
        // Predicated region
        $region83: #{net_forward.2} parent=81 // pred_check
          %p783 = pneg %p106
        $region84: #{net_forward.2} parent=81 // pred_check_branch
          %785 = sbr.rel (%p783) target = $region86
        $region85: #{net_forward.2} parent=81 // pred_region
          %s786 = sand.u32 %s91, 1
          %s787 = sand.u32 %s91, 1
          %s788 = smul.addr %s787, 32
          %s789 = scalar_lea.vmem [#allocation3], %s788
        $region86: #{net_forward.2} parent=81 // pred_fallthru
          _
      $region82: #{net_forward.2} parent=5 // pred_fallthru
        _
    $region6: #{net_forward.2} parent=1 // loop_footer
      %s13 = sadd.s32 1, %s9
    $region7: #{net_forward.2} parent=1 // loop_footer_branch
      %8 = sbr.rel target = $region3
    $region8: #{net_forward.2} parent=1 // loop_exit
      _

// kernel: net_forward.3
$region0: #{net_forward.3}
  #allocation0 [shape = 'u32[]', space=smem, size = 0x4, offset = 0x4, fixed_abs, tag = 'smem constant byte address 0x4 - core index']
  #allocation1 [shape = 'u32[144,128]{1,0:T(1,128)}', space=vmem, size = 0x12000, scoped, tag = 'internal scratch']
  #allocation2 [shape = 'f32[10,2,128]{2,1,0:T(2,128)}', space=vmem, size = 0x2800, scoped, tag = 'scratch operand']
  %s0 = inlined_call_operand.vmem [shape: bf16[250,1024], index: 0, kind: input, shape index: {}]
  %s1 = inlined_call_operand.vmem [shape: bf16[10,250], index: 1, kind: input, shape index: {}]
  %s2 = inlined_call_operand.vmem [shape: f32[10,1], index: 2, kind: input, shape index: {}]
  %s3 = inlined_call_operand.vmem [shape: f32[10,1], index: 3, kind: input, shape index: {}]
  %s4 = inlined_call_operand.vmem [shape: f32[10,1], index: 4, kind: input, shape index: {}]
  %s5 = inlined_call_operand.vmem [shape: f32[10,60,128], index: 5, kind: input, shape index: {}]
  %s6 = inlined_call_operand.vmem [shape: f32[1,60], index: 6, kind: input, shape index: {}]
  %s7 = inlined_call_operand.vmem [shape: f32[1,60], index: 7, kind: input, shape index: {}]
  %s8 = inlined_call_operand.vmem [shape: f32[1,60], index: 8, kind: input, shape index: {}]
  %s9 = inlined_call_operand.vmem [shape: f32[60,10], index: 9, kind: input, shape index: {}]
  %s10 = inlined_call_operand.vmem [shape: f32[1,10], index: 10, kind: input, shape index: {}]
  %s11 = inlined_call_operand.hbm [shape: f32[2,10], index: 11, kind: output, shape index: {}]
  %s12 = sld [smem:[#allocation0]]
  $region54: #{net_forward.3} parent=0
    _
  %s14 = ssub.s32 1, %s12
  %s15 = scalar_select 0, %s14, %s12
  $region1: #{net_forward.3} parent=0
    #allocation3 [shape = 'u8[1024]{0}', space=vmem, size = 0x400, scoped, tag = 'output window, operand 0, single buffered']
    #allocation4 [shape = 's32[1]{0}', space=sflag, size = 0x4, scoped, tag = 'scoped memory for net_forward.3']
    %16 = vsyncpa [#allocation4], 0
    // Predicated region
    $region2: #{net_forward.3} parent=1 // pred_check
      _
    $region3: #{net_forward.3} parent=1 // pred_check_branch
      %18 = sbr.rel (0) target = $region5
    $region4: #{net_forward.3} parent=1 // pred_region
      _
    $region5: #{net_forward.3} parent=1 // pred_fallthru
      _
    // Predicated region
    $region6: #{net_forward.3} parent=1 // pred_check
      _
    $region7: #{net_forward.3} parent=1 // pred_check_branch
      %20 = sbr.rel (0) target = $region9
    $region8: #{net_forward.3} parent=1 // pred_region
      _
    $region9: #{net_forward.3} parent=1 // pred_fallthru
      _
    // Predicated region
    $region10: #{net_forward.3} parent=1 // pred_check
      _
    $region11: #{net_forward.3} parent=1 // pred_check_branch
      %22 = sbr.rel (0) target = $region13
    $region12: #{net_forward.3} parent=1 // pred_region
      _
    $region13: #{net_forward.3} parent=1 // pred_fallthru
      _
    // Predicated region
    $region14: #{net_forward.3} parent=1 // pred_check
      _
    $region15: #{net_forward.3} parent=1 // pred_check_branch
      %24 = sbr.rel (0) target = $region17
    $region16: #{net_forward.3} parent=1 // pred_region
      _
    $region17: #{net_forward.3} parent=1 // pred_fallthru
      _
    // Predicated region
    $region18: #{net_forward.3} parent=1 // pred_check
      _
    $region19: #{net_forward.3} parent=1 // pred_check_branch
      %26 = sbr.rel (0) target = $region21
    $region20: #{net_forward.3} parent=1 // pred_region
      _
    $region21: #{net_forward.3} parent=1 // pred_fallthru
      _
    // Predicated region
    $region22: #{net_forward.3} parent=1 // pred_check
      _
    $region23: #{net_forward.3} parent=1 // pred_check_branch
      %28 = sbr.rel (0) target = $region25
    $region24: #{net_forward.3} parent=1 // pred_region
      _
    $region25: #{net_forward.3} parent=1 // pred_fallthru
      _
    // Predicated region
    $region26: #{net_forward.3} parent=1 // pred_check
      _
    $region27: #{net_forward.3} parent=1 // pred_check_branch
      %30 = sbr.rel (0) target = $region29
    $region28: #{net_forward.3} parent=1 // pred_region
      _
    $region29: #{net_forward.3} parent=1 // pred_fallthru
      _
    // Predicated region
    $region30: #{net_forward.3} parent=1 // pred_check
      _
    $region31: #{net_forward.3} parent=1 // pred_check_branch
      %32 = sbr.rel (0) target = $region33
    $region32: #{net_forward.3} parent=1 // pred_region
      _
    $region33: #{net_forward.3} parent=1 // pred_fallthru
      _
    // Predicated region
    $region34: #{net_forward.3} parent=1 // pred_check
      _
    $region35: #{net_forward.3} parent=1 // pred_check_branch
      %34 = sbr.rel (0) target = $region37
    $region36: #{net_forward.3} parent=1 // pred_region
      _
    $region37: #{net_forward.3} parent=1 // pred_fallthru
      _
    // Predicated region
    $region38: #{net_forward.3} parent=1 // pred_check
      _
    $region39: #{net_forward.3} parent=1 // pred_check_branch
      %36 = sbr.rel (0) target = $region41
    $region40: #{net_forward.3} parent=1 // pred_region
      _
    $region41: #{net_forward.3} parent=1 // pred_fallthru
      _
    // Predicated region
    $region42: #{net_forward.3} parent=1 // pred_check
      _
    $region43: #{net_forward.3} parent=1 // pred_check_branch
      %38 = sbr.rel (0) target = $region45
    $region44: #{net_forward.3} parent=1 // pred_region
      _
    $region45: #{net_forward.3} parent=1 // pred_fallthru
      _
    %v39 = vld [vmem:[%s1] sm:$0xff]
    %v40 = vld [vmem:[%s1 + $0x8] sm:$0x11]
    %v41 = vld [vmem:[%s0] sm:$0xff]
    %v42 = vld [vmem:[%s0 + $0x8] sm:$0xff]
    %v43 = vld [vmem:[%s0 + $0x10] sm:$0xff]
    %v44 = vld [vmem:[%s0 + $0x18] sm:$0xff]
    %v45 = vld [vmem:[%s0 + $0x20] sm:$0xff]
    %v46 = vld [vmem:[%s0 + $0x28] sm:$0xff]
    %v47 = vld [vmem:[%s0 + $0x30] sm:$0xff]
    %v48 = vld [vmem:[%s0 + $0x38] sm:$0xff]
    %v49 = vld [vmem:[%s0 + $0x40] sm:$0xff]
    %v50 = vld [vmem:[%s0 + $0x48] sm:$0xff]
    %v51 = vld [vmem:[%s0 + $0x50] sm:$0xff]
    %v52 = vld [vmem:[%s0 + $0x58] sm:$0xff]
    %v53 = vld [vmem:[%s0 + $0x60] sm:$0xff]
    %v54 = vld [vmem:[%s0 + $0x68] sm:$0xff]
    %v55 = vld [vmem:[%s0 + $0x70] sm:$0xff]
    %v56 = vld [vmem:[%s0 + $0x78] sm:$0xff]
    %v57 = vld [vmem:[%s0 + $0x80] sm:$0xff]
    %v58 = vld [vmem:[%s0 + $0x88] sm:$0xff]
    %v59 = vld [vmem:[%s0 + $0x90] sm:$0xff]
    %v60 = vld [vmem:[%s0 + $0x98] sm:$0xff]
    %v61 = vld [vmem:[%s0 + $0xa0] sm:$0xff]
    %v62 = vld [vmem:[%s0 + $0xa8] sm:$0xff]
    %v63 = vld [vmem:[%s0 + $0xb0] sm:$0xff]
    %v64 = vld [vmem:[%s0 + $0xb8] sm:$0xff]
    %v65 = vld [vmem:[%s0 + $0xc0] sm:$0xff]
    %v66 = vld [vmem:[%s0 + $0xc8] sm:$0xff]
    %v67 = vld [vmem:[%s0 + $0xd0] sm:$0xff]
    %v68 = vld [vmem:[%s0 + $0xd8] sm:$0xff]
    %v69 = vld [vmem:[%s0 + $0xe0] sm:$0xff]
    %v70 = vld [vmem:[%s0 + $0xe8] sm:$0xff]
    %v71 = vld [vmem:[%s0 + $0xf0] sm:$0xff]
    %v72 = vld [vmem:[%s0 + $0xf8] sm:$0xff]
    %v73 = vld [vmem:[%s0 + $0x100] sm:$0xff]
    %v74 = vld [vmem:[%s0 + $0x108] sm:$0xff]
    %v75 = vld [vmem:[%s0 + $0x110] sm:$0xff]
    %v76 = vld [vmem:[%s0 + $0x118] sm:$0xff]
    %v77 = vld [vmem:[%s0 + $0x120] sm:$0xff]
    %v78 = vld [vmem:[%s0 + $0x128] sm:$0xff]
    %v79 = vld [vmem:[%s0 + $0x130] sm:$0xff]
    %v80 = vld [vmem:[%s0 + $0x138] sm:$0xff]
    %v81 = vld [vmem:[%s0 + $0x140] sm:$0xff]
    %v82 = vld [vmem:[%s0 + $0x148] sm:$0xff]
    %v83 = vld [vmem:[%s0 + $0x150] sm:$0xff]
    %v84 = vld [vmem:[%s0 + $0x158] sm:$0xff]
    %v85 = vld [vmem:[%s0 + $0x160] sm:$0xff]
    %v86 = vld [vmem:[%s0 + $0x168] sm:$0xff]
    %v87 = vld [vmem:[%s0 + $0x170] sm:$0xff]
    %v88 = vld [vmem:[%s0 + $0x178] sm:$0xff]
    %v89 = vld [vmem:[%s0 + $0x180] sm:$0xff]
    %v90 = vld [vmem:[%s0 + $0x188] sm:$0xff]
    %v91 = vld [vmem:[%s0 + $0x190] sm:$0xff]
    %v92 = vld [vmem:[%s0 + $0x198] sm:$0xff]
    %v93 = vld [vmem:[%s0 + $0x1a0] sm:$0xff]
    %v94 = vld [vmem:[%s0 + $0x1a8] sm:$0xff]
    %v95 = vld [vmem:[%s0 + $0x1b0] sm:$0xff]
    %v96 = vld [vmem:[%s0 + $0x1b8] sm:$0xff]
    %v97 = vld [vmem:[%s0 + $0x1c0] sm:$0xff]
    %v98 = vld [vmem:[%s0 + $0x1c8] sm:$0xff]
    %v99 = vld [vmem:[%s0 + $0x1d0] sm:$0xff]
    %v100 = vld [vmem:[%s0 + $0x1d8] sm:$0xff]
    %v101 = vld [vmem:[%s0 + $0x1e0] sm:$0xff]
    %v102 = vld [vmem:[%s0 + $0x1e8] sm:$0xff]
    %v103 = vld [vmem:[%s0 + $0x1f0] sm:$0xff]
    %v104 = vld [vmem:[%s0 + $0x1f8] sm:$0xff]
    %v105 = vld [vmem:[%s0 + $0x200] sm:$0xff]
    %v106 = vld [vmem:[%s0 + $0x208] sm:$0xff]
    %v107 = vld [vmem:[%s0 + $0x210] sm:$0xff]
    %v108 = vld [vmem:[%s0 + $0x218] sm:$0xff]
    %v109 = vld [vmem:[%s0 + $0x220] sm:$0xff]
    %v110 = vld [vmem:[%s0 + $0x228] sm:$0xff]
    %v111 = vld [vmem:[%s0 + $0x230] sm:$0xff]
    %v112 = vld [vmem:[%s0 + $0x238] sm:$0xff]
    %v113 = vld [vmem:[%s0 + $0x240] sm:$0xff]
    %v114 = vld [vmem:[%s0 + $0x248] sm:$0xff]
    %v115 = vld [vmem:[%s0 + $0x250] sm:$0xff]
    %v116 = vld [vmem:[%s0 + $0x258] sm:$0xff]
    %v117 = vld [vmem:[%s0 + $0x260] sm:$0xff]
    %v118 = vld [vmem:[%s0 + $0x268] sm:$0xff]
    %v119 = vld [vmem:[%s0 + $0x270] sm:$0xff]
    %v120 = vld [vmem:[%s0 + $0x278] sm:$0xff]
    %v121 = vld [vmem:[%s0 + $0x280] sm:$0xff]
    %v122 = vld [vmem:[%s0 + $0x288] sm:$0xff]
    %v123 = vld [vmem:[%s0 + $0x290] sm:$0xff]
    %v124 = vld [vmem:[%s0 + $0x298] sm:$0xff]
    %v125 = vld [vmem:[%s0 + $0x2a0] sm:$0xff]
    %v126 = vld [vmem:[%s0 + $0x2a8] sm:$0xff]
    %v127 = vld [vmem:[%s0 + $0x2b0] sm:$0xff]
    %v128 = vld [vmem:[%s0 + $0x2b8] sm:$0xff]
    %v129 = vld [vmem:[%s0 + $0x2c0] sm:$0xff]
    %v130 = vld [vmem:[%s0 + $0x2c8] sm:$0xff]
    %v131 = vld [vmem:[%s0 + $0x2d0] sm:$0xff]
    %v132 = vld [vmem:[%s0 + $0x2d8] sm:$0xff]
    %v133 = vld [vmem:[%s0 + $0x2e0] sm:$0xff]
    %v134 = vld [vmem:[%s0 + $0x2e8] sm:$0xff]
    %v135 = vld [vmem:[%s0 + $0x2f0] sm:$0xff]
    %v136 = vld [vmem:[%s0 + $0x2f8] sm:$0xff]
    %v137 = vld [vmem:[%s0 + $0x300] sm:$0xff]
    %v138 = vld [vmem:[%s0 + $0x308] sm:$0xff]
    %v139 = vld [vmem:[%s0 + $0x310] sm:$0xff]
    %v140 = vld [vmem:[%s0 + $0x318] sm:$0xff]
    %v141 = vld [vmem:[%s0 + $0x320] sm:$0xff]
    %v142 = vld [vmem:[%s0 + $0x328] sm:$0xff]
    %v143 = vld [vmem:[%s0 + $0x330] sm:$0xff]
    %v144 = vld [vmem:[%s0 + $0x338] sm:$0xff]
    %v145 = vld [vmem:[%s0 + $0x340] sm:$0xff]
    %v146 = vld [vmem:[%s0 + $0x348] sm:$0xff]
    %v147 = vld [vmem:[%s0 + $0x350] sm:$0xff]
    %v148 = vld [vmem:[%s0 + $0x358] sm:$0xff]
    %v149 = vld [vmem:[%s0 + $0x360] sm:$0xff]
    %v150 = vld [vmem:[%s0 + $0x368] sm:$0xff]
    %v151 = vld [vmem:[%s0 + $0x370] sm:$0xff]
    %v152 = vld [vmem:[%s0 + $0x378] sm:$0xff]
    %v153 = vld [vmem:[%s0 + $0x380] sm:$0xff]
    %v154 = vld [vmem:[%s0 + $0x388] sm:$0xff]
    %v155 = vld [vmem:[%s0 + $0x390] sm:$0xff]
    %v156 = vld [vmem:[%s0 + $0x398] sm:$0xff]
    %v157 = vld [vmem:[%s0 + $0x3a0] sm:$0xff]
    %v158 = vld [vmem:[%s0 + $0x3a8] sm:$0xff]
    %v159 = vld [vmem:[%s0 + $0x3b0] sm:$0xff]
    %v160 = vld [vmem:[%s0 + $0x3b8] sm:$0xff]
    %v161 = vld [vmem:[%s0 + $0x3c0] sm:$0xff]
    %v162 = vld [vmem:[%s0 + $0x3c8] sm:$0xff]
    %v163 = vld [vmem:[%s0 + $0x3d0] sm:$0xff]
    %v164 = vld [vmem:[%s0 + $0x3d8] sm:$0xff]
    %v165 = vld [vmem:[%s0 + $0x3e0] sm:$0x11]
    %v166 = vld [vmem:[%s0 + $0x3e8] sm:$0x11]
    %v167 = vld [vmem:[%s0 + $0x3f0] sm:$0x11]
    %v168 = vld [vmem:[%s0 + $0x3f8] sm:$0x11]
    %v169 = vld [vmem:[%s2] sm:$0xff]
    %v170 = vld [vmem:[%s2 + $0x8] sm:$0x3]
    %172 = vset.pattern.permute.xlu0 0
    %173 = vperm.xlu0 %172, %v169
    %v174 = vpop.permute.xlu0 %173
    %177 = vset.pattern.permute.xlu0 0
    %178 = vperm.xlu0 %177, %v170
    %v179 = vpop.permute.xlu0 %178
    %v183 = vunpack.c.l.b16 %v39
    %v184 = vunpack.c.h.b16 %v39
    %v185 = vunpack.c.l.b16 %v40
    %v186 = vunpack.c.h.b16 %v40
    %v187 = vpack.c.b16 %v185, %v183
    %v188 = vpack.c.b16 %v186, %v184
    %v318 = vunpack.c.l.b16 %v41
    %v319 = vunpack.c.h.b16 %v41
    %v320 = vunpack.c.l.b16 %v42
    %v321 = vunpack.c.h.b16 %v42
    %v322 = vunpack.c.l.b16 %v43
    %v323 = vunpack.c.h.b16 %v43
    %v324 = vunpack.c.l.b16 %v44
    %v325 = vunpack.c.h.b16 %v44
    %v326 = vunpack.c.l.b16 %v45
    %v327 = vunpack.c.h.b16 %v45
    %v328 = vunpack.c.l.b16 %v46
    %v329 = vunpack.c.h.b16 %v46
    %v330 = vunpack.c.l.b16 %v47
    %v331 = vunpack.c.h.b16 %v47
    %v332 = vunpack.c.l.b16 %v48
    %v333 = vunpack.c.h.b16 %v48
    %v334 = vunpack.c.l.b16 %v49
    %v335 = vunpack.c.h.b16 %v49
    %v336 = vunpack.c.l.b16 %v50
    %v337 = vunpack.c.h.b16 %v50
    %v338 = vunpack.c.l.b16 %v51
    %v339 = vunpack.c.h.b16 %v51
    %v340 = vunpack.c.l.b16 %v52
    %v341 = vunpack.c.h.b16 %v52
    %v342 = vunpack.c.l.b16 %v53
    %v343 = vunpack.c.h.b16 %v53
    %v344 = vunpack.c.l.b16 %v54
    %v345 = vunpack.c.h.b16 %v54
    %v346 = vunpack.c.l.b16 %v55
    %v347 = vunpack.c.h.b16 %v55
    %v348 = vunpack.c.l.b16 %v56
    %v349 = vunpack.c.h.b16 %v56
    %v350 = vunpack.c.l.b16 %v57
    %v351 = vunpack.c.h.b16 %v57
    %v352 = vunpack.c.l.b16 %v58
    %v353 = vunpack.c.h.b16 %v58
    %v354 = vunpack.c.l.b16 %v59
    %v355 = vunpack.c.h.b16 %v59
    %v356 = vunpack.c.l.b16 %v60
    %v357 = vunpack.c.h.b16 %v60
    %v358 = vunpack.c.l.b16 %v61
    %v359 = vunpack.c.h.b16 %v61
    %v360 = vunpack.c.l.b16 %v62
    %v361 = vunpack.c.h.b16 %v62
    %v362 = vunpack.c.l.b16 %v63
    %v363 = vunpack.c.h.b16 %v63
    %v364 = vunpack.c.l.b16 %v64
    %v365 = vunpack.c.h.b16 %v64
    %v366 = vunpack.c.l.b16 %v65
    %v367 = vunpack.c.h.b16 %v65
    %v368 = vunpack.c.l.b16 %v66
    %v369 = vunpack.c.h.b16 %v66
    %v370 = vunpack.c.l.b16 %v67
    %v371 = vunpack.c.h.b16 %v67
    %v372 = vunpack.c.l.b16 %v68
    %v373 = vunpack.c.h.b16 %v68
    %v374 = vunpack.c.l.b16 %v69
    %v375 = vunpack.c.h.b16 %v69
    %v376 = vunpack.c.l.b16 %v70
    %v377 = vunpack.c.h.b16 %v70
    %v378 = vunpack.c.l.b16 %v71
    %v379 = vunpack.c.h.b16 %v71
    %v380 = vunpack.c.l.b16 %v72
    %v381 = vunpack.c.h.b16 %v72
    %v382 = vunpack.c.l.b16 %v73
    %v383 = vunpack.c.h.b16 %v73
    %v384 = vunpack.c.l.b16 %v74
    %v385 = vunpack.c.h.b16 %v74
    %v386 = vunpack.c.l.b16 %v75
    %v387 = vunpack.c.h.b16 %v75
    %v388 = vunpack.c.l.b16 %v76
    %v389 = vunpack.c.h.b16 %v76
    %v390 = vunpack.c.l.b16 %v77
    %v391 = vunpack.c.h.b16 %v77
    %v392 = vunpack.c.l.b16 %v78
    %v393 = vunpack.c.h.b16 %v78
    %v394 = vunpack.c.l.b16 %v79
    %v395 = vunpack.c.h.b16 %v79
    %v396 = vunpack.c.l.b16 %v80
    %v397 = vunpack.c.h.b16 %v80
    %v398 = vunpack.c.l.b16 %v81
    %v399 = vunpack.c.h.b16 %v81
    %v400 = vunpack.c.l.b16 %v82
    %v401 = vunpack.c.h.b16 %v82
    %v402 = vunpack.c.l.b16 %v83
    %v403 = vunpack.c.h.b16 %v83
    %v404 = vunpack.c.l.b16 %v84
    %v405 = vunpack.c.h.b16 %v84
    %v406 = vunpack.c.l.b16 %v85
    %v407 = vunpack.c.h.b16 %v85
    %v408 = vunpack.c.l.b16 %v86
    %v409 = vunpack.c.h.b16 %v86
    %v410 = vunpack.c.l.b16 %v87
    %v411 = vunpack.c.h.b16 %v87
    %v412 = vunpack.c.l.b16 %v88
    %v413 = vunpack.c.h.b16 %v88
    %v414 = vunpack.c.l.b16 %v89
    %v415 = vunpack.c.h.b16 %v89
    %v416 = vunpack.c.l.b16 %v90
    %v417 = vunpack.c.h.b16 %v90
    %v418 = vunpack.c.l.b16 %v91
    %v419 = vunpack.c.h.b16 %v91
    %v420 = vunpack.c.l.b16 %v92
    %v421 = vunpack.c.h.b16 %v92
    %v422 = vunpack.c.l.b16 %v93
    %v423 = vunpack.c.h.b16 %v93
    %v424 = vunpack.c.l.b16 %v94
    %v425 = vunpack.c.h.b16 %v94
    %v426 = vunpack.c.l.b16 %v95
    %v427 = vunpack.c.h.b16 %v95
    %v428 = vunpack.c.l.b16 %v96
    %v429 = vunpack.c.h.b16 %v96
    %v430 = vunpack.c.l.b16 %v97
    %v431 = vunpack.c.h.b16 %v97
    %v432 = vunpack.c.l.b16 %v98
    %v433 = vunpack.c.h.b16 %v98
    %v434 = vunpack.c.l.b16 %v99
    %v435 = vunpack.c.h.b16 %v99
    %v436 = vunpack.c.l.b16 %v100
    %v437 = vunpack.c.h.b16 %v100
    %v438 = vunpack.c.l.b16 %v101
    %v439 = vunpack.c.h.b16 %v101
    %v440 = vunpack.c.l.b16 %v102
    %v441 = vunpack.c.h.b16 %v102
    %v442 = vunpack.c.l.b16 %v103
    %v443 = vunpack.c.h.b16 %v103
    %v444 = vunpack.c.l.b16 %v104
    %v445 = vunpack.c.h.b16 %v104
    %v446 = vunpack.c.l.b16 %v105
    %v447 = vunpack.c.h.b16 %v105
    %v448 = vunpack.c.l.b16 %v106
    %v449 = vunpack.c.h.b16 %v106
    %v450 = vunpack.c.l.b16 %v107
    %v451 = vunpack.c.h.b16 %v107
    %v452 = vunpack.c.l.b16 %v108
    %v453 = vunpack.c.h.b16 %v108
    %v454 = vunpack.c.l.b16 %v109
    %v455 = vunpack.c.h.b16 %v109
    %v456 = vunpack.c.l.b16 %v110
    %v457 = vunpack.c.h.b16 %v110
    %v458 = vunpack.c.l.b16 %v111
    %v459 = vunpack.c.h.b16 %v111
    %v460 = vunpack.c.l.b16 %v112
    %v461 = vunpack.c.h.b16 %v112
    %v462 = vunpack.c.l.b16 %v113
    %v463 = vunpack.c.h.b16 %v113
    %v464 = vunpack.c.l.b16 %v114
    %v465 = vunpack.c.h.b16 %v114
    %v466 = vunpack.c.l.b16 %v115
    %v467 = vunpack.c.h.b16 %v115
    %v468 = vunpack.c.l.b16 %v116
    %v469 = vunpack.c.h.b16 %v116
    %v470 = vunpack.c.l.b16 %v117
    %v471 = vunpack.c.h.b16 %v117
    %v472 = vunpack.c.l.b16 %v118
    %v473 = vunpack.c.h.b16 %v118
    %v474 = vunpack.c.l.b16 %v119
    %v475 = vunpack.c.h.b16 %v119
    %v476 = vunpack.c.l.b16 %v120
    %v477 = vunpack.c.h.b16 %v120
    %v478 = vunpack.c.l.b16 %v121
    %v479 = vunpack.c.h.b16 %v121
    %v480 = vunpack.c.l.b16 %v122
    %v481 = vunpack.c.h.b16 %v122
    %v482 = vunpack.c.l.b16 %v123
    %v483 = vunpack.c.h.b16 %v123
    %v484 = vunpack.c.l.b16 %v124
    %v485 = vunpack.c.h.b16 %v124
    %v486 = vunpack.c.l.b16 %v125
    %v487 = vunpack.c.h.b16 %v125
    %v488 = vunpack.c.l.b16 %v126
    %v489 = vunpack.c.h.b16 %v126
    %v490 = vunpack.c.l.b16 %v127
    %v491 = vunpack.c.h.b16 %v127
    %v492 = vunpack.c.l.b16 %v128
    %v493 = vunpack.c.h.b16 %v128
    %v494 = vunpack.c.l.b16 %v129
    %v495 = vunpack.c.h.b16 %v129
    %v496 = vunpack.c.l.b16 %v130
    %v497 = vunpack.c.h.b16 %v130
    %v498 = vunpack.c.l.b16 %v131
    %v499 = vunpack.c.h.b16 %v131
    %v500 = vunpack.c.l.b16 %v132
    %v501 = vunpack.c.h.b16 %v132
    %v502 = vunpack.c.l.b16 %v133
    %v503 = vunpack.c.h.b16 %v133
    %v504 = vunpack.c.l.b16 %v134
    %v505 = vunpack.c.h.b16 %v134
    %v506 = vunpack.c.l.b16 %v135
    %v507 = vunpack.c.h.b16 %v135
    %v508 = vunpack.c.l.b16 %v136
    %v509 = vunpack.c.h.b16 %v136
    %v510 = vunpack.c.l.b16 %v137
    %v511 = vunpack.c.h.b16 %v137
    %v512 = vunpack.c.l.b16 %v138
    %v513 = vunpack.c.h.b16 %v138
    %v514 = vunpack.c.l.b16 %v139
    %v515 = vunpack.c.h.b16 %v139
    %v516 = vunpack.c.l.b16 %v140
    %v517 = vunpack.c.h.b16 %v140
    %v518 = vunpack.c.l.b16 %v141
    %v519 = vunpack.c.h.b16 %v141
    %v520 = vunpack.c.l.b16 %v142
    %v521 = vunpack.c.h.b16 %v142
    %v522 = vunpack.c.l.b16 %v143
    %v523 = vunpack.c.h.b16 %v143
    %v524 = vunpack.c.l.b16 %v144
    %v525 = vunpack.c.h.b16 %v144
    %v526 = vunpack.c.l.b16 %v145
    %v527 = vunpack.c.h.b16 %v145
    %v528 = vunpack.c.l.b16 %v146
    %v529 = vunpack.c.h.b16 %v146
    %v530 = vunpack.c.l.b16 %v147
    %v531 = vunpack.c.h.b16 %v147
    %v532 = vunpack.c.l.b16 %v148
    %v533 = vunpack.c.h.b16 %v148
    %v534 = vunpack.c.l.b16 %v149
    %v535 = vunpack.c.h.b16 %v149
    %v536 = vunpack.c.l.b16 %v150
    %v537 = vunpack.c.h.b16 %v150
    %v538 = vunpack.c.l.b16 %v151
    %v539 = vunpack.c.h.b16 %v151
    %v540 = vunpack.c.l.b16 %v152
    %v541 = vunpack.c.h.b16 %v152
    %v542 = vunpack.c.l.b16 %v153
    %v543 = vunpack.c.h.b16 %v153
    %v544 = vunpack.c.l.b16 %v154
    %v545 = vunpack.c.h.b16 %v154
    %v546 = vunpack.c.l.b16 %v155
    %v547 = vunpack.c.h.b16 %v155
    %v548 = vunpack.c.l.b16 %v156
    %v549 = vunpack.c.h.b16 %v156
    %v550 = vunpack.c.l.b16 %v157
    %v551 = vunpack.c.h.b16 %v157
    %v552 = vunpack.c.l.b16 %v158
    %v553 = vunpack.c.h.b16 %v158
    %v554 = vunpack.c.l.b16 %v159
    %v555 = vunpack.c.h.b16 %v159
    %v556 = vunpack.c.l.b16 %v160
    %v557 = vunpack.c.h.b16 %v160
    %v558 = vunpack.c.l.b16 %v161
    %v559 = vunpack.c.h.b16 %v161
    %v560 = vunpack.c.l.b16 %v162
    %v561 = vunpack.c.h.b16 %v162
    %v562 = vunpack.c.l.b16 %v163
    %v563 = vunpack.c.h.b16 %v163
    %v564 = vunpack.c.l.b16 %v164
    %v565 = vunpack.c.h.b16 %v164
    %v566 = vunpack.c.l.b16 %v165
    %v567 = vunpack.c.h.b16 %v165
    %v568 = vunpack.c.l.b16 %v166
    %v569 = vunpack.c.h.b16 %v166
    %v570 = vunpack.c.l.b16 %v167
    %v571 = vunpack.c.h.b16 %v167
    %v572 = vunpack.c.l.b16 %v168
    %v573 = vunpack.c.h.b16 %v168
    %v574 = vpack.c.b16 %v326, %v318
    %v575 = vpack.c.b16 %v327, %v319
    %v576 = vpack.c.b16 %v328, %v320
    %v577 = vpack.c.b16 %v329, %v321
    %v578 = vpack.c.b16 %v330, %v322
    %v579 = vpack.c.b16 %v331, %v323
    %v580 = vpack.c.b16 %v332, %v324
    %v581 = vpack.c.b16 %v333, %v325
    %v582 = vpack.c.b16 %v342, %v334
    %v583 = vpack.c.b16 %v343, %v335
    %v584 = vpack.c.b16 %v344, %v336
    %v585 = vpack.c.b16 %v345, %v337
    %v586 = vpack.c.b16 %v346, %v338
    %v587 = vpack.c.b16 %v347, %v339
    %v588 = vpack.c.b16 %v348, %v340
    %v589 = vpack.c.b16 %v349, %v341
    %v590 = vpack.c.b16 %v358, %v350
    %v591 = vpack.c.b16 %v359, %v351
    %v592 = vpack.c.b16 %v360, %v352
    %v593 = vpack.c.b16 %v361, %v353
    %v594 = vpack.c.b16 %v362, %v354
    %v595 = vpack.c.b16 %v363, %v355
    %v596 = vpack.c.b16 %v364, %v356
    %v597 = vpack.c.b16 %v365, %v357
    %v598 = vpack.c.b16 %v374, %v366
    %v599 = vpack.c.b16 %v375, %v367
    %v600 = vpack.c.b16 %v376, %v368
    %v601 = vpack.c.b16 %v377, %v369
    %v602 = vpack.c.b16 %v378, %v370
    %v603 = vpack.c.b16 %v379, %v371
    %v604 = vpack.c.b16 %v380, %v372
    %v605 = vpack.c.b16 %v381, %v373
    %v606 = vpack.c.b16 %v390, %v382
    %v607 = vpack.c.b16 %v391, %v383
    %v608 = vpack.c.b16 %v392, %v384
    %v609 = vpack.c.b16 %v393, %v385
    %v610 = vpack.c.b16 %v394, %v386
    %v611 = vpack.c.b16 %v395, %v387
    %v612 = vpack.c.b16 %v396, %v388
    %v613 = vpack.c.b16 %v397, %v389
    %v614 = vpack.c.b16 %v406, %v398
    %v615 = vpack.c.b16 %v407, %v399
    %v616 = vpack.c.b16 %v408, %v400
    %v617 = vpack.c.b16 %v409, %v401
    %v618 = vpack.c.b16 %v410, %v402
    %v619 = vpack.c.b16 %v411, %v403
    %v620 = vpack.c.b16 %v412, %v404
    %v621 = vpack.c.b16 %v413, %v405
    %v622 = vpack.c.b16 %v422, %v414
    %v623 = vpack.c.b16 %v423, %v415
    %v624 = vpack.c.b16 %v424, %v416
    %v625 = vpack.c.b16 %v425, %v417
    %v626 = vpack.c.b16 %v426, %v418
    %v627 = vpack.c.b16 %v427, %v419
    %v628 = vpack.c.b16 %v428, %v420
    %v629 = vpack.c.b16 %v429, %v421
    %v630 = vpack.c.b16 %v438, %v430
    %v631 = vpack.c.b16 %v439, %v431
    %v632 = vpack.c.b16 %v440, %v432
    %v633 = vpack.c.b16 %v441, %v433
    %v634 = vpack.c.b16 %v442, %v434
    %v635 = vpack.c.b16 %v443, %v435
    %v636 = vpack.c.b16 %v444, %v436
    %v637 = vpack.c.b16 %v445, %v437
    %v638 = vpack.c.b16 %v454, %v446
    %v639 = vpack.c.b16 %v455, %v447
    %v640 = vpack.c.b16 %v456, %v448
    %v641 = vpack.c.b16 %v457, %v449
    %v642 = vpack.c.b16 %v458, %v450
    %v643 = vpack.c.b16 %v459, %v451
    %v644 = vpack.c.b16 %v460, %v452
    %v645 = vpack.c.b16 %v461, %v453
    %v646 = vpack.c.b16 %v470, %v462
    %v647 = vpack.c.b16 %v471, %v463
    %v648 = vpack.c.b16 %v472, %v464
    %v649 = vpack.c.b16 %v473, %v465
    %v650 = vpack.c.b16 %v474, %v466
    %v651 = vpack.c.b16 %v475, %v467
    %v652 = vpack.c.b16 %v476, %v468
    %v653 = vpack.c.b16 %v477, %v469
    %v654 = vpack.c.b16 %v486, %v478
    %v655 = vpack.c.b16 %v487, %v479
    %v656 = vpack.c.b16 %v488, %v480
    %v657 = vpack.c.b16 %v489, %v481
    %v658 = vpack.c.b16 %v490, %v482
    %v659 = vpack.c.b16 %v491, %v483
    %v660 = vpack.c.b16 %v492, %v484
    %v661 = vpack.c.b16 %v493, %v485
    %v662 = vpack.c.b16 %v502, %v494
    %v663 = vpack.c.b16 %v503, %v495
    %v664 = vpack.c.b16 %v504, %v496
    %v665 = vpack.c.b16 %v505, %v497
    %v666 = vpack.c.b16 %v506, %v498
    %v667 = vpack.c.b16 %v507, %v499
    %v668 = vpack.c.b16 %v508, %v500
    %v669 = vpack.c.b16 %v509, %v501
    %v670 = vpack.c.b16 %v518, %v510
    %v671 = vpack.c.b16 %v519, %v511
    %v672 = vpack.c.b16 %v520, %v512
    %v673 = vpack.c.b16 %v521, %v513
    %v674 = vpack.c.b16 %v522, %v514
    %v675 = vpack.c.b16 %v523, %v515
    %v676 = vpack.c.b16 %v524, %v516
    %v677 = vpack.c.b16 %v525, %v517
    %v678 = vpack.c.b16 %v534, %v526
    %v679 = vpack.c.b16 %v535, %v527
    %v680 = vpack.c.b16 %v536, %v528
    %v681 = vpack.c.b16 %v537, %v529
    %v682 = vpack.c.b16 %v538, %v530
    %v683 = vpack.c.b16 %v539, %v531
    %v684 = vpack.c.b16 %v540, %v532
    %v685 = vpack.c.b16 %v541, %v533
    %v686 = vpack.c.b16 %v550, %v542
    %v687 = vpack.c.b16 %v551, %v543
    %v688 = vpack.c.b16 %v552, %v544
    %v689 = vpack.c.b16 %v553, %v545
    %v690 = vpack.c.b16 %v554, %v546
    %v691 = vpack.c.b16 %v555, %v547
    %v692 = vpack.c.b16 %v556, %v548
    %v693 = vpack.c.b16 %v557, %v549
    %v694 = vpack.c.b16 %v566, %v558
    %v695 = vpack.c.b16 %v567, %v559
    %v696 = vpack.c.b16 %v568, %v560
    %v697 = vpack.c.b16 %v569, %v561
    %v698 = vpack.c.b16 %v570, %v562
    %v699 = vpack.c.b16 %v571, %v563
    %v700 = vpack.c.b16 %v572, %v564
    %v701 = vpack.c.b16 %v573, %v565
    %vm822 = vcmask 998400
    %v824 = vsel %vm822, %v188, 0
    %vm826 = vcmask 1044480
    %v828 = vsel %vm826, %v694, 0
    %v831 = vsel %vm826, %v695, 0
    %v834 = vsel %vm826, %v696, 0
    %v837 = vsel %vm826, %v697, 0
    %v840 = vsel %vm826, %v698, 0
    %v843 = vsel %vm826, %v699, 0
    %v846 = vsel %vm826, %v700, 0
    %v849 = vsel %vm826, %v701, 0
    %851 = vmatprep.subr.bf16.mxu0 %v575
    %852 = vmatpush1.bf16.msra.mxu0 %v574
    %853 = vmatprep.subr.bf16.mxu0 %v583
    %854 = vmatpush1.bf16.msra.mxu0 %v582
    %855 = vmatprep.subr.bf16.mxu0 %v591
    %856 = vmatpush1.bf16.msra.mxu0 %v590
    %857 = vmatprep.subr.bf16.mxu0 %v599
    %858 = vmatpush1.bf16.msra.mxu0 %v598
    %859 = vmatprep.subr.bf16.mxu0 %v607
    %860 = vmatpush1.bf16.msra.mxu0 %v606
    %861 = vmatprep.subr.bf16.mxu0 %v615
    %862 = vmatpush1.bf16.msra.mxu0 %v614
    %863 = vmatprep.subr.bf16.mxu0 %v623
    %864 = vmatpush1.bf16.msra.mxu0 %v622
    %865 = vmatprep.subr.bf16.mxu0 %v631
    %866 = vmatpush1.bf16.msra.mxu0 %v630
    %867 = vmatprep.subr.bf16.mxu0 %v639
    %868 = vmatpush1.bf16.msra.mxu0 %v638
    %869 = vmatprep.subr.bf16.mxu0 %v647
    %870 = vmatpush1.bf16.msra.mxu0 %v646
    %871 = vmatprep.subr.bf16.mxu0 %v655
    %872 = vmatpush1.bf16.msra.mxu0 %v654
    %873 = vmatprep.subr.bf16.mxu0 %v663
    %874 = vmatpush1.bf16.msra.mxu0 %v662
    %875 = vmatprep.subr.bf16.mxu0 %v671
    %876 = vmatpush1.bf16.msra.mxu0 %v670
    %877 = vmatprep.subr.bf16.mxu0 %v679
    %878 = vmatpush1.bf16.msra.mxu0 %v678
    %879 = vmatprep.subr.bf16.mxu0 %v687
    %880 = vmatpush1.bf16.msra.mxu0 %v686
    %881 = vmatprep.subr.bf16.mxu0 %v831
    %882 = vmatpush1.bf16.msra.mxu0 %v828
    %883 = vmatprep.mubr.bf16.mxu0 %v824
    %884 = vmatmul.mubr.bf16.gmra.mrb[0].mxu0 %v187
    %v885 = vpop.f32.mrb[0].mxu0
    %v886 = vadd.f32 %v174, %v885
    %v887 = vpop.f32.mrb[0].mxu0
    %v888 = vadd.f32 %v174, %v887
    %v889 = vpop.f32.mrb[0].mxu0
    %v890 = vadd.f32 %v179, %v889
    %v891 = vpop.f32.mrb[0].mxu0
    %v892 = vadd.f32 %v179, %v891
    %893 = vdwg.mxu0
    %894 = vmatprep.subr.bf16.mxu0 %v577
    %895 = vmatpush1.bf16.msra.mxu0 %v576
    %896 = vmatprep.subr.bf16.mxu0 %v585
    %897 = vmatpush1.bf16.msra.mxu0 %v584
    %898 = vmatprep.subr.bf16.mxu0 %v593
    %899 = vmatpush1.bf16.msra.mxu0 %v592
    %900 = vmatprep.subr.bf16.mxu0 %v601
    %901 = vmatpush1.bf16.msra.mxu0 %v600
    %902 = vmatprep.subr.bf16.mxu0 %v609
    %903 = vmatpush1.bf16.msra.mxu0 %v608
    %904 = vmatprep.subr.bf16.mxu0 %v617
    %905 = vmatpush1.bf16.msra.mxu0 %v616
    %906 = vmatprep.subr.bf16.mxu0 %v625
    %907 = vmatpush1.bf16.msra.mxu0 %v624
    %908 = vmatprep.subr.bf16.mxu0 %v633
    %909 = vmatpush1.bf16.msra.mxu0 %v632
    %910 = vmatprep.subr.bf16.mxu0 %v641
    %911 = vmatpush1.bf16.msra.mxu0 %v640
    %912 = vmatprep.subr.bf16.mxu0 %v649
    %913 = vmatpush1.bf16.msra.mxu0 %v648
    %914 = vmatprep.subr.bf16.mxu0 %v657
    %915 = vmatpush1.bf16.msra.mxu0 %v656
    %916 = vmatprep.subr.bf16.mxu0 %v665
    %917 = vmatpush1.bf16.msra.mxu0 %v664
    %918 = vmatprep.subr.bf16.mxu0 %v673
    %919 = vmatpush1.bf16.msra.mxu0 %v672
    %920 = vmatprep.subr.bf16.mxu0 %v681
    %921 = vmatpush1.bf16.msra.mxu0 %v680
    %922 = vmatprep.subr.bf16.mxu0 %v689
    %923 = vmatpush1.bf16.msra.mxu0 %v688
    %924 = vmatprep.subr.bf16.mxu0 %v837
    %925 = vmatpush1.bf16.msra.mxu0 %v834
    %926 = vmatprep.mubr.bf16.mxu0 %v824
    %927 = vmatmul.mubr.bf16.gmra.mrb[0].mxu0 %v187
    %v928 = vpop.f32.mrb[0].mxu0
    %v929 = vadd.f32 %v174, %v928
    %v930 = vpop.f32.mrb[0].mxu0
    %v931 = vadd.f32 %v174, %v930
    %v932 = vpop.f32.mrb[0].mxu0
    %v933 = vadd.f32 %v179, %v932
    %v934 = vpop.f32.mrb[0].mxu0
    %v935 = vadd.f32 %v179, %v934
    %936 = vdwg.mxu0
    %937 = vmatprep.subr.bf16.mxu0 %v579
    %938 = vmatpush1.bf16.msra.mxu0 %v578
    %939 = vmatprep.subr.bf16.mxu0 %v587
    %940 = vmatpush1.bf16.msra.mxu0 %v586
    %941 = vmatprep.subr.bf16.mxu0 %v595
    %942 = vmatpush1.bf16.msra.mxu0 %v594
    %943 = vmatprep.subr.bf16.mxu0 %v603
    %944 = vmatpush1.bf16.msra.mxu0 %v602
    %945 = vmatprep.subr.bf16.mxu0 %v611
    %946 = vmatpush1.bf16.msra.mxu0 %v610
    %947 = vmatprep.subr.bf16.mxu0 %v619
    %948 = vmatpush1.bf16.msra.mxu0 %v618
    %949 = vmatprep.subr.bf16.mxu0 %v627
    %950 = vmatpush1.bf16.msra.mxu0 %v626
    %951 = vmatprep.subr.bf16.mxu0 %v635
    %952 = vmatpush1.bf16.msra.mxu0 %v634
    %953 = vmatprep.subr.bf16.mxu0 %v643
    %954 = vmatpush1.bf16.msra.mxu0 %v642
    %955 = vmatprep.subr.bf16.mxu0 %v651
    %956 = vmatpush1.bf16.msra.mxu0 %v650
    %957 = vmatprep.subr.bf16.mxu0 %v659
    %958 = vmatpush1.bf16.msra.mxu0 %v658
    %959 = vmatprep.subr.bf16.mxu0 %v667
    %960 = vmatpush1.bf16.msra.mxu0 %v666
    %961 = vmatprep.subr.bf16.mxu0 %v675
    %962 = vmatpush1.bf16.msra.mxu0 %v674
    %963 = vmatprep.subr.bf16.mxu0 %v683
    %964 = vmatpush1.bf16.msra.mxu0 %v682
    %965 = vmatprep.subr.bf16.mxu0 %v691
    %966 = vmatpush1.bf16.msra.mxu0 %v690
    %967 = vmatprep.subr.bf16.mxu0 %v843
    %968 = vmatpush1.bf16.msra.mxu0 %v840
    %969 = vmatprep.mubr.bf16.mxu0 %v824
    %970 = vmatmul.mubr.bf16.gmra.mrb[0].mxu0 %v187
    %v971 = vpop.f32.mrb[0].mxu0
    %v972 = vadd.f32 %v174, %v971
    %v973 = vpop.f32.mrb[0].mxu0
    %v974 = vadd.f32 %v174, %v973
    %v975 = vpop.f32.mrb[0].mxu0
    %v976 = vadd.f32 %v179, %v975
    %v977 = vpop.f32.mrb[0].mxu0
    %v978 = vadd.f32 %v179, %v977
    %979 = vdwg.mxu0
    %980 = vmatprep.subr.bf16.mxu0 %v581
    %981 = vmatpush1.bf16.msra.mxu0 %v580
    %982 = vmatprep.subr.bf16.mxu0 %v589
    %983 = vmatpush1.bf16.msra.mxu0 %v588
    %984 = vmatprep.subr.bf16.mxu0 %v597
    %985 = vmatpush1.bf16.msra.mxu0 %v596
    %986 = vmatprep.subr.bf16.mxu0 %v605
    %987 = vmatpush1.bf16.msra.mxu0 %v604
    %988 = vmatprep.subr.bf16.mxu0 %v613
    %989 = vmatpush1.bf16.msra.mxu0 %v612
    %990 = vmatprep.subr.bf16.mxu0 %v621
    %991 = vmatpush1.bf16.msra.mxu0 %v620
    %992 = vmatprep.subr.bf16.mxu0 %v629
    %993 = vmatpush1.bf16.msra.mxu0 %v628
    %994 = vmatprep.subr.bf16.mxu0 %v637
    %995 = vmatpush1.bf16.msra.mxu0 %v636
    %996 = vmatprep.subr.bf16.mxu0 %v645
    %997 = vmatpush1.bf16.msra.mxu0 %v644
    %998 = vmatprep.subr.bf16.mxu0 %v653
    %999 = vmatpush1.bf16.msra.mxu0 %v652
    %1000 = vmatprep.subr.bf16.mxu0 %v661
    %1001 = vmatpush1.bf16.msra.mxu0 %v660
    %1002 = vmatprep.subr.bf16.mxu0 %v669
    %1003 = vmatpush1.bf16.msra.mxu0 %v668
    %1004 = vmatprep.subr.bf16.mxu0 %v677
    %1005 = vmatpush1.bf16.msra.mxu0 %v676
    %1006 = vmatprep.subr.bf16.mxu0 %v685
    %1007 = vmatpush1.bf16.msra.mxu0 %v684
    %1008 = vmatprep.subr.bf16.mxu0 %v693
    %1009 = vmatpush1.bf16.msra.mxu0 %v692
    %1010 = vmatprep.subr.bf16.mxu0 %v849
    %1011 = vmatpush1.bf16.msra.mxu0 %v846
    %1012 = vmatprep.mubr.bf16.mxu0 %v824
    %1013 = vmatmul.mubr.bf16.gmra.mrb[0].mxu0 %v187
    %v1014 = vpop.f32.mrb[0].mxu0
    %v1015 = vadd.f32 %v174, %v1014
    %v1016 = vpop.f32.mrb[0].mxu0
    %v1017 = vadd.f32 %v174, %v1016
    %v1018 = vpop.f32.mrb[0].mxu0
    %v1019 = vadd.f32 %v179, %v1018
    %v1020 = vpop.f32.mrb[0].mxu0
    %v1021 = vadd.f32 %v179, %v1020
    %1022 = vdwg.mxu0
    %v1023 = vlaneseq
    %v1024 = vand.u32 %v1023, 127
    %v1025 = vadd.s32 %v1024, 128
    %v1026 = vand.u32 %v1024, 127
    %v1027 = vand.u32 %v1025, 127
    %vm1028 = vcmp.lt.s32.totalorder %v1026, 25
    %vm1029 = vcmp.lt.s32.totalorder %v1027, 25
    %v1030 = vsel %vm1028, 1, 0
    %v1031 = vsel %vm1029, 1, 0
    %v1032 = vcvt.s32.f32 %v1030
    %v1033 = vcvt.s32.f32 %v1031
    %v1034 = vadd.f32 %v886, %v929
    %v1035 = vadd.f32 %v888, %v931
    %v1036 = vadd.f32 %v890, %v933
    %v1037 = vadd.f32 %v892, %v935
    %v1038 = vadd.f32 %v1034, %v972
    %v1039 = vadd.f32 %v1035, %v974
    %v1040 = vadd.f32 %v1036, %v976
    %v1041 = vadd.f32 %v1037, %v978
    %v1042 = vadd.f32 %v1038, %v1015
    %v1043 = vadd.f32 %v1039, %v1017
    %v1044 = vadd.f32 %v1040, %v1019
    %v1045 = vadd.f32 %v1041, %v1021
    %v1046 = vmul.f32 %v1042, %v1032
    %v1047 = vmul.f32 %v1043, %v1033
    %v1048 = vmul.f32 %v1044, %v1032
    %v1049 = vmul.f32 %v1045, %v1033
    %v1050 = vadd.f32 %v1046, %v1047
    %1051 = vadd.xlane.f32.xlu0 %v1050
    %v1052 = vpop.xlane.xlu0 %1051
    %vm1053 = vcmask 1041408
    %v1054 = vsel %vm1053, %v1048, 0.0
    %v1055 = vsel %vm1053, %v1049, 0.0
    %v1056 = vadd.f32 %v1054, %v1055
    %1057 = vadd.xlane.f32.xlu0 %v1056
    %v1058 = vpop.xlane.xlu0 %1057
    %v1059 = vrcp.pop 200.0
    %v1060 = vmul.f32 %v1052, %v1059
    %v1061 = vmul.f32 %v1058, %v1059
    %v1062 = vsub.f32 %v886, %v1060
    %v1063 = vsub.f32 %v888, %v1060
    %v1064 = vsub.f32 %v890, %v1061
    %v1065 = vsub.f32 %v892, %v1061
    %v1066 = vmul.f32 %v1062, %v1062
    %v1067 = vmul.f32 %v1063, %v1063
    %v1068 = vmul.f32 %v1064, %v1064
    %v1069 = vmul.f32 %v1065, %v1065
    %v1070 = vmul.f32 %v1066, %v1032
    %v1071 = vmul.f32 %v1067, %v1033
    %v1072 = vmul.f32 %v1068, %v1032
    %v1073 = vmul.f32 %v1069, %v1033
    %v1074 = vadd.f32 %v1070, %v1071
    %1075 = vadd.xlane.f32.xlu0 %v1074
    %v1076 = vpop.xlane.xlu0 %1075
    %v1077 = vsel %vm1053, %v1072, 0.0
    %v1078 = vsel %vm1053, %v1073, 0.0
    %v1079 = vadd.f32 %v1077, %v1078
    %1080 = vadd.xlane.f32.xlu0 %v1079
    %v1081 = vpop.xlane.xlu0 %1080
    %v1082 = vsub.f32 %v929, %v1060
    %v1083 = vsub.f32 %v931, %v1060
    %v1084 = vsub.f32 %v933, %v1061
    %v1085 = vsub.f32 %v935, %v1061
    %v1086 = vmul.f32 %v1082, %v1082
    %v1087 = vmul.f32 %v1083, %v1083
    %v1088 = vmul.f32 %v1084, %v1084
    %v1089 = vmul.f32 %v1085, %v1085
    %v1090 = vmul.f32 %v1086, %v1032
    %v1091 = vmul.f32 %v1087, %v1033
    %v1092 = vmul.f32 %v1088, %v1032
    %v1093 = vmul.f32 %v1089, %v1033
    %v1094 = vadd.f32 %v1090, %v1091
    %1095 = vadd.xlane.f32.xlu0 %v1094
    %v1096 = vpop.xlane.xlu0 %1095
    %v1097 = vsel %vm1053, %v1092, 0.0
    %v1098 = vsel %vm1053, %v1093, 0.0
    %v1099 = vadd.f32 %v1097, %v1098
    %1100 = vadd.xlane.f32.xlu0 %v1099
    %v1101 = vpop.xlane.xlu0 %1100
    %v1102 = vadd.f32 %v1076, %v1096
    %v1103 = vadd.f32 %v1081, %v1101
    %v1104 = vsub.f32 %v972, %v1060
    %v1105 = vsub.f32 %v974, %v1060
    %v1106 = vsub.f32 %v976, %v1061
    %v1107 = vsub.f32 %v978, %v1061
    %v1108 = vmul.f32 %v1104, %v1104
    %v1109 = vmul.f32 %v1105, %v1105
    %v1110 = vmul.f32 %v1106, %v1106
    %v1111 = vmul.f32 %v1107, %v1107
    %v1112 = vmul.f32 %v1108, %v1032
    %v1113 = vmul.f32 %v1109, %v1033
    %v1114 = vmul.f32 %v1110, %v1032
    %v1115 = vmul.f32 %v1111, %v1033
    %v1116 = vadd.f32 %v1112, %v1113
    %1117 = vadd.xlane.f32.xlu0 %v1116
    %v1118 = vpop.xlane.xlu0 %1117
    %v1119 = vsel %vm1053, %v1114, 0.0
    %v1120 = vsel %vm1053, %v1115, 0.0
    %v1121 = vadd.f32 %v1119, %v1120
    %1122 = vadd.xlane.f32.xlu0 %v1121
    %v1123 = vpop.xlane.xlu0 %1122
    %v1124 = vadd.f32 %v1102, %v1118
    %v1125 = vadd.f32 %v1103, %v1123
    %v1126 = vsub.f32 %v1015, %v1060
    %v1127 = vsub.f32 %v1017, %v1060
    %v1128 = vsub.f32 %v1019, %v1061
    %v1129 = vsub.f32 %v1021, %v1061
    %v1130 = vmul.f32 %v1126, %v1126
    %v1131 = vmul.f32 %v1127, %v1127
    %v1132 = vmul.f32 %v1128, %v1128
    %v1133 = vmul.f32 %v1129, %v1129
    %v1134 = vmul.f32 %v1130, %v1032
    %v1135 = vmul.f32 %v1131, %v1033
    %v1136 = vmul.f32 %v1132, %v1032
    %v1137 = vmul.f32 %v1133, %v1033
    %v1138 = vadd.f32 %v1134, %v1135
    %1139 = vadd.xlane.f32.xlu0 %v1138
    %v1140 = vpop.xlane.xlu0 %1139
    %v1141 = vsel %vm1053, %v1136, 0.0
    %v1142 = vsel %vm1053, %v1137, 0.0
    %v1143 = vadd.f32 %v1141, %v1142
    %1144 = vadd.xlane.f32.xlu0 %v1143
    %v1145 = vpop.xlane.xlu0 %1144
    %v1146 = vadd.f32 %v1124, %v1140
    %v1147 = vadd.f32 %v1125, %v1145
    %v1148 = vmul.f32 %v1146, %v1059
    %v1149 = vmul.f32 %v1147, %v1059
    %v1150 = vadd.f32 %v1148, 1e-05
    %v1151 = vadd.f32 %v1149, 1e-05
    %v1152 = vrsqrt.pop %v1150
    %v1153 = vrsqrt.pop %v1151
    %v1154 = vld [vmem:[%s3] sm:$0xff]
    %v1155 = vld [vmem:[%s3 + $0x8] sm:$0x3]
    %v1156 = vmul.f32 %v1152, %v1154
    %v1157 = vmul.f32 %v1153, %v1155
    %v1158 = vld [vmem:[%s4] sm:$0xff]
    %v1159 = vld [vmem:[%s4 + $0x8] sm:$0x3]
    %v1160 = vmul.f32 %v1060, %v1156
    %v1161 = vmul.f32 %v1061, %v1157
    %v1162 = vsub.f32 %v1158, %v1160
    %v1163 = vsub.f32 %v1159, %v1161
    %1165 = vset.pattern.permute.xlu0 0
    %1166 = vperm.xlu0 %1165, %v1156
    %v1167 = vpop.permute.xlu0 %1166
    %1170 = vset.pattern.permute.xlu0 0
    %1171 = vperm.xlu0 %1170, %v1157
    %v1172 = vpop.permute.xlu0 %1171
    %v1174 = vmul.f32 %v886, %v1167
    %v1175 = vmul.f32 %v888, %v1167
    %v1176 = vmul.f32 %v890, %v1172
    %v1177 = vmul.f32 %v892, %v1172
    %1179 = vset.pattern.permute.xlu0 0
    %1180 = vperm.xlu0 %1179, %v1162
    %v1181 = vpop.permute.xlu0 %1180
    %1184 = vset.pattern.permute.xlu0 0
    %1185 = vperm.xlu0 %1184, %v1163
    %v1186 = vpop.permute.xlu0 %1185
    %v1188 = vadd.f32 %v1174, %v1181
    %v1189 = vadd.f32 %v1175, %v1181
    %v1190 = vadd.f32 %v1176, %v1186
    %v1191 = vadd.f32 %v1177, %v1186
    %v1192 = vmul.f32 %v929, %v1167
    %v1193 = vmul.f32 %v931, %v1167
    %v1194 = vmul.f32 %v933, %v1172
    %v1195 = vmul.f32 %v935, %v1172
    %v1196 = vadd.f32 %v1192, %v1181
    %v1197 = vadd.f32 %v1193, %v1181
    %v1198 = vadd.f32 %v1194, %v1186
    %v1199 = vadd.f32 %v1195, %v1186
    %v1200 = vmax.f32 %v1188, %v1196
    %v1201 = vmax.f32 %v1189, %v1197
    %v1202 = vmax.f32 %v1190, %v1198
    %v1203 = vmax.f32 %v1191, %v1199
    %v1204 = vmul.f32 %v972, %v1167
    %v1205 = vmul.f32 %v974, %v1167
    %v1206 = vmul.f32 %v976, %v1172
    %v1207 = vmul.f32 %v978, %v1172
    %v1208 = vadd.f32 %v1204, %v1181
    %v1209 = vadd.f32 %v1205, %v1181
    %v1210 = vadd.f32 %v1206, %v1186
    %v1211 = vadd.f32 %v1207, %v1186
    %v1212 = vmul.f32 %v1015, %v1167
    %v1213 = vmul.f32 %v1017, %v1167
    %v1214 = vmul.f32 %v1019, %v1172
    %v1215 = vmul.f32 %v1021, %v1172
    %v1216 = vadd.f32 %v1212, %v1181
    %v1217 = vadd.f32 %v1213, %v1181
    %v1218 = vadd.f32 %v1214, %v1186
    %v1219 = vadd.f32 %v1215, %v1186
    %v1220 = vmax.f32 %v1208, %v1216
    %v1221 = vmax.f32 %v1209, %v1217
    %v1222 = vmax.f32 %v1210, %v1218
    %v1223 = vmax.f32 %v1211, %v1219
    %v1224 = vmax.f32 %v1200, %v1220
    %v1225 = vmax.f32 %v1201, %v1221
    %v1226 = vmax.f32 %v1202, %v1222
    %v1227 = vmax.f32 %v1203, %v1223
    %v1228 = vmax.f32 %v1224, 0.0
    %v1229 = vmax.f32 %v1225, 0.0
    %v1230 = vmax.f32 %v1226, 0.0
    %v1231 = vmax.f32 %v1227, 0.0
    %v1234 = vcombine.high %v1228, %v1228
    %v1236 = vunpack.c.l.s4 1966171168
    %v1237 = vunpack.c.0.s8 %v1236
    %v1238 = vlaneseq
    %v1239 = vshrl.u32 %v1238, 7
    %v1240 = vsub.s32 %v1237, %v1239
    %v1241 = vrot.slane %v1228, %v1240
    %v1243 = vunpack.c.l.s4 1966171168
    %v1244 = vunpack.c.0.s8 %v1243
    %v1245 = vlaneseq
    %v1246 = vshrl.u32 %v1245, 7
    %v1247 = vsub.s32 %v1244, %v1246
    %v1248 = vrot.slane %v1234, %v1247
    %v1249 = vcombine.high %v1241, %v1241
    %v1250 = vcombine.high %v1248, %v1248
    %v1252 = vunpack.c.l.s4 1966171168
    %v1253 = vunpack.c.0.s8 %v1252
    %v1254 = vlaneseq
    %v1255 = vshrl.u32 %v1254, 7
    %v1256 = vsub.s32 %v1253, %v1255
    %v1257 = vrot.slane %v1241, %v1256
    %v1259 = vunpack.c.l.s4 1966171168
    %v1260 = vunpack.c.0.s8 %v1259
    %v1261 = vlaneseq
    %v1262 = vshrl.u32 %v1261, 7
    %v1263 = vsub.s32 %v1260, %v1262
    %v1264 = vrot.slane %v1248, %v1263
    %v1266 = vunpack.c.l.s4 1966171168
    %v1267 = vunpack.c.0.s8 %v1266
    %v1268 = vlaneseq
    %v1269 = vshrl.u32 %v1268, 7
    %v1270 = vsub.s32 %v1267, %v1269
    %v1271 = vrot.slane %v1249, %v1270
    %v1273 = vunpack.c.l.s4 1966171168
    %v1274 = vunpack.c.0.s8 %v1273
    %v1275 = vlaneseq
    %v1276 = vshrl.u32 %v1275, 7
    %v1277 = vsub.s32 %v1274, %v1276
    %v1278 = vrot.slane %v1250, %v1277
    %v1279 = vcombine.high %v1257, %v1257
    %v1280 = vcombine.high %v1264, %v1264
    %v1281 = vcombine.high %v1271, %v1271
    %v1282 = vcombine.high %v1278, %v1278
    %v1284 = vunpack.c.l.s4 1966171168
    %v1285 = vunpack.c.0.s8 %v1284
    %v1286 = vlaneseq
    %v1287 = vshrl.u32 %v1286, 7
    %v1288 = vsub.s32 %v1285, %v1287
    %v1289 = vrot.slane %v1230, %v1288
    %v1290 = vcombine.high %v1289, %v1289
    %v1292 = vunpack.c.l.s4 1966171168
    %v1293 = vunpack.c.0.s8 %v1292
    %v1294 = vlaneseq
    %v1295 = vshrl.u32 %v1294, 7
    %v1296 = vsub.s32 %v1293, %v1295
    %v1297 = vrot.slane %v1289, %v1296
    %v1299 = vunpack.c.l.s4 1966171168
    %v1300 = vunpack.c.0.s8 %v1299
    %v1301 = vlaneseq
    %v1302 = vshrl.u32 %v1301, 7
    %v1303 = vsub.s32 %v1300, %v1302
    %v1304 = vrot.slane %v1290, %v1303
    %1315 = vst [vmem:[#allocation2] sm:$0x1] %v1257
    %1316 = vst [vmem:[#allocation2 + $0x2] sm:$0x1] %v1271
    %1317 = vst [vmem:[#allocation2 + $0x4] sm:$0x1] %v1279
    %1318 = vst [vmem:[#allocation2 + $0x6] sm:$0x1] %v1281
    %1319 = vst [vmem:[#allocation2 + $0x8] sm:$0x1] %v1264
    %1320 = vst [vmem:[#allocation2 + $0xa] sm:$0x1] %v1278
    %1321 = vst [vmem:[#allocation2 + $0xc] sm:$0x1] %v1280
    %1322 = vst [vmem:[#allocation2 + $0xe] sm:$0x1] %v1282
    %1323 = vst [vmem:[#allocation2 + $0x10] sm:$0x1] %v1297
    %1324 = vst [vmem:[#allocation2 + $0x12] sm:$0x1] %v1304
    %v1327 = vcombine.high %v1229, %v1229
    %v1329 = vunpack.c.l.s4 1966171168
    %v1330 = vunpack.c.0.s8 %v1329
    %v1331 = vlaneseq
    %v1332 = vshrl.u32 %v1331, 7
    %v1333 = vsub.s32 %v1330, %v1332
    %v1334 = vrot.slane %v1229, %v1333
    %v1336 = vunpack.c.l.s4 1966171168
    %v1337 = vunpack.c.0.s8 %v1336
    %v1338 = vlaneseq
    %v1339 = vshrl.u32 %v1338, 7
    %v1340 = vsub.s32 %v1337, %v1339
    %v1341 = vrot.slane %v1327, %v1340
    %v1342 = vcombine.high %v1334, %v1334
    %v1343 = vcombine.high %v1341, %v1341
    %v1345 = vunpack.c.l.s4 1966171168
    %v1346 = vunpack.c.0.s8 %v1345
    %v1347 = vlaneseq
    %v1348 = vshrl.u32 %v1347, 7
    %v1349 = vsub.s32 %v1346, %v1348
    %v1350 = vrot.slane %v1334, %v1349
    %v1352 = vunpack.c.l.s4 1966171168
    %v1353 = vunpack.c.0.s8 %v1352
    %v1354 = vlaneseq
    %v1355 = vshrl.u32 %v1354, 7
    %v1356 = vsub.s32 %v1353, %v1355
    %v1357 = vrot.slane %v1341, %v1356
    %v1359 = vunpack.c.l.s4 1966171168
    %v1360 = vunpack.c.0.s8 %v1359
    %v1361 = vlaneseq
    %v1362 = vshrl.u32 %v1361, 7
    %v1363 = vsub.s32 %v1360, %v1362
    %v1364 = vrot.slane %v1342, %v1363
    %v1366 = vunpack.c.l.s4 1966171168
    %v1367 = vunpack.c.0.s8 %v1366
    %v1368 = vlaneseq
    %v1369 = vshrl.u32 %v1368, 7
    %v1370 = vsub.s32 %v1367, %v1369
    %v1371 = vrot.slane %v1343, %v1370
    %v1372 = vcombine.high %v1350, %v1350
    %v1373 = vcombine.high %v1357, %v1357
    %v1374 = vcombine.high %v1364, %v1364
    %v1375 = vcombine.high %v1371, %v1371
    %v1377 = vunpack.c.l.s4 1966171168
    %v1378 = vunpack.c.0.s8 %v1377
    %v1379 = vlaneseq
    %v1380 = vshrl.u32 %v1379, 7
    %v1381 = vsub.s32 %v1378, %v1380
    %v1382 = vrot.slane %v1231, %v1381
    %v1383 = vcombine.high %v1382, %v1382
    %v1385 = vunpack.c.l.s4 1966171168
    %v1386 = vunpack.c.0.s8 %v1385
    %v1387 = vlaneseq
    %v1388 = vshrl.u32 %v1387, 7
    %v1389 = vsub.s32 %v1386, %v1388
    %v1390 = vrot.slane %v1382, %v1389
    %v1392 = vunpack.c.l.s4 1966171168
    %v1393 = vunpack.c.0.s8 %v1392
    %v1394 = vlaneseq
    %v1395 = vshrl.u32 %v1394, 7
    %v1396 = vsub.s32 %v1393, %v1395
    %v1397 = vrot.slane %v1383, %v1396
    %1408 = vst [vmem:[#allocation2 + $0x1] sm:$0x1] %v1350
    %1409 = vst [vmem:[#allocation2 + $0x3] sm:$0x1] %v1364
    %1410 = vst [vmem:[#allocation2 + $0x5] sm:$0x1] %v1372
    %1411 = vst [vmem:[#allocation2 + $0x7] sm:$0x1] %v1374
    %1412 = vst [vmem:[#allocation2 + $0x9] sm:$0x1] %v1357
    %1413 = vst [vmem:[#allocation2 + $0xb] sm:$0x1] %v1371
    %1414 = vst [vmem:[#allocation2 + $0xd] sm:$0x1] %v1373
    %1415 = vst [vmem:[#allocation2 + $0xf] sm:$0x1] %v1375
    %1416 = vst [vmem:[#allocation2 + $0x11] sm:$0x1] %v1390
    %1417 = vst [vmem:[#allocation2 + $0x13] sm:$0x1] %v1397
    %v1418 = vld [vmem:[#allocation2] sm:$0x3]
    %v1419 = vld [vmem:[#allocation2 + $0x2] sm:$0x3]
    %v1420 = vld [vmem:[#allocation2 + $0x4] sm:$0x3]
    %v1421 = vld [vmem:[#allocation2 + $0x6] sm:$0x3]
    %v1422 = vld [vmem:[#allocation2 + $0x8] sm:$0x3]
    %v1423 = vld [vmem:[#allocation2 + $0xa] sm:$0x3]
    %v1424 = vld [vmem:[#allocation2 + $0xc] sm:$0x3]
    %v1425 = vld [vmem:[#allocation2 + $0xe] sm:$0x3]
    %v1426 = vld [vmem:[#allocation2 + $0x10] sm:$0x3]
    %v1427 = vld [vmem:[#allocation2 + $0x12] sm:$0x3]
    %v1428 = vld [vmem:[%s5] sm:$0xff]
    %v1429 = vld [vmem:[%s5 + $0x8] sm:$0xff]
    %v1430 = vld [vmem:[%s5 + $0x10] sm:$0xff]
    %v1431 = vld [vmem:[%s5 + $0x18] sm:$0xff]
    %v1432 = vld [vmem:[%s5 + $0x20] sm:$0xff]
    %v1433 = vld [vmem:[%s5 + $0x28] sm:$0xff]
    %v1434 = vld [vmem:[%s5 + $0x30] sm:$0xff]
    %v1435 = vld [vmem:[%s5 + $0x38] sm:$0xf]
    %v1436 = vld [vmem:[%s5 + $0x40] sm:$0xff]
    %v1437 = vld [vmem:[%s5 + $0x48] sm:$0xff]
    %v1438 = vld [vmem:[%s5 + $0x50] sm:$0xff]
    %v1439 = vld [vmem:[%s5 + $0x58] sm:$0xff]
    %v1440 = vld [vmem:[%s5 + $0x60] sm:$0xff]
    %v1441 = vld [vmem:[%s5 + $0x68] sm:$0xff]
    %v1442 = vld [vmem:[%s5 + $0x70] sm:$0xff]
    %v1443 = vld [vmem:[%s5 + $0x78] sm:$0xf]
    %v1444 = vld [vmem:[%s5 + $0x80] sm:$0xff]
    %v1445 = vld [vmem:[%s5 + $0x88] sm:$0xff]
    %v1446 = vld [vmem:[%s5 + $0x90] sm:$0xff]
    %v1447 = vld [vmem:[%s5 + $0x98] sm:$0xff]
    %v1448 = vld [vmem:[%s5 + $0xa0] sm:$0xff]
    %v1449 = vld [vmem:[%s5 + $0xa8] sm:$0xff]
    %v1450 = vld [vmem:[%s5 + $0xb0] sm:$0xff]
    %v1451 = vld [vmem:[%s5 + $0xb8] sm:$0xf]
    %v1452 = vld [vmem:[%s5 + $0xc0] sm:$0xff]
    %v1453 = vld [vmem:[%s5 + $0xc8] sm:$0xff]
    %v1454 = vld [vmem:[%s5 + $0xd0] sm:$0xff]
    %v1455 = vld [vmem:[%s5 + $0xd8] sm:$0xff]
    %v1456 = vld [vmem:[%s5 + $0xe0] sm:$0xff]
    %v1457 = vld [vmem:[%s5 + $0xe8] sm:$0xff]
    %v1458 = vld [vmem:[%s5 + $0xf0] sm:$0xff]
    %v1459 = vld [vmem:[%s5 + $0xf8] sm:$0xf]
    %v1460 = vld [vmem:[%s5 + $0x100] sm:$0xff]
    %v1461 = vld [vmem:[%s5 + $0x108] sm:$0xff]
    %v1462 = vld [vmem:[%s5 + $0x110] sm:$0xff]
    %v1463 = vld [vmem:[%s5 + $0x118] sm:$0xff]
    %v1464 = vld [vmem:[%s5 + $0x120] sm:$0xff]
    %v1465 = vld [vmem:[%s5 + $0x128] sm:$0xff]
    %v1466 = vld [vmem:[%s5 + $0x130] sm:$0xff]
    %v1467 = vld [vmem:[%s5 + $0x138] sm:$0xf]
    %v1468 = vld [vmem:[%s5 + $0x140] sm:$0xff]
    %v1469 = vld [vmem:[%s5 + $0x148] sm:$0xff]
    %v1470 = vld [vmem:[%s5 + $0x150] sm:$0xff]
    %v1471 = vld [vmem:[%s5 + $0x158] sm:$0xff]
    %v1472 = vld [vmem:[%s5 + $0x160] sm:$0xff]
    %v1473 = vld [vmem:[%s5 + $0x168] sm:$0xff]
    %v1474 = vld [vmem:[%s5 + $0x170] sm:$0xff]
    %v1475 = vld [vmem:[%s5 + $0x178] sm:$0xf]
    %v1476 = vld [vmem:[%s5 + $0x180] sm:$0xff]
    %v1477 = vld [vmem:[%s5 + $0x188] sm:$0xff]
    %v1478 = vld [vmem:[%s5 + $0x190] sm:$0xff]
    %v1479 = vld [vmem:[%s5 + $0x198] sm:$0xff]
    %v1480 = vld [vmem:[%s5 + $0x1a0] sm:$0xff]
    %v1481 = vld [vmem:[%s5 + $0x1a8] sm:$0xff]
    %v1482 = vld [vmem:[%s5 + $0x1b0] sm:$0xff]
    %v1483 = vld [vmem:[%s5 + $0x1b8] sm:$0xf]
    %v1484 = vld [vmem:[%s5 + $0x1c0] sm:$0xff]
    %v1485 = vld [vmem:[%s5 + $0x1c8] sm:$0xff]
    %v1486 = vld [vmem:[%s5 + $0x1d0] sm:$0xff]
    %v1487 = vld [vmem:[%s5 + $0x1d8] sm:$0xff]
    %v1488 = vld [vmem:[%s5 + $0x1e0] sm:$0xff]
    %v1489 = vld [vmem:[%s5 + $0x1e8] sm:$0xff]
    %v1490 = vld [vmem:[%s5 + $0x1f0] sm:$0xff]
    %v1491 = vld [vmem:[%s5 + $0x1f8] sm:$0xf]
    %v1492 = vld [vmem:[%s5 + $0x200] sm:$0xff]
    %v1493 = vld [vmem:[%s5 + $0x208] sm:$0xff]
    %v1494 = vld [vmem:[%s5 + $0x210] sm:$0xff]
    %v1495 = vld [vmem:[%s5 + $0x218] sm:$0xff]
    %v1496 = vld [vmem:[%s5 + $0x220] sm:$0xff]
    %v1497 = vld [vmem:[%s5 + $0x228] sm:$0xff]
    %v1498 = vld [vmem:[%s5 + $0x230] sm:$0xff]
    %v1499 = vld [vmem:[%s5 + $0x238] sm:$0xf]
    %v1500 = vld [vmem:[%s5 + $0x240] sm:$0xff]
    %v1501 = vld [vmem:[%s5 + $0x248] sm:$0xff]
    %v1502 = vld [vmem:[%s5 + $0x250] sm:$0xff]
    %v1503 = vld [vmem:[%s5 + $0x258] sm:$0xff]
    %v1504 = vld [vmem:[%s5 + $0x260] sm:$0xff]
    %v1505 = vld [vmem:[%s5 + $0x268] sm:$0xff]
    %v1506 = vld [vmem:[%s5 + $0x270] sm:$0xff]
    %v1507 = vld [vmem:[%s5 + $0x278] sm:$0xf]
    %1508 = vmatprep.subr.mxu0 0.0
    %1509 = vmatpush1.xpose.msra.mxu0 %v1428
    %1510 = vmatprep.subr.mxu0 0.0
    %1511 = vmatpush1.xpose.msra.mxu0 %v1429
    %1512 = vmatprep.subr.mxu0 0.0
    %1513 = vmatpush1.xpose.msra.mxu0 %v1430
    %1514 = vmatprep.subr.mxu0 0.0
    %1515 = vmatpush1.xpose.msra.mxu0 %v1431
    %1516 = vmatprep.subr.mxu0 0.0
    %1517 = vmatpush1.xpose.msra.mxu0 %v1432
    %1518 = vmatprep.subr.mxu0 0.0
    %1519 = vmatpush1.xpose.msra.mxu0 %v1433
    %1520 = vmatprep.subr.mxu0 0.0
    %1521 = vmatpush1.xpose.msra.mxu0 %v1434
    %1522 = vmatprep.subr.mxu0 0.0
    %1523 = vmatpush1.xpose.msra.mxu0 %v1435
    %1524 = vmatprep.subr.mxu0 0.0
    %1525 = vmatpush1.xpose.msra.mxu0 0.0
    %1526 = vmatprep.subr.mxu0 0.0
    %1527 = vmatpush1.xpose.msra.mxu0 0.0
    %1528 = vmatprep.subr.mxu0 0.0
    %1529 = vmatpush1.xpose.msra.mxu0 0.0
    %1530 = vmatprep.subr.mxu0 0.0
    %1531 = vmatpush1.xpose.msra.mxu0 0.0
    %1532 = vmatprep.subr.mxu0 0.0
    %1533 = vmatpush1.xpose.msra.mxu0 0.0
    %1534 = vmatprep.subr.mxu0 0.0
    %1535 = vmatpush1.xpose.msra.mxu0 0.0
    %1536 = vmatprep.subr.mxu0 0.0
    %1537 = vmatpush1.xpose.msra.mxu0 0.0
    %1538 = vmatprep.subr.mxu0 0.0
    %1539 = vmatpush1.xpose.msra.mxu0 0.0
    %1540 = vmatprep.subr.mxu0 0.0
    %1541 = vmatpush1.xpose.msra.mxu0 0.0
    %1542 = vmatprep.subr.mxu0 0.0
    %1543 = vmatpush1.xpose.msra.mxu0 0.0
    %1544 = vmatprep.subr.mxu0 0.0
    %1545 = vmatpush1.xpose.msra.mxu0 0.0
    %1546 = vmatprep.subr.mxu0 0.0
    %1547 = vmatpush1.xpose.msra.mxu0 0.0
    %1548 = vmatprep.subr.mxu0 0.0
    %1549 = vmatpush1.xpose.msra.mxu0 0.0
    %1550 = vmatprep.subr.mxu0 0.0
    %1551 = vmatpush1.xpose.msra.mxu0 0.0
    %1552 = vmatprep.subr.mxu0 0.0
    %1553 = vmatpush1.xpose.msra.mxu0 0.0
    %1554 = vmatprep.subr.mxu0 0.0
    %1555 = vmatpush1.xpose.msra.mxu0 0.0
    %1556 = vmatprep.subr.mxu0 0.0
    %1557 = vmatpush1.xpose.msra.mxu0 0.0
    %1558 = vmatprep.subr.mxu0 0.0
    %1559 = vmatpush1.xpose.msra.mxu0 0.0
    %1560 = vmatprep.subr.mxu0 0.0
    %1561 = vmatpush1.xpose.msra.mxu0 0.0
    %1562 = vmatprep.subr.mxu0 0.0
    %1563 = vmatpush1.xpose.msra.mxu0 0.0
    %1564 = vmatprep.subr.mxu0 0.0
    %1565 = vmatpush1.xpose.msra.mxu0 0.0
    %1566 = vmatprep.subr.mxu0 0.0
    %1567 = vmatpush1.xpose.msra.mxu0 0.0
    %1568 = vmatprep.subr.mxu0 0.0
    %1569 = vmatpush1.xpose.msra.mxu0 0.0
    %1570 = vmatprep.subr.mxu0 0.0
    %1571 = vmatpush1.xpose.msra.mxu0 0.0
    %1572 = vmatprep.mubr.f32.mxu0 0.0
    %1573 = vmatmul.mubr.f32.gmra.mrb[0].mxu0 %v1418
    %v1574 = vpop.f32.mrb[0].mxu0
    %v1575 = vadd.f32 0.0, %v1574
    %v1576 = vpop.f32.mrb[0].mxu0
    %1577 = vdwg.mxu0
    %1578 = vmatprep.subr.mxu0 0.0
    %1579 = vmatpush1.xpose.msra.mxu0 %v1436
    %1580 = vmatprep.subr.mxu0 0.0
    %1581 = vmatpush1.xpose.msra.mxu0 %v1437
    %1582 = vmatprep.subr.mxu0 0.0
    %1583 = vmatpush1.xpose.msra.mxu0 %v1438
    %1584 = vmatprep.subr.mxu0 0.0
    %1585 = vmatpush1.xpose.msra.mxu0 %v1439
    %1586 = vmatprep.subr.mxu0 0.0
    %1587 = vmatpush1.xpose.msra.mxu0 %v1440
    %1588 = vmatprep.subr.mxu0 0.0
    %1589 = vmatpush1.xpose.msra.mxu0 %v1441
    %1590 = vmatprep.subr.mxu0 0.0
    %1591 = vmatpush1.xpose.msra.mxu0 %v1442
    %1592 = vmatprep.subr.mxu0 0.0
    %1593 = vmatpush1.xpose.msra.mxu0 %v1443
    %1594 = vmatprep.subr.mxu0 0.0
    %1595 = vmatpush1.xpose.msra.mxu0 0.0
    %1596 = vmatprep.subr.mxu0 0.0
    %1597 = vmatpush1.xpose.msra.mxu0 0.0
    %1598 = vmatprep.subr.mxu0 0.0
    %1599 = vmatpush1.xpose.msra.mxu0 0.0
    %1600 = vmatprep.subr.mxu0 0.0
    %1601 = vmatpush1.xpose.msra.mxu0 0.0
    %1602 = vmatprep.subr.mxu0 0.0
    %1603 = vmatpush1.xpose.msra.mxu0 0.0
    %1604 = vmatprep.subr.mxu0 0.0
    %1605 = vmatpush1.xpose.msra.mxu0 0.0
    %1606 = vmatprep.subr.mxu0 0.0
    %1607 = vmatpush1.xpose.msra.mxu0 0.0
    %1608 = vmatprep.subr.mxu0 0.0
    %1609 = vmatpush1.xpose.msra.mxu0 0.0
    %1610 = vmatprep.subr.mxu0 0.0
    %1611 = vmatpush1.xpose.msra.mxu0 0.0
    %1612 = vmatprep.subr.mxu0 0.0
    %1613 = vmatpush1.xpose.msra.mxu0 0.0
    %1614 = vmatprep.subr.mxu0 0.0
    %1615 = vmatpush1.xpose.msra.mxu0 0.0
    %1616 = vmatprep.subr.mxu0 0.0
    %1617 = vmatpush1.xpose.msra.mxu0 0.0
    %1618 = vmatprep.subr.mxu0 0.0
    %1619 = vmatpush1.xpose.msra.mxu0 0.0
    %1620 = vmatprep.subr.mxu0 0.0
    %1621 = vmatpush1.xpose.msra.mxu0 0.0
    %1622 = vmatprep.subr.mxu0 0.0
    %1623 = vmatpush1.xpose.msra.mxu0 0.0
    %1624 = vmatprep.subr.mxu0 0.0
    %1625 = vmatpush1.xpose.msra.mxu0 0.0
    %1626 = vmatprep.subr.mxu0 0.0
    %1627 = vmatpush1.xpose.msra.mxu0 0.0
    %1628 = vmatprep.subr.mxu0 0.0
    %1629 = vmatpush1.xpose.msra.mxu0 0.0
    %1630 = vmatprep.subr.mxu0 0.0
    %1631 = vmatpush1.xpose.msra.mxu0 0.0
    %1632 = vmatprep.subr.mxu0 0.0
    %1633 = vmatpush1.xpose.msra.mxu0 0.0
    %1634 = vmatprep.subr.mxu0 0.0
    %1635 = vmatpush1.xpose.msra.mxu0 0.0
    %1636 = vmatprep.subr.mxu0 0.0
    %1637 = vmatpush1.xpose.msra.mxu0 0.0
    %1638 = vmatprep.subr.mxu0 0.0
    %1639 = vmatpush1.xpose.msra.mxu0 0.0
    %1640 = vmatprep.subr.mxu0 0.0
    %1641 = vmatpush1.xpose.msra.mxu0 0.0
    %1642 = vmatprep.mubr.f32.mxu0 0.0
    %1643 = vmatmul.mubr.f32.gmra.mrb[0].mxu0 %v1419
    %v1644 = vpop.f32.mrb[0].mxu0
    %v1645 = vadd.f32 0.0, %v1644
    %v1646 = vpop.f32.mrb[0].mxu0
    %1647 = vdwg.mxu0
    %1648 = vmatprep.subr.mxu0 0.0
    %1649 = vmatpush1.xpose.msra.mxu0 %v1444
    %1650 = vmatprep.subr.mxu0 0.0
    %1651 = vmatpush1.xpose.msra.mxu0 %v1445
    %1652 = vmatprep.subr.mxu0 0.0
    %1653 = vmatpush1.xpose.msra.mxu0 %v1446
    %1654 = vmatprep.subr.mxu0 0.0
    %1655 = vmatpush1.xpose.msra.mxu0 %v1447
    %1656 = vmatprep.subr.mxu0 0.0
    %1657 = vmatpush1.xpose.msra.mxu0 %v1448
    %1658 = vmatprep.subr.mxu0 0.0
    %1659 = vmatpush1.xpose.msra.mxu0 %v1449
    %1660 = vmatprep.subr.mxu0 0.0
    %1661 = vmatpush1.xpose.msra.mxu0 %v1450
    %1662 = vmatprep.subr.mxu0 0.0
    %1663 = vmatpush1.xpose.msra.mxu0 %v1451
    %1664 = vmatprep.subr.mxu0 0.0
    %1665 = vmatpush1.xpose.msra.mxu0 0.0
    %1666 = vmatprep.subr.mxu0 0.0
    %1667 = vmatpush1.xpose.msra.mxu0 0.0
    %1668 = vmatprep.subr.mxu0 0.0
    %1669 = vmatpush1.xpose.msra.mxu0 0.0
    %1670 = vmatprep.subr.mxu0 0.0
    %1671 = vmatpush1.xpose.msra.mxu0 0.0
    %1672 = vmatprep.subr.mxu0 0.0
    %1673 = vmatpush1.xpose.msra.mxu0 0.0
    %1674 = vmatprep.subr.mxu0 0.0
    %1675 = vmatpush1.xpose.msra.mxu0 0.0
    %1676 = vmatprep.subr.mxu0 0.0
    %1677 = vmatpush1.xpose.msra.mxu0 0.0
    %1678 = vmatprep.subr.mxu0 0.0
    %1679 = vmatpush1.xpose.msra.mxu0 0.0
    %1680 = vmatprep.subr.mxu0 0.0
    %1681 = vmatpush1.xpose.msra.mxu0 0.0
    %1682 = vmatprep.subr.mxu0 0.0
    %1683 = vmatpush1.xpose.msra.mxu0 0.0
    %1684 = vmatprep.subr.mxu0 0.0
    %1685 = vmatpush1.xpose.msra.mxu0 0.0
    %1686 = vmatprep.subr.mxu0 0.0
    %1687 = vmatpush1.xpose.msra.mxu0 0.0
    %1688 = vmatprep.subr.mxu0 0.0
    %1689 = vmatpush1.xpose.msra.mxu0 0.0
    %1690 = vmatprep.subr.mxu0 0.0
    %1691 = vmatpush1.xpose.msra.mxu0 0.0
    %1692 = vmatprep.subr.mxu0 0.0
    %1693 = vmatpush1.xpose.msra.mxu0 0.0
    %1694 = vmatprep.subr.mxu0 0.0
    %1695 = vmatpush1.xpose.msra.mxu0 0.0
    %1696 = vmatprep.subr.mxu0 0.0
    %1697 = vmatpush1.xpose.msra.mxu0 0.0
    %1698 = vmatprep.subr.mxu0 0.0
    %1699 = vmatpush1.xpose.msra.mxu0 0.0
    %1700 = vmatprep.subr.mxu0 0.0
    %1701 = vmatpush1.xpose.msra.mxu0 0.0
    %1702 = vmatprep.subr.mxu0 0.0
    %1703 = vmatpush1.xpose.msra.mxu0 0.0
    %1704 = vmatprep.subr.mxu0 0.0
    %1705 = vmatpush1.xpose.msra.mxu0 0.0
    %1706 = vmatprep.subr.mxu0 0.0
    %1707 = vmatpush1.xpose.msra.mxu0 0.0
    %1708 = vmatprep.subr.mxu0 0.0
    %1709 = vmatpush1.xpose.msra.mxu0 0.0
    %1710 = vmatprep.subr.mxu0 0.0
    %1711 = vmatpush1.xpose.msra.mxu0 0.0
    %1712 = vmatprep.mubr.f32.mxu0 0.0
    %1713 = vmatmul.mubr.f32.gmra.mrb[0].mxu0 %v1420
    %v1714 = vpop.f32.mrb[0].mxu0
    %v1715 = vadd.f32 0.0, %v1714
    %v1716 = vpop.f32.mrb[0].mxu0
    %1717 = vdwg.mxu0
    %1718 = vmatprep.subr.mxu0 0.0
    %1719 = vmatpush1.xpose.msra.mxu0 %v1452
    %1720 = vmatprep.subr.mxu0 0.0
    %1721 = vmatpush1.xpose.msra.mxu0 %v1453
    %1722 = vmatprep.subr.mxu0 0.0
    %1723 = vmatpush1.xpose.msra.mxu0 %v1454
    %1724 = vmatprep.subr.mxu0 0.0
    %1725 = vmatpush1.xpose.msra.mxu0 %v1455
    %1726 = vmatprep.subr.mxu0 0.0
    %1727 = vmatpush1.xpose.msra.mxu0 %v1456
    %1728 = vmatprep.subr.mxu0 0.0
    %1729 = vmatpush1.xpose.msra.mxu0 %v1457
    %1730 = vmatprep.subr.mxu0 0.0
    %1731 = vmatpush1.xpose.msra.mxu0 %v1458
    %1732 = vmatprep.subr.mxu0 0.0
    %1733 = vmatpush1.xpose.msra.mxu0 %v1459
    %1734 = vmatprep.subr.mxu0 0.0
    %1735 = vmatpush1.xpose.msra.mxu0 0.0
    %1736 = vmatprep.subr.mxu0 0.0
    %1737 = vmatpush1.xpose.msra.mxu0 0.0
    %1738 = vmatprep.subr.mxu0 0.0
    %1739 = vmatpush1.xpose.msra.mxu0 0.0
    %1740 = vmatprep.subr.mxu0 0.0
    %1741 = vmatpush1.xpose.msra.mxu0 0.0
    %1742 = vmatprep.subr.mxu0 0.0
    %1743 = vmatpush1.xpose.msra.mxu0 0.0
    %1744 = vmatprep.subr.mxu0 0.0
    %1745 = vmatpush1.xpose.msra.mxu0 0.0
    %1746 = vmatprep.subr.mxu0 0.0
    %1747 = vmatpush1.xpose.msra.mxu0 0.0
    %1748 = vmatprep.subr.mxu0 0.0
    %1749 = vmatpush1.xpose.msra.mxu0 0.0
    %1750 = vmatprep.subr.mxu0 0.0
    %1751 = vmatpush1.xpose.msra.mxu0 0.0
    %1752 = vmatprep.subr.mxu0 0.0
    %1753 = vmatpush1.xpose.msra.mxu0 0.0
    %1754 = vmatprep.subr.mxu0 0.0
    %1755 = vmatpush1.xpose.msra.mxu0 0.0
    %1756 = vmatprep.subr.mxu0 0.0
    %1757 = vmatpush1.xpose.msra.mxu0 0.0
    %1758 = vmatprep.subr.mxu0 0.0
    %1759 = vmatpush1.xpose.msra.mxu0 0.0
    %1760 = vmatprep.subr.mxu0 0.0
    %1761 = vmatpush1.xpose.msra.mxu0 0.0
    %1762 = vmatprep.subr.mxu0 0.0
    %1763 = vmatpush1.xpose.msra.mxu0 0.0
    %1764 = vmatprep.subr.mxu0 0.0
    %1765 = vmatpush1.xpose.msra.mxu0 0.0
    %1766 = vmatprep.subr.mxu0 0.0
    %1767 = vmatpush1.xpose.msra.mxu0 0.0
    %1768 = vmatprep.subr.mxu0 0.0
    %1769 = vmatpush1.xpose.msra.mxu0 0.0
    %1770 = vmatprep.subr.mxu0 0.0
    %1771 = vmatpush1.xpose.msra.mxu0 0.0
    %1772 = vmatprep.subr.mxu0 0.0
    %1773 = vmatpush1.xpose.msra.mxu0 0.0
    %1774 = vmatprep.subr.mxu0 0.0
    %1775 = vmatpush1.xpose.msra.mxu0 0.0
    %1776 = vmatprep.subr.mxu0 0.0
    %1777 = vmatpush1.xpose.msra.mxu0 0.0
    %1778 = vmatprep.subr.mxu0 0.0
    %1779 = vmatpush1.xpose.msra.mxu0 0.0
    %1780 = vmatprep.subr.mxu0 0.0
    %1781 = vmatpush1.xpose.msra.mxu0 0.0
    %1782 = vmatprep.mubr.f32.mxu0 0.0
    %1783 = vmatmul.mubr.f32.gmra.mrb[0].mxu0 %v1421
    %v1784 = vpop.f32.mrb[0].mxu0
    %v1785 = vadd.f32 0.0, %v1784
    %v1786 = vpop.f32.mrb[0].mxu0
    %1787 = vdwg.mxu0
    %1788 = vmatprep.subr.mxu0 0.0
    %1789 = vmatpush1.xpose.msra.mxu0 %v1460
    %1790 = vmatprep.subr.mxu0 0.0
    %1791 = vmatpush1.xpose.msra.mxu0 %v1461
    %1792 = vmatprep.subr.mxu0 0.0
    %1793 = vmatpush1.xpose.msra.mxu0 %v1462
    %1794 = vmatprep.subr.mxu0 0.0
    %1795 = vmatpush1.xpose.msra.mxu0 %v1463
    %1796 = vmatprep.subr.mxu0 0.0
    %1797 = vmatpush1.xpose.msra.mxu0 %v1464
    %1798 = vmatprep.subr.mxu0 0.0
    %1799 = vmatpush1.xpose.msra.mxu0 %v1465
    %1800 = vmatprep.subr.mxu0 0.0
    %1801 = vmatpush1.xpose.msra.mxu0 %v1466
    %1802 = vmatprep.subr.mxu0 0.0
    %1803 = vmatpush1.xpose.msra.mxu0 %v1467
    %1804 = vmatprep.subr.mxu0 0.0
    %1805 = vmatpush1.xpose.msra.mxu0 0.0
    %1806 = vmatprep.subr.mxu0 0.0
    %1807 = vmatpush1.xpose.msra.mxu0 0.0
    %1808 = vmatprep.subr.mxu0 0.0
    %1809 = vmatpush1.xpose.msra.mxu0 0.0
    %1810 = vmatprep.subr.mxu0 0.0
    %1811 = vmatpush1.xpose.msra.mxu0 0.0
    %1812 = vmatprep.subr.mxu0 0.0
    %1813 = vmatpush1.xpose.msra.mxu0 0.0
    %1814 = vmatprep.subr.mxu0 0.0
    %1815 = vmatpush1.xpose.msra.mxu0 0.0
    %1816 = vmatprep.subr.mxu0 0.0
    %1817 = vmatpush1.xpose.msra.mxu0 0.0
    %1818 = vmatprep.subr.mxu0 0.0
    %1819 = vmatpush1.xpose.msra.mxu0 0.0
    %1820 = vmatprep.subr.mxu0 0.0
    %1821 = vmatpush1.xpose.msra.mxu0 0.0
    %1822 = vmatprep.subr.mxu0 0.0
    %1823 = vmatpush1.xpose.msra.mxu0 0.0
    %1824 = vmatprep.subr.mxu0 0.0
    %1825 = vmatpush1.xpose.msra.mxu0 0.0
    %1826 = vmatprep.subr.mxu0 0.0
    %1827 = vmatpush1.xpose.msra.mxu0 0.0
    %1828 = vmatprep.subr.mxu0 0.0
    %1829 = vmatpush1.xpose.msra.mxu0 0.0
    %1830 = vmatprep.subr.mxu0 0.0
    %1831 = vmatpush1.xpose.msra.mxu0 0.0
    %1832 = vmatprep.subr.mxu0 0.0
    %1833 = vmatpush1.xpose.msra.mxu0 0.0
    %1834 = vmatprep.subr.mxu0 0.0
    %1835 = vmatpush1.xpose.msra.mxu0 0.0
    %1836 = vmatprep.subr.mxu0 0.0
    %1837 = vmatpush1.xpose.msra.mxu0 0.0
    %1838 = vmatprep.subr.mxu0 0.0
    %1839 = vmatpush1.xpose.msra.mxu0 0.0
    %1840 = vmatprep.subr.mxu0 0.0
    %1841 = vmatpush1.xpose.msra.mxu0 0.0
    %1842 = vmatprep.subr.mxu0 0.0
    %1843 = vmatpush1.xpose.msra.mxu0 0.0
    %1844 = vmatprep.subr.mxu0 0.0
    %1845 = vmatpush1.xpose.msra.mxu0 0.0
    %1846 = vmatprep.subr.mxu0 0.0
    %1847 = vmatpush1.xpose.msra.mxu0 0.0
    %1848 = vmatprep.subr.mxu0 0.0
    %1849 = vmatpush1.xpose.msra.mxu0 0.0
    %1850 = vmatprep.subr.mxu0 0.0
    %1851 = vmatpush1.xpose.msra.mxu0 0.0
    %1852 = vmatprep.mubr.f32.mxu0 0.0
    %1853 = vmatmul.mubr.f32.gmra.mrb[0].mxu0 %v1422
    %v1854 = vpop.f32.mrb[0].mxu0
    %v1855 = vadd.f32 0.0, %v1854
    %v1856 = vpop.f32.mrb[0].mxu0
    %1857 = vdwg.mxu0
    %1858 = vmatprep.subr.mxu0 0.0
    %1859 = vmatpush1.xpose.msra.mxu0 %v1468
    %1860 = vmatprep.subr.mxu0 0.0
    %1861 = vmatpush1.xpose.msra.mxu0 %v1469
    %1862 = vmatprep.subr.mxu0 0.0
    %1863 = vmatpush1.xpose.msra.mxu0 %v1470
    %1864 = vmatprep.subr.mxu0 0.0
    %1865 = vmatpush1.xpose.msra.mxu0 %v1471
    %1866 = vmatprep.subr.mxu0 0.0
    %1867 = vmatpush1.xpose.msra.mxu0 %v1472
    %1868 = vmatprep.subr.mxu0 0.0
    %1869 = vmatpush1.xpose.msra.mxu0 %v1473
    %1870 = vmatprep.subr.mxu0 0.0
    %1871 = vmatpush1.xpose.msra.mxu0 %v1474
    %1872 = vmatprep.subr.mxu0 0.0
    %1873 = vmatpush1.xpose.msra.mxu0 %v1475
    %1874 = vmatprep.subr.mxu0 0.0
    %1875 = vmatpush1.xpose.msra.mxu0 0.0
    %1876 = vmatprep.subr.mxu0 0.0
    %1877 = vmatpush1.xpose.msra.mxu0 0.0
    %1878 = vmatprep.subr.mxu0 0.0
    %1879 = vmatpush1.xpose.msra.mxu0 0.0
    %1880 = vmatprep.subr.mxu0 0.0
    %1881 = vmatpush1.xpose.msra.mxu0 0.0
    %1882 = vmatprep.subr.mxu0 0.0
    %1883 = vmatpush1.xpose.msra.mxu0 0.0
    %1884 = vmatprep.subr.mxu0 0.0
    %1885 = vmatpush1.xpose.msra.mxu0 0.0
    %1886 = vmatprep.subr.mxu0 0.0
    %1887 = vmatpush1.xpose.msra.mxu0 0.0
    %1888 = vmatprep.subr.mxu0 0.0
    %1889 = vmatpush1.xpose.msra.mxu0 0.0
    %1890 = vmatprep.subr.mxu0 0.0
    %1891 = vmatpush1.xpose.msra.mxu0 0.0
    %1892 = vmatprep.subr.mxu0 0.0
    %1893 = vmatpush1.xpose.msra.mxu0 0.0
    %1894 = vmatprep.subr.mxu0 0.0
    %1895 = vmatpush1.xpose.msra.mxu0 0.0
    %1896 = vmatprep.subr.mxu0 0.0
    %1897 = vmatpush1.xpose.msra.mxu0 0.0
    %1898 = vmatprep.subr.mxu0 0.0
    %1899 = vmatpush1.xpose.msra.mxu0 0.0
    %1900 = vmatprep.subr.mxu0 0.0
    %1901 = vmatpush1.xpose.msra.mxu0 0.0
    %1902 = vmatprep.subr.mxu0 0.0
    %1903 = vmatpush1.xpose.msra.mxu0 0.0
    %1904 = vmatprep.subr.mxu0 0.0
    %1905 = vmatpush1.xpose.msra.mxu0 0.0
    %1906 = vmatprep.subr.mxu0 0.0
    %1907 = vmatpush1.xpose.msra.mxu0 0.0
    %1908 = vmatprep.subr.mxu0 0.0
    %1909 = vmatpush1.xpose.msra.mxu0 0.0
    %1910 = vmatprep.subr.mxu0 0.0
    %1911 = vmatpush1.xpose.msra.mxu0 0.0
    %1912 = vmatprep.subr.mxu0 0.0
    %1913 = vmatpush1.xpose.msra.mxu0 0.0
    %1914 = vmatprep.subr.mxu0 0.0
    %1915 = vmatpush1.xpose.msra.mxu0 0.0
    %1916 = vmatprep.subr.mxu0 0.0
    %1917 = vmatpush1.xpose.msra.mxu0 0.0
    %1918 = vmatprep.subr.mxu0 0.0
    %1919 = vmatpush1.xpose.msra.mxu0 0.0
    %1920 = vmatprep.subr.mxu0 0.0
    %1921 = vmatpush1.xpose.msra.mxu0 0.0
    %1922 = vmatprep.mubr.f32.mxu0 0.0
    %1923 = vmatmul.mubr.f32.gmra.mrb[0].mxu0 %v1423
    %v1924 = vpop.f32.mrb[0].mxu0
    %v1925 = vadd.f32 0.0, %v1924
    %v1926 = vpop.f32.mrb[0].mxu0
    %1927 = vdwg.mxu0
    %1928 = vmatprep.subr.mxu0 0.0
    %1929 = vmatpush1.xpose.msra.mxu0 %v1476
    %1930 = vmatprep.subr.mxu0 0.0
    %1931 = vmatpush1.xpose.msra.mxu0 %v1477
    %1932 = vmatprep.subr.mxu0 0.0
    %1933 = vmatpush1.xpose.msra.mxu0 %v1478
    %1934 = vmatprep.subr.mxu0 0.0
    %1935 = vmatpush1.xpose.msra.mxu0 %v1479
    %1936 = vmatprep.subr.mxu0 0.0
    %1937 = vmatpush1.xpose.msra.mxu0 %v1480
    %1938 = vmatprep.subr.mxu0 0.0
    %1939 = vmatpush1.xpose.msra.mxu0 %v1481
    %1940 = vmatprep.subr.mxu0 0.0
    %1941 = vmatpush1.xpose.msra.mxu0 %v1482
    %1942 = vmatprep.subr.mxu0 0.0
    %1943 = vmatpush1.xpose.msra.mxu0 %v1483
    %1944 = vmatprep.subr.mxu0 0.0
    %1945 = vmatpush1.xpose.msra.mxu0 0.0
    %1946 = vmatprep.subr.mxu0 0.0
    %1947 = vmatpush1.xpose.msra.mxu0 0.0
    %1948 = vmatprep.subr.mxu0 0.0
    %1949 = vmatpush1.xpose.msra.mxu0 0.0
    %1950 = vmatprep.subr.mxu0 0.0
    %1951 = vmatpush1.xpose.msra.mxu0 0.0
    %1952 = vmatprep.subr.mxu0 0.0
    %1953 = vmatpush1.xpose.msra.mxu0 0.0
    %1954 = vmatprep.subr.mxu0 0.0
    %1955 = vmatpush1.xpose.msra.mxu0 0.0
    %1956 = vmatprep.subr.mxu0 0.0
    %1957 = vmatpush1.xpose.msra.mxu0 0.0
    %1958 = vmatprep.subr.mxu0 0.0
    %1959 = vmatpush1.xpose.msra.mxu0 0.0
    %1960 = vmatprep.subr.mxu0 0.0
    %1961 = vmatpush1.xpose.msra.mxu0 0.0
    %1962 = vmatprep.subr.mxu0 0.0
    %1963 = vmatpush1.xpose.msra.mxu0 0.0
    %1964 = vmatprep.subr.mxu0 0.0
    %1965 = vmatpush1.xpose.msra.mxu0 0.0
    %1966 = vmatprep.subr.mxu0 0.0
    %1967 = vmatpush1.xpose.msra.mxu0 0.0
    %1968 = vmatprep.subr.mxu0 0.0
    %1969 = vmatpush1.xpose.msra.mxu0 0.0
    %1970 = vmatprep.subr.mxu0 0.0
    %1971 = vmatpush1.xpose.msra.mxu0 0.0
    %1972 = vmatprep.subr.mxu0 0.0
    %1973 = vmatpush1.xpose.msra.mxu0 0.0
    %1974 = vmatprep.subr.mxu0 0.0
    %1975 = vmatpush1.xpose.msra.mxu0 0.0
    %1976 = vmatprep.subr.mxu0 0.0
    %1977 = vmatpush1.xpose.msra.mxu0 0.0
    %1978 = vmatprep.subr.mxu0 0.0
    %1979 = vmatpush1.xpose.msra.mxu0 0.0
    %1980 = vmatprep.subr.mxu0 0.0
    %1981 = vmatpush1.xpose.msra.mxu0 0.0
    %1982 = vmatprep.subr.mxu0 0.0
    %1983 = vmatpush1.xpose.msra.mxu0 0.0
    %1984 = vmatprep.subr.mxu0 0.0
    %1985 = vmatpush1.xpose.msra.mxu0 0.0
    %1986 = vmatprep.subr.mxu0 0.0
    %1987 = vmatpush1.xpose.msra.mxu0 0.0
    %1988 = vmatprep.subr.mxu0 0.0
    %1989 = vmatpush1.xpose.msra.mxu0 0.0
    %1990 = vmatprep.subr.mxu0 0.0
    %1991 = vmatpush1.xpose.msra.mxu0 0.0
    %1992 = vmatprep.mubr.f32.mxu0 0.0
    %1993 = vmatmul.mubr.f32.gmra.mrb[0].mxu0 %v1424
    %v1994 = vpop.f32.mrb[0].mxu0
    %v1995 = vadd.f32 0.0, %v1994
    %v1996 = vpop.f32.mrb[0].mxu0
    %1997 = vdwg.mxu0
    %1998 = vmatprep.subr.mxu0 0.0
    %1999 = vmatpush1.xpose.msra.mxu0 %v1484
    %2000 = vmatprep.subr.mxu0 0.0
    %2001 = vmatpush1.xpose.msra.mxu0 %v1485
    %2002 = vmatprep.subr.mxu0 0.0
    %2003 = vmatpush1.xpose.msra.mxu0 %v1486
    %2004 = vmatprep.subr.mxu0 0.0
    %2005 = vmatpush1.xpose.msra.mxu0 %v1487
    %2006 = vmatprep.subr.mxu0 0.0
    %2007 = vmatpush1.xpose.msra.mxu0 %v1488
    %2008 = vmatprep.subr.mxu0 0.0
    %2009 = vmatpush1.xpose.msra.mxu0 %v1489
    %2010 = vmatprep.subr.mxu0 0.0
    %2011 = vmatpush1.xpose.msra.mxu0 %v1490
    %2012 = vmatprep.subr.mxu0 0.0
    %2013 = vmatpush1.xpose.msra.mxu0 %v1491
    %2014 = vmatprep.subr.mxu0 0.0
    %2015 = vmatpush1.xpose.msra.mxu0 0.0
    %2016 = vmatprep.subr.mxu0 0.0
    %2017 = vmatpush1.xpose.msra.mxu0 0.0
    %2018 = vmatprep.subr.mxu0 0.0
    %2019 = vmatpush1.xpose.msra.mxu0 0.0
    %2020 = vmatprep.subr.mxu0 0.0
    %2021 = vmatpush1.xpose.msra.mxu0 0.0
    %2022 = vmatprep.subr.mxu0 0.0
    %2023 = vmatpush1.xpose.msra.mxu0 0.0
    %2024 = vmatprep.subr.mxu0 0.0
    %2025 = vmatpush1.xpose.msra.mxu0 0.0
    %2026 = vmatprep.subr.mxu0 0.0
    %2027 = vmatpush1.xpose.msra.mxu0 0.0
    %2028 = vmatprep.subr.mxu0 0.0
    %2029 = vmatpush1.xpose.msra.mxu0 0.0
    %2030 = vmatprep.subr.mxu0 0.0
    %2031 = vmatpush1.xpose.msra.mxu0 0.0
    %2032 = vmatprep.subr.mxu0 0.0
    %2033 = vmatpush1.xpose.msra.mxu0 0.0
    %2034 = vmatprep.subr.mxu0 0.0
    %2035 = vmatpush1.xpose.msra.mxu0 0.0
    %2036 = vmatprep.subr.mxu0 0.0
    %2037 = vmatpush1.xpose.msra.mxu0 0.0
    %2038 = vmatprep.subr.mxu0 0.0
    %2039 = vmatpush1.xpose.msra.mxu0 0.0
    %2040 = vmatprep.subr.mxu0 0.0
    %2041 = vmatpush1.xpose.msra.mxu0 0.0
    %2042 = vmatprep.subr.mxu0 0.0
    %2043 = vmatpush1.xpose.msra.mxu0 0.0
    %2044 = vmatprep.subr.mxu0 0.0
    %2045 = vmatpush1.xpose.msra.mxu0 0.0
    %2046 = vmatprep.subr.mxu0 0.0
    %2047 = vmatpush1.xpose.msra.mxu0 0.0
    %2048 = vmatprep.subr.mxu0 0.0
    %2049 = vmatpush1.xpose.msra.mxu0 0.0
    %2050 = vmatprep.subr.mxu0 0.0
    %2051 = vmatpush1.xpose.msra.mxu0 0.0
    %2052 = vmatprep.subr.mxu0 0.0
    %2053 = vmatpush1.xpose.msra.mxu0 0.0
    %2054 = vmatprep.subr.mxu0 0.0
    %2055 = vmatpush1.xpose.msra.mxu0 0.0
    %2056 = vmatprep.subr.mxu0 0.0
    %2057 = vmatpush1.xpose.msra.mxu0 0.0
    %2058 = vmatprep.subr.mxu0 0.0
    %2059 = vmatpush1.xpose.msra.mxu0 0.0
    %2060 = vmatprep.subr.mxu0 0.0
    %2061 = vmatpush1.xpose.msra.mxu0 0.0
    %2062 = vmatprep.mubr.f32.mxu0 0.0
    %2063 = vmatmul.mubr.f32.gmra.mrb[0].mxu0 %v1425
    %v2064 = vpop.f32.mrb[0].mxu0
    %v2065 = vadd.f32 0.0, %v2064
    %v2066 = vpop.f32.mrb[0].mxu0
    %2067 = vdwg.mxu0
    %2068 = vmatprep.subr.mxu0 0.0
    %2069 = vmatpush1.xpose.msra.mxu0 %v1492
    %2070 = vmatprep.subr.mxu0 0.0
    %2071 = vmatpush1.xpose.msra.mxu0 %v1493
    %2072 = vmatprep.subr.mxu0 0.0
    %2073 = vmatpush1.xpose.msra.mxu0 %v1494
    %2074 = vmatprep.subr.mxu0 0.0
    %2075 = vmatpush1.xpose.msra.mxu0 %v1495
    %2076 = vmatprep.subr.mxu0 0.0
    %2077 = vmatpush1.xpose.msra.mxu0 %v1496
    %2078 = vmatprep.subr.mxu0 0.0
    %2079 = vmatpush1.xpose.msra.mxu0 %v1497
    %2080 = vmatprep.subr.mxu0 0.0
    %2081 = vmatpush1.xpose.msra.mxu0 %v1498
    %2082 = vmatprep.subr.mxu0 0.0
    %2083 = vmatpush1.xpose.msra.mxu0 %v1499
    %2084 = vmatprep.subr.mxu0 0.0
    %2085 = vmatpush1.xpose.msra.mxu0 0.0
    %2086 = vmatprep.subr.mxu0 0.0
    %2087 = vmatpush1.xpose.msra.mxu0 0.0
    %2088 = vmatprep.subr.mxu0 0.0
    %2089 = vmatpush1.xpose.msra.mxu0 0.0
    %2090 = vmatprep.subr.mxu0 0.0
    %2091 = vmatpush1.xpose.msra.mxu0 0.0
    %2092 = vmatprep.subr.mxu0 0.0
    %2093 = vmatpush1.xpose.msra.mxu0 0.0
    %2094 = vmatprep.subr.mxu0 0.0
    %2095 = vmatpush1.xpose.msra.mxu0 0.0
    %2096 = vmatprep.subr.mxu0 0.0
    %2097 = vmatpush1.xpose.msra.mxu0 0.0
    %2098 = vmatprep.subr.mxu0 0.0
    %2099 = vmatpush1.xpose.msra.mxu0 0.0
    %2100 = vmatprep.subr.mxu0 0.0
    %2101 = vmatpush1.xpose.msra.mxu0 0.0
    %2102 = vmatprep.subr.mxu0 0.0
    %2103 = vmatpush1.xpose.msra.mxu0 0.0
    %2104 = vmatprep.subr.mxu0 0.0
    %2105 = vmatpush1.xpose.msra.mxu0 0.0
    %2106 = vmatprep.subr.mxu0 0.0
    %2107 = vmatpush1.xpose.msra.mxu0 0.0
    %2108 = vmatprep.subr.mxu0 0.0
    %2109 = vmatpush1.xpose.msra.mxu0 0.0
    %2110 = vmatprep.subr.mxu0 0.0
    %2111 = vmatpush1.xpose.msra.mxu0 0.0
    %2112 = vmatprep.subr.mxu0 0.0
    %2113 = vmatpush1.xpose.msra.mxu0 0.0
    %2114 = vmatprep.subr.mxu0 0.0
    %2115 = vmatpush1.xpose.msra.mxu0 0.0
    %2116 = vmatprep.subr.mxu0 0.0
    %2117 = vmatpush1.xpose.msra.mxu0 0.0
    %2118 = vmatprep.subr.mxu0 0.0
    %2119 = vmatpush1.xpose.msra.mxu0 0.0
    %2120 = vmatprep.subr.mxu0 0.0
    %2121 = vmatpush1.xpose.msra.mxu0 0.0
    %2122 = vmatprep.subr.mxu0 0.0
    %2123 = vmatpush1.xpose.msra.mxu0 0.0
    %2124 = vmatprep.subr.mxu0 0.0
    %2125 = vmatpush1.xpose.msra.mxu0 0.0
    %2126 = vmatprep.subr.mxu0 0.0
    %2127 = vmatpush1.xpose.msra.mxu0 0.0
    %2128 = vmatprep.subr.mxu0 0.0
    %2129 = vmatpush1.xpose.msra.mxu0 0.0
    %2130 = vmatprep.subr.mxu0 0.0
    %2131 = vmatpush1.xpose.msra.mxu0 0.0
    %2132 = vmatprep.mubr.f32.mxu0 0.0
    %2133 = vmatmul.mubr.f32.gmra.mrb[0].mxu0 %v1426
    %v2134 = vpop.f32.mrb[0].mxu0
    %v2135 = vadd.f32 0.0, %v2134
    %v2136 = vpop.f32.mrb[0].mxu0
    %2137 = vdwg.mxu0
    %2138 = vmatprep.subr.mxu0 0.0
    %2139 = vmatpush1.xpose.msra.mxu0 %v1500
    %2140 = vmatprep.subr.mxu0 0.0
    %2141 = vmatpush1.xpose.msra.mxu0 %v1501
    %2142 = vmatprep.subr.mxu0 0.0
    %2143 = vmatpush1.xpose.msra.mxu0 %v1502
    %2144 = vmatprep.subr.mxu0 0.0
    %2145 = vmatpush1.xpose.msra.mxu0 %v1503
    %2146 = vmatprep.subr.mxu0 0.0
    %2147 = vmatpush1.xpose.msra.mxu0 %v1504
    %2148 = vmatprep.subr.mxu0 0.0
    %2149 = vmatpush1.xpose.msra.mxu0 %v1505
    %2150 = vmatprep.subr.mxu0 0.0
    %2151 = vmatpush1.xpose.msra.mxu0 %v1506
    %2152 = vmatprep.subr.mxu0 0.0
    %2153 = vmatpush1.xpose.msra.mxu0 %v1507
    %2154 = vmatprep.subr.mxu0 0.0
    %2155 = vmatpush1.xpose.msra.mxu0 0.0
    %2156 = vmatprep.subr.mxu0 0.0
    %2157 = vmatpush1.xpose.msra.mxu0 0.0
    %2158 = vmatprep.subr.mxu0 0.0
    %2159 = vmatpush1.xpose.msra.mxu0 0.0
    %2160 = vmatprep.subr.mxu0 0.0
    %2161 = vmatpush1.xpose.msra.mxu0 0.0
    %2162 = vmatprep.subr.mxu0 0.0
    %2163 = vmatpush1.xpose.msra.mxu0 0.0
    %2164 = vmatprep.subr.mxu0 0.0
    %2165 = vmatpush1.xpose.msra.mxu0 0.0
    %2166 = vmatprep.subr.mxu0 0.0
    %2167 = vmatpush1.xpose.msra.mxu0 0.0
    %2168 = vmatprep.subr.mxu0 0.0
    %2169 = vmatpush1.xpose.msra.mxu0 0.0
    %2170 = vmatprep.subr.mxu0 0.0
    %2171 = vmatpush1.xpose.msra.mxu0 0.0
    %2172 = vmatprep.subr.mxu0 0.0
    %2173 = vmatpush1.xpose.msra.mxu0 0.0
    %2174 = vmatprep.subr.mxu0 0.0
    %2175 = vmatpush1.xpose.msra.mxu0 0.0
    %2176 = vmatprep.subr.mxu0 0.0
    %2177 = vmatpush1.xpose.msra.mxu0 0.0
    %2178 = vmatprep.subr.mxu0 0.0
    %2179 = vmatpush1.xpose.msra.mxu0 0.0
    %2180 = vmatprep.subr.mxu0 0.0
    %2181 = vmatpush1.xpose.msra.mxu0 0.0
    %2182 = vmatprep.subr.mxu0 0.0
    %2183 = vmatpush1.xpose.msra.mxu0 0.0
    %2184 = vmatprep.subr.mxu0 0.0
    %2185 = vmatpush1.xpose.msra.mxu0 0.0
    %2186 = vmatprep.subr.mxu0 0.0
    %2187 = vmatpush1.xpose.msra.mxu0 0.0
    %2188 = vmatprep.subr.mxu0 0.0
    %2189 = vmatpush1.xpose.msra.mxu0 0.0
    %2190 = vmatprep.subr.mxu0 0.0
    %2191 = vmatpush1.xpose.msra.mxu0 0.0
    %2192 = vmatprep.subr.mxu0 0.0
    %2193 = vmatpush1.xpose.msra.mxu0 0.0
    %2194 = vmatprep.subr.mxu0 0.0
    %2195 = vmatpush1.xpose.msra.mxu0 0.0
    %2196 = vmatprep.subr.mxu0 0.0
    %2197 = vmatpush1.xpose.msra.mxu0 0.0
    %2198 = vmatprep.subr.mxu0 0.0
    %2199 = vmatpush1.xpose.msra.mxu0 0.0
    %2200 = vmatprep.subr.mxu0 0.0
    %2201 = vmatpush1.xpose.msra.mxu0 0.0
    %2202 = vmatprep.mubr.f32.mxu0 0.0
    %2203 = vmatmul.mubr.f32.gmra.mrb[0].mxu0 %v1427
    %v2204 = vpop.f32.mrb[0].mxu0
    %v2205 = vadd.f32 0.0, %v2204
    %v2206 = vpop.f32.mrb[0].mxu0
    %2207 = vdwg.mxu0
    %vm2208 = vcmask 484352
    %v2209 = vsel %vm2208, %v1575, 0.0
    %v2210 = vsel %vm2208, %v1645, 0.0
    %v2211 = vadd.f32 %v2209, %v2210
    %v2212 = vsel %vm2208, %v1715, 0.0
    %v2213 = vadd.f32 %v2211, %v2212
    %v2214 = vsel %vm2208, %v1785, 0.0
    %v2215 = vadd.f32 %v2213, %v2214
    %v2216 = vsel %vm2208, %v1855, 0.0
    %v2217 = vadd.f32 %v2215, %v2216
    %v2218 = vsel %vm2208, %v1925, 0.0
    %v2219 = vadd.f32 %v2217, %v2218
    %v2220 = vsel %vm2208, %v1995, 0.0
    %v2221 = vadd.f32 %v2219, %v2220
    %v2222 = vsel %vm2208, %v2065, 0.0
    %v2223 = vadd.f32 %v2221, %v2222
    %v2224 = vsel %vm2208, %v2135, 0.0
    %v2225 = vadd.f32 %v2223, %v2224
    %v2226 = vsel %vm2208, %v2205, 0.0
    %v2227 = vadd.f32 %v2225, %v2226
    %v2228 = vld [vmem:[%s6] sm:$0x1]
    %v2230 = vlaneseq
    %v2231 = vshrl.u32 %v2230, 7
    %v2232 = vsub.s32 0, %v2231
    %v2233 = vrot.slane %v2228, %v2232
    %v2235 = vadd.f32 %v2227, %v2233
    %v2236 = vsel %vm2208, %v2235, 0.0
    %v2237 = vrot.slane %v2236, 4
    %v2238 = vadd.f32 %v2236, %v2237
    %v2239 = vrot.slane %v2238, 2
    %v2240 = vadd.f32 %v2238, %v2239
    %v2241 = vrot.slane %v2240, 1
    %v2242 = vadd.f32 %v2240, %v2241
    %v2243 = vrcp.pop 2.0
    %v2244 = vmul.f32 %v2242, %v2243
    %v2245 = vsub.f32 %v2235, %v2244
    %v2246 = vmul.f32 %v2245, %v2245
    %v2247 = vsel %vm2208, %v2246, 0.0
    %v2248 = vrot.slane %v2247, 4
    %v2249 = vadd.f32 %v2247, %v2248
    %v2250 = vrot.slane %v2249, 2
    %v2251 = vadd.f32 %v2249, %v2250
    %v2252 = vrot.slane %v2251, 1
    %v2253 = vadd.f32 %v2251, %v2252
    %v2254 = vmul.f32 %v2253, %v2243
    %v2255 = vadd.f32 %v2254, 1e-05
    %v2256 = vrsqrt.pop %v2255
    %v2257 = vld [vmem:[%s7] sm:$0x1]
    %v2258 = vmul.f32 %v2256, %v2257
    %v2259 = vlaneseq
    %v2260 = vshrl.u32 %v2259, 7
    %v2261 = vsub.s32 0, %v2260
    %v2262 = vrot.slane %v2258, %v2261
    %v2263 = vmul.f32 %v2245, %v2262
    %v2264 = vld [vmem:[%s8] sm:$0x1]
    %v2266 = vlaneseq
    %v2267 = vshrl.u32 %v2266, 7
    %v2268 = vsub.s32 0, %v2267
    %v2269 = vrot.slane %v2264, %v2268
    %v2271 = vadd.f32 %v2263, %v2269
    %v2272 = vmax.f32 %v2271, 0.0
    %v2273 = vld [vmem:[%s9] sm:$0xff]
    %v2274 = vld [vmem:[%s9 + $0x8] sm:$0xff]
    %v2275 = vld [vmem:[%s9 + $0x10] sm:$0xff]
    %v2276 = vld [vmem:[%s9 + $0x18] sm:$0xff]
    %v2277 = vld [vmem:[%s9 + $0x20] sm:$0xff]
    %v2278 = vld [vmem:[%s9 + $0x28] sm:$0xff]
    %v2279 = vld [vmem:[%s9 + $0x30] sm:$0xff]
    %v2280 = vld [vmem:[%s9 + $0x38] sm:$0xf]
    %v2281 = vld [vmem:[%s10] sm:$0x1]
    %v2283 = vlaneseq
    %v2284 = vshrl.u32 %v2283, 7
    %v2285 = vsub.s32 0, %v2284
    %v2286 = vrot.slane %v2281, %v2285
    %vm2288 = vcmask 490496
    %v2290 = vsel %vm2288, %v2272, 0
    %vm2292 = vcmask 1043456
    %v2294 = vsel %vm2292, %v2280, 0
    %2296 = vmatprep.subr.mxu0 0.0
    %2297 = vmatpush1.msra.mxu0 %v2273
    %2298 = vmatprep.subr.mxu0 0.0
    %2299 = vmatpush1.msra.mxu0 %v2274
    %2300 = vmatprep.subr.mxu0 0.0
    %2301 = vmatpush1.msra.mxu0 %v2275
    %2302 = vmatprep.subr.mxu0 0.0
    %2303 = vmatpush1.msra.mxu0 %v2276
    %2304 = vmatprep.subr.mxu0 0.0
    %2305 = vmatpush1.msra.mxu0 %v2277
    %2306 = vmatprep.subr.mxu0 0.0
    %2307 = vmatpush1.msra.mxu0 %v2278
    %2308 = vmatprep.subr.mxu0 0.0
    %2309 = vmatpush1.msra.mxu0 %v2279
    %2310 = vmatprep.subr.mxu0 0.0
    %2311 = vmatpush1.msra.mxu0 %v2294
    %2312 = vmatprep.subr.mxu0 0.0
    %2313 = vmatpush1.msra.mxu0 0.0
    %2314 = vmatprep.subr.mxu0 0.0
    %2315 = vmatpush1.msra.mxu0 0.0
    %2316 = vmatprep.subr.mxu0 0.0
    %2317 = vmatpush1.msra.mxu0 0.0
    %2318 = vmatprep.subr.mxu0 0.0
    %2319 = vmatpush1.msra.mxu0 0.0
    %2320 = vmatprep.subr.mxu0 0.0
    %2321 = vmatpush1.msra.mxu0 0.0
    %2322 = vmatprep.subr.mxu0 0.0
    %2323 = vmatpush1.msra.mxu0 0.0
    %2324 = vmatprep.subr.mxu0 0.0
    %2325 = vmatpush1.msra.mxu0 0.0
    %2326 = vmatprep.subr.mxu0 0.0
    %2327 = vmatpush1.msra.mxu0 0.0
    %2328 = vmatprep.subr.mxu0 0.0
    %2329 = vmatpush1.msra.mxu0 0.0
    %2330 = vmatprep.subr.mxu0 0.0
    %2331 = vmatpush1.msra.mxu0 0.0
    %2332 = vmatprep.subr.mxu0 0.0
    %2333 = vmatpush1.msra.mxu0 0.0
    %2334 = vmatprep.subr.mxu0 0.0
    %2335 = vmatpush1.msra.mxu0 0.0
    %2336 = vmatprep.subr.mxu0 0.0
    %2337 = vmatpush1.msra.mxu0 0.0
    %2338 = vmatprep.subr.mxu0 0.0
    %2339 = vmatpush1.msra.mxu0 0.0
    %2340 = vmatprep.subr.mxu0 0.0
    %2341 = vmatpush1.msra.mxu0 0.0
    %2342 = vmatprep.subr.mxu0 0.0
    %2343 = vmatpush1.msra.mxu0 0.0
    %2344 = vmatprep.subr.mxu0 0.0
    %2345 = vmatpush1.msra.mxu0 0.0
    %2346 = vmatprep.subr.mxu0 0.0
    %2347 = vmatpush1.msra.mxu0 0.0
    %2348 = vmatprep.subr.mxu0 0.0
    %2349 = vmatpush1.msra.mxu0 0.0
    %2350 = vmatprep.subr.mxu0 0.0
    %2351 = vmatpush1.msra.mxu0 0.0
    %2352 = vmatprep.subr.mxu0 0.0
    %2353 = vmatpush1.msra.mxu0 0.0
    %2354 = vmatprep.subr.mxu0 0.0
    %2355 = vmatpush1.msra.mxu0 0.0
    %2356 = vmatprep.subr.mxu0 0.0
    %2357 = vmatpush1.msra.mxu0 0.0
    %2358 = vmatprep.subr.mxu0 0.0
    %2359 = vmatpush1.msra.mxu0 0.0
    %2360 = vmatprep.mubr.f32.mxu0 0.0
    %2361 = vmatmul.mubr.f32.gmra.mrb[0].mxu0 %v2290
    %v2362 = vpop.f32.mrb[0].mxu0
    %v2363 = vadd.f32 %v2286, %v2362
    %v2364 = vpop.f32.mrb[0].mxu0
    %2365 = vdwg.mxu0
    %v2366 = vmax.f32 %v2363, 0.0
    %vm2367 = vcmask 74752
    %v2368 = vsel %vm2367, %v2366, -inf
    %2369 = vmax.xlane.f32.xlu0 %v2368
    %v2370 = vpop.xlane.xlu0 %2369
    %v2371 = vsub.f32 %v2366, %v2370
    %v2372 = vmul.f32 %v2371, 1.442695
    %v2373 = vpow.pop %v2372
    %v2374 = vsel %vm2367, %v2373, 0.0
    %2375 = vadd.xlane.f32.xlu0 %v2374
    %v2376 = vpop.xlane.xlu0 %2375
    %v2377 = vlog2.pop %v2376
    %v2378 = vmul.f32 %v2377, 0.6931472
    %v2379 = vsub.f32 %v2371, %v2378
    %2380 = vst.msk [vmem:[#allocation3] sm:$0x3] %vm2367, %v2379
    // Predicated region
    $region46: #{net_forward.3} parent=1 // pred_check
      _
    $region47: #{net_forward.3} parent=1 // pred_check_branch
      %2382 = sbr.rel (0) target = $region49
    $region48: #{net_forward.3} parent=1 // pred_region
      %s2384 = ssub.s32 32, 32
      %2385 = vsyncadd [#allocation4], %s2384
      %s2387 = sshll.u32 [#allocation3], 4
      %s2388 = int_to_ptr.vmem [resolvable:$true] %s2387
      %2390 = dma.vmem_to_hbm [thread:$0]  %s2388, 32, %s11, [#allocation4]
    $region49: #{net_forward.3} parent=1 // pred_fallthru
      _
    // Predicated region
    $region50: #{net_forward.3} parent=1 // pred_check
      _
    $region51: #{net_forward.3} parent=1 // pred_check_branch
      %2392 = sbr.rel (0) target = $region53
    $region52: #{net_forward.3} parent=1 // pred_region
      %2393 = dma.done [#allocation4], 32
    $region53: #{net_forward.3} parent=1 // pred_fallthru
      _
    %2394 = vsyncpa [#allocation4], 1

</llo_original>
